<compile_context>
chip_gen: v7x
topology: tpu7x:2x2x1
jax: 0.10.0
libtpu: 0.0.40
codegen_flags: <defaults>
</compile_context>

<pallas_src>
import jax
import jax.numpy as jnp
from jax import lax
from jax.experimental import pallas as pl
from jax.experimental.pallas import tpu as pltpu


# ---------------------------------------------------------------------------
# Parameter-slab layout (all rows padded to 128 lanes, f32)
# ---------------------------------------------------------------------------
_LANES = 128
_OFF_WM, _OFF_WA, _OFF_WD = 0 * _LANES, 1 * _LANES, 2 * _LANES
_OFF_WLX, _OFF_WLC, _OFF_WMLP = 3 * _LANES, 4 * _LANES, 5 * _LANES
_OFF_BIAS = 6 * _LANES
_ROW_BM, _ROW_BA, _ROW_BD = _OFF_BIAS + 0, _OFF_BIAS + 1, _OFF_BIAS + 2
_ROW_BL, _ROW_BMLP = _OFF_BIAS + 3, _OFF_BIAS + 4
_ROW_UA, _ROW_UX = _OFF_BIAS + 5, _OFF_BIAS + 6
_P_ROWS = _OFF_BIAS + 8          # bias block padded to 8 rows -> 776 rows total


# ---------------------------------------------------------------------------
# Kernel: one (tm, 128) output tile of the full Het_classify forward
# ---------------------------------------------------------------------------
def het_classify_kernel(a_m_ref, a_a_ref, a_d_ref,
                        x_m_ref, x_a_ref, x_d_ref,
                        p_ref, o_ref):
    f32 = jnp.float32
    tm = o_ref.shape[0]

    # static parameter-slab slices (zero runtime cost)
    wm = p_ref[_OFF_WM:_OFF_WM + _LANES, :]
    wa = p_ref[_OFF_WA:_OFF_WA + _LANES, :]
    wd = p_ref[_OFF_WD:_OFF_WD + _LANES, :]
    wl_x = p_ref[_OFF_WLX:_OFF_WLX + _LANES, :]
    wl_c = p_ref[_OFF_WLC:_OFF_WLC + _LANES, :]
    w_mlp = p_ref[_OFF_WMLP:_OFF_WMLP + _LANES, :]
    bm = p_ref[_ROW_BM:_ROW_BM + 1, :]
    ba = p_ref[_ROW_BA:_ROW_BA + 1, :]
    bd = p_ref[_ROW_BD:_ROW_BD + 1, :]
    bl = p_ref[_ROW_BL:_ROW_BL + 1, :]
    b_mlp = p_ref[_ROW_BMLP:_ROW_BMLP + 1, :]
    u_aggr = p_ref[_ROW_UA:_ROW_UA + 1, :]
    u_x = p_ref[_ROW_UX:_ROW_UX + 1, :]

    # destination-node features for this row tile (x_node == x_list[0])
    row0 = pl.multiple_of(pl.program_id(0) * tm, tm)
    x_node = x_m_ref[pl.ds(row0, tm), :]

    # Neigh_Agg: relu(x_src @ W + b) then mean-aggregate via the bf16
    # row-normalized dense adjacency on the MXU (f32 accumulation).
    # h is recomputed per tile (cheap, K = D) so the grid axis can stay
    # "parallel" and be sharded across TensorCores on v7x.
    def neigh_agg(x_ref, w, b, a_ref):
        a = a_ref[...]
        h = jnp.dot(x_ref[...], w, preferred_element_type=f32) + b
        h = jnp.maximum(h, 0.0).astype(a.dtype)
        return jnp.dot(a, h, preferred_element_type=f32)

    m_aggr = neigh_agg(x_m_ref, wm, bm, a_m_ref)
    a_aggr = neigh_agg(x_a_ref, wa, ba, a_a_ref)
    d_aggr = neigh_agg(x_d_ref, wd, bd, a_d_ref)

    # attention: exp(leaky_relu(cat(aggr, x_node) @ u)) without any concat,
    # softmax stabilized with the per-row max (mathematically identical).
    sx = jnp.sum(x_node * u_x, axis=-1, keepdims=True)

    def raw_score(aggr):
        s = jnp.sum(aggr * u_aggr, axis=-1, keepdims=True) + sx
        return jnp.where(s >= 0.0, s, 0.01 * s)        # F.leaky_relu slope 0.01

    sm, sa, sd = raw_score(m_aggr), raw_score(a_aggr), raw_score(d_aggr)
    smax = jnp.maximum(sm, jnp.maximum(sa, sd))
    em = jnp.exp(sm - smax)
    ea = jnp.exp(sa - smax)
    ed = jnp.exp(sd - smax)
    inv = pl.reciprocal(em + ea + ed, approx=True)
    combined = (em * m_aggr + ea * a_aggr + ed * d_aggr) * inv

    # Het_Agg final linear on cat(x_node, combined) via K-split weights + ReLU
    h = (jnp.dot(x_node, wl_x, preferred_element_type=f32)
         + jnp.dot(combined, wl_c, preferred_element_type=f32) + bl)
    h = jnp.maximum(h, 0.0)
    # F.normalize(p=2, dim=-1): h / max(||h||, 1e-12)
    sumsq = jnp.sum(h * h, axis=-1, keepdims=True)
    final = h * lax.rsqrt(jnp.maximum(sumsq, 1e-24))

    # Het_classify head: relu -> dropout (inference identity) -> mlp
    # TODO(synk): training-mode dropout (PRNG mask) not emitted.
    y = jnp.maximum(final, 0.0)
    o_ref[...] = (jnp.dot(y, w_mlp, preferred_element_type=f32)
                  + b_mlp).astype(o_ref.dtype)


# ---------------------------------------------------------------------------
# JAX glue: padding, dense normalized adjacency, parameter slab, pallas_call
# ---------------------------------------------------------------------------
def _round_up(n, m):
    return (n + m - 1) // m * m


def _pad2(x, rows, cols, dtype=jnp.float32):
    out = jnp.zeros((rows, cols), dtype)
    return out.at[:x.shape[0], :x.shape[1]].set(x.astype(dtype))


def build_norm_adjacency(edge_index, edge_weight, rows_p, cols_p, dtype):
    """A[src, tgt] += w; each row divided by clamp(bincount(src), min=1)."""
    src, tgt = edge_index[0], edge_index[1]
    if edge_weight is None:
        edge_weight = jnp.ones((edge_index.shape[1],), jnp.float32)
    adj = jnp.zeros((rows_p, cols_p), jnp.float32).at[src, tgt].add(
        edge_weight.astype(jnp.float32))
    deg = jnp.zeros((rows_p,), jnp.float32).at[src].add(1.0)   # bincount(source)
    deg = jnp.maximum(deg, 1.0)                                # .clamp(min=1)
    return (adj / deg[:, None]).astype(dtype)


def pack_params(params, d, lanes=_LANES):
    wm, bm = params["m_agg"]
    wa, ba = params["a_agg"]
    wd, bd = params["d_agg"]
    u = params["u"]                       # (2D, 1)
    wl, bl = params["lin"]                # (2D, D), (D,)
    w_mlp, b_mlp = params["mlp"]          # (D, nclass), (nclass,)

    def wpad(w):
        return _pad2(w, lanes, lanes)

    def rpad(v):
        return _pad2(v.reshape(1, -1), 1, lanes)

    rows = [wpad(wm), wpad(wa), wpad(wd), wpad(wl[:d]), wpad(wl[d:]), wpad(w_mlp),
            rpad(bm), rpad(ba), rpad(bd), rpad(bl), rpad(b_mlp),
            rpad(u[:d, 0]), rpad(u[d:, 0]),
            jnp.zeros((1, lanes), jnp.float32)]
    slab = jnp.concatenate(rows, axis=0)
    assert slab.shape == (_P_ROWS, lanes)
    return slab


def het_classify_forward(x_list, edge_list, edge_weight_list, params, *,
                         tm=128, adj_dtype=jnp.bfloat16):
    x_m, x_a, x_d = x_list
    num_node, d = x_m.shape
    nclass = params["mlp"][0].shape[1]
    lanes = _LANES
    assert d <= lanes and nclass <= lanes
    assert tm % lanes == 0      # keeps the movie adjacency lane dim 128-aligned

    np_ = _round_up(num_node, tm)          # padded destination / movie-source rows
    na_p = _round_up(x_a.shape[0], lanes)  # padded actor sources
    nd_p = _round_up(x_d.shape[0], lanes)  # padded director sources

    # lane-dense padded features (zero rows/lanes contribute nothing)
    x_m_p = _pad2(x_m, np_, lanes)
    x_a_p = _pad2(x_a, na_p, lanes)
    x_d_p = _pad2(x_d, nd_p, lanes)

    # dense row-normalized adjacencies, bf16 for the dominant MXU operand
    a_m = build_norm_adjacency(edge_list[0], edge_weight_list[0], np_, np_, adj_dtype)
    a_a = build_norm_adjacency(edge_list[1], edge_weight_list[1], np_, na_p, adj_dtype)
    a_d = build_norm_adjacency(edge_list[2], edge_weight_list[2], np_, nd_p, adj_dtype)

    slab = pack_params(params, d)

    grid = (np_ // tm,)
    adj_bytes = jnp.dtype(adj_dtype).itemsize
    est = (2 * tm * (np_ + na_p + nd_p) * adj_bytes       # streamed adj tiles (2x buf)
           + 2 * (np_ + na_p + nd_p) * lanes * 4          # resident padded features
           + 2 * _P_ROWS * lanes * 4                      # parameter slab
           + 2 * tm * lanes * 4                           # output tile (2x buf)
           + (np_ + na_p + nd_p) * lanes * 4              # per-type h intermediates
           + 16 * tm * lanes * 4)                         # working tiles
    # generous but clamped so it is safe on v7x (64 MiB VMEM) as well as v5e/v6e
    vmem_limit = int(min(max(2 * est, 32 * 1024 * 1024), 48 * 1024 * 1024))

    out_p = pl.pallas_call(
        het_classify_kernel,
        out_shape=jax.ShapeDtypeStruct((np_, lanes), x_m.dtype),
        grid_spec=pltpu.PrefetchScalarGridSpec(
            num_scalar_prefetch=0,
            grid=grid,
            in_specs=[
                pl.BlockSpec((tm, np_), lambda i: (i, 0)),     # a_m row tile
                pl.BlockSpec((tm, na_p), lambda i: (i, 0)),    # a_a row tile
                pl.BlockSpec((tm, nd_p), lambda i: (i, 0)),    # a_d row tile
                pl.BlockSpec((np_, lanes), lambda i: (0, 0)),  # x_m (resident)
                pl.BlockSpec((na_p, lanes), lambda i: (0, 0)), # x_a (resident)
                pl.BlockSpec((nd_p, lanes), lambda i: (0, 0)), # x_d (resident)
                pl.BlockSpec((_P_ROWS, lanes), lambda i: (0, 0)),  # param slab
            ],
            out_specs=pl.BlockSpec((tm, lanes), lambda i: (i, 0)),
        ),
        compiler_params=pltpu.CompilerParams(
            dimension_semantics=("parallel",),
            vmem_limit_bytes=vmem_limit),
    )(a_m, a_a, a_d, x_m_p, x_a_p, x_d_p, slab)

    return out_p[:num_node, :nclass]


# ---------------------------------------------------------------------------
# Pure-JAX reference (mirrors the PyTorch forward, gather/scatter form)
# ---------------------------------------------------------------------------
def het_classify_reference(x_list, edge_list, edge_weight_list, params):
    x_m, x_a, x_d = x_list
    num_node, d = x_m.shape

    def neigh_agg(x, edge_index, ew, w, b):
        src, tgt = edge_index[0], edge_index[1]
        h = jnp.maximum(x @ w + b, 0.0)
        msg = h[tgt] * ew[:, None]
        aggr = jnp.zeros((num_node, d), x.dtype).at[src].add(msg)
        deg = jnp.maximum(jnp.zeros((num_node,), x.dtype).at[src].add(1.0), 1.0)
        return aggr / deg[:, None]

    wm, bm = params["m_agg"]
    wa, ba = params["a_agg"]
    wd, bd = params["d_agg"]
    m_aggr = neigh_agg(x_m, edge_list[0], edge_weight_list[0], wm, bm)
    a_aggr = neigh_agg(x_a, edge_list[1], edge_weight_list[1], wa, ba)
    d_aggr = neigh_agg(x_d, edge_list[2], edge_weight_list[2], wd, bd)

    x_node = x_m
    u = params["u"]

    def score(aggr):
        s = jnp.concatenate([aggr, x_node], axis=-1) @ u
        s = jnp.where(s >= 0.0, s, 0.01 * s)
        return jnp.exp(s)

    ms, as_, ds = score(m_aggr), score(a_aggr), score(d_aggr)
    tot = ms + as_ + ds
    combined = (ms / tot) * m_aggr + (as_ / tot) * a_aggr + (ds / tot) * d_aggr

    wl, bl = params["lin"]
    h = jnp.maximum(jnp.concatenate([x_node, combined], axis=-1) @ wl + bl, 0.0)
    nrm = jnp.sqrt(jnp.sum(h * h, axis=-1, keepdims=True))
    final = h / jnp.maximum(nrm, 1e-12)

    y = jnp.maximum(final, 0.0)
    wmlp, bmlp = params["mlp"]
    return y @ wmlp + bmlp


# ---------------------------------------------------------------------------
# Deterministic example
# ---------------------------------------------------------------------------
def init_linear(key, d_in, d_out, dtype=jnp.float32):
    kw, kb = jax.random.split(key)
    bound = 1.0 / (d_in ** 0.5)
    w = jax.random.uniform(kw, (d_in, d_out), dtype, -bound, bound)
    b = jax.random.uniform(kb, (d_out,), dtype, -bound, bound)
    return w, b


if __name__ == "__main__":
    embed_dim = 32
    nclass = 4
    n_movies, n_actors, n_directors = 256, 192, 160
    e_m, e_a, e_d = 1024, 768, 640

    key = jax.random.PRNGKey(0)
    ks = jax.random.split(key, 20)

    x_list = [
        jax.random.normal(ks[0], (n_movies, embed_dim), jnp.float32),
        jax.random.normal(ks[1], (n_actors, embed_dim), jnp.float32),
        jax.random.normal(ks[2], (n_directors, embed_dim), jnp.float32),
    ]
    edge_list = [
        jnp.stack([jax.random.randint(ks[3], (e_m,), 0, n_movies),
                   jax.random.randint(ks[4], (e_m,), 0, n_movies)]),
        jnp.stack([jax.random.randint(ks[5], (e_a,), 0, n_movies),
                   jax.random.randint(ks[6], (e_a,), 0, n_actors)]),
        jnp.stack([jax.random.randint(ks[7], (e_d,), 0, n_movies),
                   jax.random.randint(ks[8], (e_d,), 0, n_directors)]),
    ]
    edge_weight_list = [
        jax.random.uniform(ks[9], (e_m,), jnp.float32, 0.5, 1.5),
        jax.random.uniform(ks[10], (e_a,), jnp.float32, 0.5, 1.5),
        jax.random.uniform(ks[11], (e_d,), jnp.float32, 0.5, 1.5),
    ]

    w_mlp = 0.05 * jax.random.normal(ks[16], (embed_dim, nclass), jnp.float32)
    _, b_mlp = init_linear(ks[17], embed_dim, nclass)
    params = {
        "m_agg": init_linear(ks[12], embed_dim, embed_dim),
        "a_agg": init_linear(ks[13], embed_dim, embed_dim),
        "d_agg": init_linear(ks[14], embed_dim, embed_dim),
        "u": jax.random.normal(ks[15], (2 * embed_dim, 1), jnp.float32),
        "lin": init_linear(ks[18], 2 * embed_dim, embed_dim),
        "mlp": (w_mlp, b_mlp),
    }

    out = het_classify_forward(x_list, edge_list, edge_weight_list, params)
    out = jax.block_until_ready(out)

    ref = jax.block_until_ready(
        het_classify_reference(x_list, edge_list, edge_weight_list, params))

    assert out.shape == (n_movies, nclass)
    assert bool(jnp.all(jnp.isfinite(out)))
    assert bool(jnp.allclose(out, ref, rtol=1e-2, atol=1e-2)), (
        float(jnp.max(jnp.abs(out - ref))))

    print("KERNEL_OK")
</pallas_src>

<mosaic_0001>
module attributes {stable_mosaic.version = 11 : i64} {
  func.func @het_classify_kernel(%arg0: i32, %arg1: memref<128x256xbf16, #tpu.memory_space<vmem>>, %arg2: memref<128x256xbf16, #tpu.memory_space<vmem>>, %arg3: memref<128x256xbf16, #tpu.memory_space<vmem>>, %arg4: memref<256x128xf32, #tpu.memory_space<vmem>>, %arg5: memref<256x128xf32, #tpu.memory_space<vmem>>, %arg6: memref<256x128xf32, #tpu.memory_space<vmem>>, %arg7: memref<776x128xf32, #tpu.memory_space<vmem>>, %arg8: memref<128x128xf32, #tpu.memory_space<vmem>>) attributes {dimension_semantics = [#tpu.dimension_semantics<parallel>], iteration_bounds = array<i64: 2>, scalar_prefetch = 0 : i64, scratch_operands = 0 : i64, tpu.core_type = #tpu.core_type<tc>, window_params = [{transform_indices = @transform_0, window_bounds = array<i64: 128, 256>}, {transform_indices = @transform_1, window_bounds = array<i64: 128, 256>}, {transform_indices = @transform_2, window_bounds = array<i64: 128, 256>}, {pipeline_mode = #tpu.pipeline_mode<synchronous>, transform_indices = @transform_3, window_bounds = array<i64: 256, 128>}, {pipeline_mode = #tpu.pipeline_mode<synchronous>, transform_indices = @transform_4, window_bounds = array<i64: 256, 128>}, {pipeline_mode = #tpu.pipeline_mode<synchronous>, transform_indices = @transform_5, window_bounds = array<i64: 256, 128>}, {pipeline_mode = #tpu.pipeline_mode<synchronous>, transform_indices = @transform_6, window_bounds = array<i64: 776, 128>}, {transform_indices = @transform_7, window_bounds = array<i64: 128, 128>}]} {
    %c0 = arith.constant 0 : index
    %c0_0 = arith.constant 0 : index
    %0 = vector.load %arg7[%c0, %c0_0] : memref<776x128xf32, #tpu.memory_space<vmem>>, vector<128x128xf32>
    %c128 = arith.constant 128 : index
    %c0_1 = arith.constant 0 : index
    %1 = vector.load %arg7[%c128, %c0_1] : memref<776x128xf32, #tpu.memory_space<vmem>>, vector<128x128xf32>
    %c256 = arith.constant 256 : index
    %c0_2 = arith.constant 0 : index
    %2 = vector.load %arg7[%c256, %c0_2] : memref<776x128xf32, #tpu.memory_space<vmem>>, vector<128x128xf32>
    %c384 = arith.constant 384 : index
    %c0_3 = arith.constant 0 : index
    %3 = vector.load %arg7[%c384, %c0_3] : memref<776x128xf32, #tpu.memory_space<vmem>>, vector<128x128xf32>
    %c512 = arith.constant 512 : index
    %c0_4 = arith.constant 0 : index
    %4 = vector.load %arg7[%c512, %c0_4] : memref<776x128xf32, #tpu.memory_space<vmem>>, vector<128x128xf32>
    %c640 = arith.constant 640 : index
    %c0_5 = arith.constant 0 : index
    %5 = vector.load %arg7[%c640, %c0_5] : memref<776x128xf32, #tpu.memory_space<vmem>>, vector<128x128xf32>
    %c768 = arith.constant 768 : index
    %c0_6 = arith.constant 0 : index
    %6 = vector.load %arg7[%c768, %c0_6] : memref<776x128xf32, #tpu.memory_space<vmem>>, vector<1x128xf32>
    %c769 = arith.constant 769 : index
    %c0_7 = arith.constant 0 : index
    %7 = vector.load %arg7[%c769, %c0_7] : memref<776x128xf32, #tpu.memory_space<vmem>>, vector<1x128xf32>
    %c770 = arith.constant 770 : index
    %c0_8 = arith.constant 0 : index
    %8 = vector.load %arg7[%c770, %c0_8] : memref<776x128xf32, #tpu.memory_space<vmem>>, vector<1x128xf32>
    %c771 = arith.constant 771 : index
    %c0_9 = arith.constant 0 : index
    %9 = vector.load %arg7[%c771, %c0_9] : memref<776x128xf32, #tpu.memory_space<vmem>>, vector<1x128xf32>
    %c772 = arith.constant 772 : index
    %c0_10 = arith.constant 0 : index
    %10 = vector.load %arg7[%c772, %c0_10] : memref<776x128xf32, #tpu.memory_space<vmem>>, vector<1x128xf32>
    %c773 = arith.constant 773 : index
    %c0_11 = arith.constant 0 : index
    %11 = vector.load %arg7[%c773, %c0_11] : memref<776x128xf32, #tpu.memory_space<vmem>>, vector<1x128xf32>
    %c774 = arith.constant 774 : index
    %c0_12 = arith.constant 0 : index
    %12 = vector.load %arg7[%c774, %c0_12] : memref<776x128xf32, #tpu.memory_space<vmem>>, vector<1x128xf32>
    %c128_i32 = arith.constant 128 : i32
    %13 = arith.muli %arg0, %c128_i32 : i32
    %14 = tpu.assume_multiple %13, 128 : i32
    %15 = arith.index_cast %14 : i32 to index
    %c0_13 = arith.constant 0 : index
    %16 = vector.load %arg4[%15, %c0_13] : memref<256x128xf32, #tpu.memory_space<vmem>>, vector<128x128xf32>
    %c0_14 = arith.constant 0 : index
    %c0_15 = arith.constant 0 : index
    %17 = vector.load %arg1[%c0_14, %c0_15] : memref<128x256xbf16, #tpu.memory_space<vmem>>, vector<128x256xbf16>
    %c0_16 = arith.constant 0 : index
    %c0_17 = arith.constant 0 : index
    %18 = vector.load %arg4[%c0_16, %c0_17] : memref<256x128xf32, #tpu.memory_space<vmem>>, vector<256x128xf32>
    %cst = arith.constant dense<0.000000e+00> : vector<256x128xf32>
    %19 = tpu.matmul %18, %0, %cst {dimension_numbers = #tpu.dot_dimension_numbers<[1], [0], [0], [1], [0, 0, 1, 1], [], []>} : vector<256x128xf32>, vector<128x128xf32>, vector<256x128xf32> -> vector<256x128xf32>
    %20 = vector.broadcast %6 : vector<1x128xf32> to vector<256x128xf32>
    %21 = arith.addf %19, %20 : vector<256x128xf32>
    %cst_18 = arith.constant 0.000000e+00 : f32
    %22 = vector.broadcast %cst_18 : f32 to vector<256x128xf32>
    %23 = arith.maximumf %21, %22 : vector<256x128xf32>
    %24 = arith.truncf %23 : vector<256x128xf32> to vector<256x128xbf16>
    %cst_19 = arith.constant dense<0.000000e+00> : vector<128x128xf32>
    %25 = tpu.matmul %17, %24, %cst_19 {dimension_numbers = #tpu.dot_dimension_numbers<[1], [0], [0], [1], [0, 0, 1, 1], [], []>} : vector<128x256xbf16>, vector<256x128xbf16>, vector<128x128xf32> -> vector<128x128xf32>
    %c0_20 = arith.constant 0 : index
    %c0_21 = arith.constant 0 : index
    %26 = vector.load %arg2[%c0_20, %c0_21] : memref<128x256xbf16, #tpu.memory_space<vmem>>, vector<128x256xbf16>
    %c0_22 = arith.constant 0 : index
    %c0_23 = arith.constant 0 : index
    %27 = vector.load %arg5[%c0_22, %c0_23] : memref<256x128xf32, #tpu.memory_space<vmem>>, vector<256x128xf32>
    %cst_24 = arith.constant dense<0.000000e+00> : vector<256x128xf32>
    %28 = tpu.matmul %27, %1, %cst_24 {dimension_numbers = #tpu.dot_dimension_numbers<[1], [0], [0], [1], [0, 0, 1, 1], [], []>} : vector<256x128xf32>, vector<128x128xf32>, vector<256x128xf32> -> vector<256x128xf32>
    %29 = vector.broadcast %7 : vector<1x128xf32> to vector<256x128xf32>
    %30 = arith.addf %28, %29 : vector<256x128xf32>
    %cst_25 = arith.constant 0.000000e+00 : f32
    %31 = vector.broadcast %cst_25 : f32 to vector<256x128xf32>
    %32 = arith.maximumf %30, %31 : vector<256x128xf32>
    %33 = arith.truncf %32 : vector<256x128xf32> to vector<256x128xbf16>
    %cst_26 = arith.constant dense<0.000000e+00> : vector<128x128xf32>
    %34 = tpu.matmul %26, %33, %cst_26 {dimension_numbers = #tpu.dot_dimension_numbers<[1], [0], [0], [1], [0, 0, 1, 1], [], []>} : vector<128x256xbf16>, vector<256x128xbf16>, vector<128x128xf32> -> vector<128x128xf32>
    %c0_27 = arith.constant 0 : index
    %c0_28 = arith.constant 0 : index
    %35 = vector.load %arg3[%c0_27, %c0_28] : memref<128x256xbf16, #tpu.memory_space<vmem>>, vector<128x256xbf16>
    %c0_29 = arith.constant 0 : index
    %c0_30 = arith.constant 0 : index
    %36 = vector.load %arg6[%c0_29, %c0_30] : memref<256x128xf32, #tpu.memory_space<vmem>>, vector<256x128xf32>
    %cst_31 = arith.constant dense<0.000000e+00> : vector<256x128xf32>
    %37 = tpu.matmul %36, %2, %cst_31 {dimension_numbers = #tpu.dot_dimension_numbers<[1], [0], [0], [1], [0, 0, 1, 1], [], []>} : vector<256x128xf32>, vector<128x128xf32>, vector<256x128xf32> -> vector<256x128xf32>
    %38 = vector.broadcast %8 : vector<1x128xf32> to vector<256x128xf32>
    %39 = arith.addf %37, %38 : vector<256x128xf32>
    %cst_32 = arith.constant 0.000000e+00 : f32
    %40 = vector.broadcast %cst_32 : f32 to vector<256x128xf32>
    %41 = arith.maximumf %39, %40 : vector<256x128xf32>
    %42 = arith.truncf %41 : vector<256x128xf32> to vector<256x128xbf16>
    %cst_33 = arith.constant dense<0.000000e+00> : vector<128x128xf32>
    %43 = tpu.matmul %35, %42, %cst_33 {dimension_numbers = #tpu.dot_dimension_numbers<[1], [0], [0], [1], [0, 0, 1, 1], [], []>} : vector<128x256xbf16>, vector<256x128xbf16>, vector<128x128xf32> -> vector<128x128xf32>
    %44 = vector.broadcast %12 : vector<1x128xf32> to vector<128x128xf32>
    %45 = arith.mulf %16, %44 : vector<128x128xf32>
    %cst_34 = arith.constant dense<0.000000e+00> : vector<128xf32>
    %46 = vector.multi_reduction <add>, %45, %cst_34 [1] : vector<128x128xf32> to vector<128xf32>
    %47 = vector.shape_cast %46 : vector<128xf32> to vector<128x1xf32>
    %48 = vector.broadcast %11 : vector<1x128xf32> to vector<128x128xf32>
    %49 = arith.mulf %25, %48 : vector<128x128xf32>
    %cst_35 = arith.constant dense<0.000000e+00> : vector<128xf32>
    %50 = vector.multi_reduction <add>, %49, %cst_35 [1] : vector<128x128xf32> to vector<128xf32>
    %51 = vector.shape_cast %50 : vector<128xf32> to vector<128x1xf32>
    %52 = arith.addf %51, %47 : vector<128x1xf32>
    %cst_36 = arith.constant 0.000000e+00 : f32
    %53 = vector.broadcast %cst_36 : f32 to vector<128x1xf32>
    %54 = arith.cmpf oge, %52, %53 : vector<128x1xf32>
    %cst_37 = arith.constant 0.00999999977 : f32
    %55 = vector.broadcast %cst_37 : f32 to vector<128x1xf32>
    %56 = arith.mulf %55, %52 : vector<128x1xf32>
    %57 = arith.select %54, %52, %56 : vector<128x1xi1>, vector<128x1xf32>
    %58 = vector.broadcast %11 : vector<1x128xf32> to vector<128x128xf32>
    %59 = arith.mulf %34, %58 : vector<128x128xf32>
    %cst_38 = arith.constant dense<0.000000e+00> : vector<128xf32>
    %60 = vector.multi_reduction <add>, %59, %cst_38 [1] : vector<128x128xf32> to vector<128xf32>
    %61 = vector.shape_cast %60 : vector<128xf32> to vector<128x1xf32>
    %62 = arith.addf %61, %47 : vector<128x1xf32>
    %cst_39 = arith.constant 0.000000e+00 : f32
    %63 = vector.broadcast %cst_39 : f32 to vector<128x1xf32>
    %64 = arith.cmpf oge, %62, %63 : vector<128x1xf32>
    %cst_40 = arith.constant 0.00999999977 : f32
    %65 = vector.broadcast %cst_40 : f32 to vector<128x1xf32>
    %66 = arith.mulf %65, %62 : vector<128x1xf32>
    %67 = arith.select %64, %62, %66 : vector<128x1xi1>, vector<128x1xf32>
    %68 = vector.broadcast %11 : vector<1x128xf32> to vector<128x128xf32>
    %69 = arith.mulf %43, %68 : vector<128x128xf32>
    %cst_41 = arith.constant dense<0.000000e+00> : vector<128xf32>
    %70 = vector.multi_reduction <add>, %69, %cst_41 [1] : vector<128x128xf32> to vector<128xf32>
    %71 = vector.shape_cast %70 : vector<128xf32> to vector<128x1xf32>
    %72 = arith.addf %71, %47 : vector<128x1xf32>
    %cst_42 = arith.constant 0.000000e+00 : f32
    %73 = vector.broadcast %cst_42 : f32 to vector<128x1xf32>
    %74 = arith.cmpf oge, %72, %73 : vector<128x1xf32>
    %cst_43 = arith.constant 0.00999999977 : f32
    %75 = vector.broadcast %cst_43 : f32 to vector<128x1xf32>
    %76 = arith.mulf %75, %72 : vector<128x1xf32>
    %77 = arith.select %74, %72, %76 : vector<128x1xi1>, vector<128x1xf32>
    %78 = arith.maximumf %67, %77 : vector<128x1xf32>
    %79 = arith.maximumf %57, %78 : vector<128x1xf32>
    %80 = arith.subf %57, %79 : vector<128x1xf32>
    %81 = math.exp %80 : vector<128x1xf32>
    %82 = arith.subf %67, %79 : vector<128x1xf32>
    %83 = math.exp %82 : vector<128x1xf32>
    %84 = arith.subf %77, %79 : vector<128x1xf32>
    %85 = math.exp %84 : vector<128x1xf32>
    %86 = arith.addf %81, %83 : vector<128x1xf32>
    %87 = arith.addf %86, %85 : vector<128x1xf32>
    %88 = tpu.reciprocal %87 {approx = true} : vector<128x1xf32> -> vector<128x1xf32>
    %89 = vector.broadcast %81 : vector<128x1xf32> to vector<128x128xf32>
    %90 = arith.mulf %89, %25 : vector<128x128xf32>
    %91 = vector.broadcast %83 : vector<128x1xf32> to vector<128x128xf32>
    %92 = arith.mulf %91, %34 : vector<128x128xf32>
    %93 = arith.addf %90, %92 : vector<128x128xf32>
    %94 = vector.broadcast %85 : vector<128x1xf32> to vector<128x128xf32>
    %95 = arith.mulf %94, %43 : vector<128x128xf32>
    %96 = arith.addf %93, %95 : vector<128x128xf32>
    %97 = vector.broadcast %88 : vector<128x1xf32> to vector<128x128xf32>
    %98 = arith.mulf %96, %97 : vector<128x128xf32>
    %cst_44 = arith.constant dense<0.000000e+00> : vector<128x128xf32>
    %99 = tpu.matmul %16, %3, %cst_44 {dimension_numbers = #tpu.dot_dimension_numbers<[1], [0], [0], [1], [0, 0, 1, 1], [], []>} : vector<128x128xf32>, vector<128x128xf32>, vector<128x128xf32> -> vector<128x128xf32>
    %cst_45 = arith.constant dense<0.000000e+00> : vector<128x128xf32>
    %100 = tpu.matmul %98, %4, %cst_45 {dimension_numbers = #tpu.dot_dimension_numbers<[1], [0], [0], [1], [0, 0, 1, 1], [], []>} : vector<128x128xf32>, vector<128x128xf32>, vector<128x128xf32> -> vector<128x128xf32>
    %101 = arith.addf %99, %100 : vector<128x128xf32>
    %102 = vector.broadcast %9 : vector<1x128xf32> to vector<128x128xf32>
    %103 = arith.addf %101, %102 : vector<128x128xf32>
    %cst_46 = arith.constant 0.000000e+00 : f32
    %104 = vector.broadcast %cst_46 : f32 to vector<128x128xf32>
    %105 = arith.maximumf %103, %104 : vector<128x128xf32>
    %106 = arith.mulf %105, %105 : vector<128x128xf32>
    %cst_47 = arith.constant dense<0.000000e+00> : vector<128xf32>
    %107 = vector.multi_reduction <add>, %106, %cst_47 [1] : vector<128x128xf32> to vector<128xf32>
    %108 = vector.shape_cast %107 : vector<128xf32> to vector<128x1xf32>
    %cst_48 = arith.constant 1.000000e-24 : f32
    %109 = vector.broadcast %cst_48 : f32 to vector<128x1xf32>
    %110 = arith.maximumf %108, %109 : vector<128x1xf32>
    %111 = math.rsqrt %110 : vector<128x1xf32>
    %112 = vector.broadcast %111 : vector<128x1xf32> to vector<128x128xf32>
    %113 = arith.mulf %105, %112 : vector<128x128xf32>
    %cst_49 = arith.constant 0.000000e+00 : f32
    %114 = vector.broadcast %cst_49 : f32 to vector<128x128xf32>
    %115 = arith.maximumf %113, %114 : vector<128x128xf32>
    %cst_50 = arith.constant dense<0.000000e+00> : vector<128x128xf32>
    %116 = tpu.matmul %115, %5, %cst_50 {dimension_numbers = #tpu.dot_dimension_numbers<[1], [0], [0], [1], [0, 0, 1, 1], [], []>} : vector<128x128xf32>, vector<128x128xf32>, vector<128x128xf32> -> vector<128x128xf32>
    %117 = vector.broadcast %10 : vector<1x128xf32> to vector<128x128xf32>
    %118 = arith.addf %116, %117 : vector<128x128xf32>
    %c0_51 = arith.constant 0 : index
    %c0_52 = arith.constant 0 : index
    %119 = vector.load %arg8[%c0_51, %c0_52] : memref<128x128xf32, #tpu.memory_space<vmem>>, vector<128x128xf32>
    tpu.vector_store %arg8[%c0_51, %c0_52], %118 {strides = array<i32>} : memref<128x128xf32, #tpu.memory_space<vmem>>, vector<128x128xf32>,
    return
  }
  func.func @transform_0(%arg0: i32) -> (i32, i32) {
    %c0_i32 = arith.constant 0 : i32
    %c0_i32_0 = arith.constant 0 : i32
    return %arg0, %c0_i32 : i32, i32
  }
  func.func @transform_1(%arg0: i32) -> (i32, i32) {
    %c0_i32 = arith.constant 0 : i32
    %c0_i32_0 = arith.constant 0 : i32
    return %arg0, %c0_i32 : i32, i32
  }
  func.func @transform_2(%arg0: i32) -> (i32, i32) {
    %c0_i32 = arith.constant 0 : i32
    %c0_i32_0 = arith.constant 0 : i32
    return %arg0, %c0_i32 : i32, i32
  }
  func.func @transform_3(%arg0: i32) -> (i32, i32) {
    %c0_i32 = arith.constant 0 : i32
    %c0_i32_0 = arith.constant 0 : i32
    %c0_i32_1 = arith.constant 0 : i32
    return %c0_i32, %c0_i32_0 : i32, i32
  }
  func.func @transform_4(%arg0: i32) -> (i32, i32) {
    %c0_i32 = arith.constant 0 : i32
    %c0_i32_0 = arith.constant 0 : i32
    %c0_i32_1 = arith.constant 0 : i32
    return %c0_i32, %c0_i32_0 : i32, i32
  }
  func.func @transform_5(%arg0: i32) -> (i32, i32) {
    %c0_i32 = arith.constant 0 : i32
    %c0_i32_0 = arith.constant 0 : i32
    %c0_i32_1 = arith.constant 0 : i32
    return %c0_i32, %c0_i32_0 : i32, i32
  }
  func.func @transform_6(%arg0: i32) -> (i32, i32) {
    %c0_i32 = arith.constant 0 : i32
    %c0_i32_0 = arith.constant 0 : i32
    %c0_i32_1 = arith.constant 0 : i32
    return %c0_i32, %c0_i32_0 : i32, i32
  }
  func.func @transform_7(%arg0: i32) -> (i32, i32) {
    %c0_i32 = arith.constant 0 : i32
    %c0_i32_0 = arith.constant 0 : i32
    return %arg0, %c0_i32 : i32, i32
  }
}

</mosaic_0001>

<llo_original>
// kernel: tpu_custom_call.1
$region0: #{tpu_custom_call.1}
  #allocation0 [shape = 'u32[]', space=smem, size = 0x4, offset = 0x4, fixed_abs, tag = 'smem constant byte address 0x4 - core index']
  #allocation1 [shape = 'u32[144,128]{1,0:T(1,128)}', space=vmem, size = 0x12000, scoped, tag = 'internal scratch']
  %s0 = inlined_call_operand.hbm [shape: bf16[256,256], index: 0, kind: input, shape index: {}]
  %s1 = inlined_call_operand.hbm [shape: bf16[256,256], index: 1, kind: input, shape index: {}]
  %s2 = inlined_call_operand.hbm [shape: bf16[256,256], index: 2, kind: input, shape index: {}]
  %s3 = inlined_call_operand.hbm [shape: f32[256,128], index: 3, kind: input, shape index: {}]
  %s4 = inlined_call_operand.hbm [shape: f32[256,128], index: 4, kind: input, shape index: {}]
  %s5 = inlined_call_operand.hbm [shape: f32[256,128], index: 5, kind: input, shape index: {}]
  %s6 = inlined_call_operand.hbm [shape: f32[776,128], index: 6, kind: input, shape index: {}]
  %s7 = inlined_call_operand.hbm [shape: f32[256,128], index: 7, kind: output, shape index: {}]
  %s8 = sld [smem:[#allocation0]]
  $region89: #{tpu_custom_call.1} parent=0
    _
  %s10 = ssub.s32 1, %s8
  %s11 = scalar_select 0, %s10, %s8
  $region1: #{tpu_custom_call.1} parent=0
    #allocation2 [shape = 'u8[131072]{0}', space=vmem, size = 0x20000, scoped, tag = 'input window, operand 0']
    #allocation3 [shape = 's32[2]{0}', space=sflag, size = 0x8, scoped, tag = 'scoped memory for tpu_custom_call.1']
    #allocation4 [shape = 's32[2]{0}', space=sflag, size = 0x8, scoped, tag = 'scoped memory for tpu_custom_call.1']
    #allocation5 [shape = 'u8[131072]{0}', space=vmem, size = 0x20000, scoped, tag = 'input window, operand 1']
    #allocation6 [shape = 's32[2]{0}', space=sflag, size = 0x8, scoped, tag = 'scoped memory for tpu_custom_call.1']
    #allocation7 [shape = 'u8[131072]{0}', space=vmem, size = 0x20000, scoped, tag = 'input window, operand 2']
    #allocation8 [shape = 'u8[131072]{0}', space=vmem, size = 0x20000, scoped, tag = 'input window, operand 3, single buffered']
    #allocation9 [shape = 's32[1]{0}', space=sflag, size = 0x4, scoped, tag = 'scoped memory for tpu_custom_call.1']
    #allocation10 [shape = 'u8[131072]{0}', space=vmem, size = 0x20000, scoped, tag = 'input window, operand 4, single buffered']
    #allocation11 [shape = 'u8[131072]{0}', space=vmem, size = 0x20000, scoped, tag = 'input window, operand 5, single buffered']
    #allocation12 [shape = 's32[1]{0}', space=sflag, size = 0x4, scoped, tag = 'scoped memory for tpu_custom_call.1']
    #allocation13 [shape = 'u8[397312]{0}', space=vmem, size = 0x61000, scoped, tag = 'input window, operand 6, single buffered']
    #allocation14 [shape = 'u8[131072]{0}', space=vmem, size = 0x20000, scoped, tag = 'output window, operand 0']
    %12 = vsyncpa [#allocation3], 0
    %s13 = scalar_lea.sflag [#allocation3], 1
    %14 = vsyncpa %s13, 0
    %15 = vsyncpa [#allocation6], 0
    %s16 = scalar_lea.sflag [#allocation6], 1
    %17 = vsyncpa %s16, 0
    %18 = vsyncpa [#allocation9], 0
    %19 = vsyncpa [#allocation12], 0
    %20 = vsyncpa [#allocation4], 0
    %s21 = scalar_lea.sflag [#allocation4], 1
    %22 = vsyncpa %s21, 0
    loop: start=0, step=1, limit=4
    $region2: #{tpu_custom_call.1} parent=1 // loop_pre_header
      _
    $region3: #{tpu_custom_call.1} parent=1 // loop_header
      %s24 = sphi 0, %s28
      %p25 = scmp.ge.s32.totalorder %s24, 4
      %s34 = sphi 0, %s36
      %s37 = sphi 0, %s34
      %s38 = sphi 0, %s37
      %s54 = sphi 0, %s38
      %s60 = sphi 0, %s62
      %s63 = sphi 0, %s60
      %s64 = sphi 0, %s63
      %s80 = sphi 0, %s64
      %s86 = sphi 0, %s88
      %s89 = sphi 0, %s86
      %s90 = sphi 0, %s89
      %s106 = sphi 0, %s90
      %s110 = sphi 0, %s110
      %s112 = sphi 0, %s110
      %s113 = sphi 0, %s112
      %s127 = sphi 0, %s113
      %s131 = sphi 0, %s131
      %s133 = sphi 0, %s131
      %s134 = sphi 0, %s133
      %s148 = sphi 0, %s134
      %s152 = sphi 0, %s152
      %s154 = sphi 0, %s152
      %s155 = sphi 0, %s154
      %s169 = sphi 0, %s155
      %s173 = sphi 0, %s173
      %s175 = sphi 0, %s173
      %s176 = sphi 0, %s175
      %s190 = sphi 0, %s176
      %s196 = sphi 0, %s198
      %s199 = sphi 0, %s196
      %s200 = sphi 0, %s199
      %s216 = sphi 0, %s200
    $region4: #{tpu_custom_call.1} parent=1 // loop_header_branch
      %27 = sbr.rel (%p25) target = $region8
    $region5: #{tpu_custom_call.1} parent=1 // loop_body
      %s29 = ssub.s32 %s24, 1
      %s30 = ssub.s32 %s24, 2
      %s31 = sadd.s32 %s24, 1
      %s32 = ssub.s32 %s24, %s31
      %p33 = scmp.eq.s32.totalorder %s32, 0
      %s35 = sadd.s32 %s34, 1
      %s36 = scalar_select %p33, %s34, %s35
      %p39 = pneg %p33
      %p40 = scmp.eq.s32.totalorder %s24, 1
      %p41 = por %p39, %p40
      %p42 = scmp.ne.s32.totalorder %s34, %s37
      %p43 = scmp.eq.s32.totalorder %s24, 0
      %p44 = por %p42, %p43
      %p45 = scmp.ne.s32.totalorder %s34, %s37
      %p46 = scmp.eq.s32.totalorder %s29, 1
      %p47 = por %p45, %p46
      %p48 = scmp.ne.s32.totalorder %s37, %s38
      %p49 = scmp.eq.s32.totalorder %s29, 0
      %p50 = por %p48, %p49
      %p51 = scmp.ne.s32.totalorder %s37, %s38
      %p52 = scmp.eq.s32.totalorder %s30, 1
      %p53 = por %p51, %p52
      %p55 = scmp.ne.s32.totalorder %s38, %s54
      %p56 = scmp.eq.s32.totalorder %s30, 0
      %p57 = por %p55, %p56
      %s58 = ssub.s32 %s24, %s31
      %p59 = scmp.eq.s32.totalorder %s58, 0
      %s61 = sadd.s32 %s60, 1
      %s62 = scalar_select %p59, %s60, %s61
      %p65 = pneg %p59
      %p66 = scmp.eq.s32.totalorder %s24, 1
      %p67 = por %p65, %p66
      %p68 = scmp.ne.s32.totalorder %s60, %s63
      %p69 = scmp.eq.s32.totalorder %s24, 0
      %p70 = por %p68, %p69
      %p71 = scmp.ne.s32.totalorder %s60, %s63
      %p72 = scmp.eq.s32.totalorder %s29, 1
      %p73 = por %p71, %p72
      %p74 = scmp.ne.s32.totalorder %s63, %s64
      %p75 = scmp.eq.s32.totalorder %s29, 0
      %p76 = por %p74, %p75
      %p77 = scmp.ne.s32.totalorder %s63, %s64
      %p78 = scmp.eq.s32.totalorder %s30, 1
      %p79 = por %p77, %p78
      %p81 = scmp.ne.s32.totalorder %s64, %s80
      %p82 = scmp.eq.s32.totalorder %s30, 0
      %p83 = por %p81, %p82
      %s84 = ssub.s32 %s24, %s31
      %p85 = scmp.eq.s32.totalorder %s84, 0
      %s87 = sadd.s32 %s86, 1
      %s88 = scalar_select %p85, %s86, %s87
      %p91 = pneg %p85
      %p92 = scmp.eq.s32.totalorder %s24, 1
      %p93 = por %p91, %p92
      %p94 = scmp.ne.s32.totalorder %s86, %s89
      %p95 = scmp.eq.s32.totalorder %s24, 0
      %p96 = por %p94, %p95
      %p97 = scmp.ne.s32.totalorder %s86, %s89
      %p98 = scmp.eq.s32.totalorder %s29, 1
      %p99 = por %p97, %p98
      %p100 = scmp.ne.s32.totalorder %s89, %s90
      %p101 = scmp.eq.s32.totalorder %s29, 0
      %p102 = por %p100, %p101
      %p103 = scmp.ne.s32.totalorder %s89, %s90
      %p104 = scmp.eq.s32.totalorder %s30, 1
      %p105 = por %p103, %p104
      %p107 = scmp.ne.s32.totalorder %s90, %s106
      %p108 = scmp.eq.s32.totalorder %s30, 0
      %p109 = por %p107, %p108
      %s111 = sadd.s32 %s110, 1
      %p114 = scmp.eq.s32.totalorder %s24, 1
      %p115 = scmp.ne.s32.totalorder %s110, %s112
      %p116 = scmp.eq.s32.totalorder %s24, 0
      %p117 = por %p115, %p116
      %p118 = scmp.ne.s32.totalorder %s110, %s112
      %p119 = scmp.eq.s32.totalorder %s29, 1
      %p120 = por %p118, %p119
      %p121 = scmp.ne.s32.totalorder %s112, %s113
      %p122 = scmp.eq.s32.totalorder %s29, 0
      %p123 = por %p121, %p122
      %p124 = scmp.ne.s32.totalorder %s112, %s113
      %p125 = scmp.eq.s32.totalorder %s30, 1
      %p126 = por %p124, %p125
      %p128 = scmp.ne.s32.totalorder %s113, %s127
      %p129 = scmp.eq.s32.totalorder %s30, 0
      %p130 = por %p128, %p129
      %s132 = sadd.s32 %s131, 1
      %p135 = scmp.eq.s32.totalorder %s24, 1
      %p136 = scmp.ne.s32.totalorder %s131, %s133
      %p137 = scmp.eq.s32.totalorder %s24, 0
      %p138 = por %p136, %p137
      %p139 = scmp.ne.s32.totalorder %s131, %s133
      %p140 = scmp.eq.s32.totalorder %s29, 1
      %p141 = por %p139, %p140
      %p142 = scmp.ne.s32.totalorder %s133, %s134
      %p143 = scmp.eq.s32.totalorder %s29, 0
      %p144 = por %p142, %p143
      %p145 = scmp.ne.s32.totalorder %s133, %s134
      %p146 = scmp.eq.s32.totalorder %s30, 1
      %p147 = por %p145, %p146
      %p149 = scmp.ne.s32.totalorder %s134, %s148
      %p150 = scmp.eq.s32.totalorder %s30, 0
      %p151 = por %p149, %p150
      %s153 = sadd.s32 %s152, 1
      %p156 = scmp.eq.s32.totalorder %s24, 1
      %p157 = scmp.ne.s32.totalorder %s152, %s154
      %p158 = scmp.eq.s32.totalorder %s24, 0
      %p159 = por %p157, %p158
      %p160 = scmp.ne.s32.totalorder %s152, %s154
      %p161 = scmp.eq.s32.totalorder %s29, 1
      %p162 = por %p160, %p161
      %p163 = scmp.ne.s32.totalorder %s154, %s155
      %p164 = scmp.eq.s32.totalorder %s29, 0
      %p165 = por %p163, %p164
      %p166 = scmp.ne.s32.totalorder %s154, %s155
      %p167 = scmp.eq.s32.totalorder %s30, 1
      %p168 = por %p166, %p167
      %p170 = scmp.ne.s32.totalorder %s155, %s169
      %p171 = scmp.eq.s32.totalorder %s30, 0
      %p172 = por %p170, %p171
      %s174 = sadd.s32 %s173, 1
      %p177 = scmp.eq.s32.totalorder %s24, 1
      %p178 = scmp.ne.s32.totalorder %s173, %s175
      %p179 = scmp.eq.s32.totalorder %s24, 0
      %p180 = por %p178, %p179
      %p181 = scmp.ne.s32.totalorder %s173, %s175
      %p182 = scmp.eq.s32.totalorder %s29, 1
      %p183 = por %p181, %p182
      %p184 = scmp.ne.s32.totalorder %s175, %s176
      %p185 = scmp.eq.s32.totalorder %s29, 0
      %p186 = por %p184, %p185
      %p187 = scmp.ne.s32.totalorder %s175, %s176
      %p188 = scmp.eq.s32.totalorder %s30, 1
      %p189 = por %p187, %p188
      %p191 = scmp.ne.s32.totalorder %s176, %s190
      %p192 = scmp.eq.s32.totalorder %s30, 0
      %p193 = por %p191, %p192
      %s194 = ssub.s32 %s24, %s31
      %p195 = scmp.eq.s32.totalorder %s194, 0
      %s197 = sadd.s32 %s196, 1
      %s198 = scalar_select %p195, %s196, %s197
      %p201 = pneg %p195
      %p202 = scmp.eq.s32.totalorder %s24, 1
      %p203 = por %p201, %p202
      %p204 = scmp.ne.s32.totalorder %s196, %s199
      %p205 = scmp.eq.s32.totalorder %s24, 0
      %p206 = por %p204, %p205
      %p207 = scmp.ne.s32.totalorder %s196, %s199
      %p208 = scmp.eq.s32.totalorder %s29, 1
      %p209 = por %p207, %p208
      %p210 = scmp.ne.s32.totalorder %s199, %s200
      %p211 = scmp.eq.s32.totalorder %s29, 0
      %p212 = por %p210, %p211
      %p213 = scmp.ne.s32.totalorder %s199, %s200
      %p214 = scmp.eq.s32.totalorder %s30, 1
      %p215 = por %p213, %p214
      %p217 = scmp.ne.s32.totalorder %s200, %s216
      %p218 = scmp.eq.s32.totalorder %s30, 0
      %p219 = por %p217, %p218
      %p220 = scmp.le.s32.totalorder 1, %s24
      %p221 = scmp.lt.s32.totalorder %s24, 3
      %p222 = pnand %p220, %p221
      %p223 = pneg %p222
      // Predicated region
      $region9: #{tpu_custom_call.1} parent=5 // pred_check
        _
      $region10: #{tpu_custom_call.1} parent=5 // pred_check_branch
        %225 = sbr.rel (%p222) target = $region12
      $region11: #{tpu_custom_call.1} parent=5 // pred_region
        %s226 = ssub.s32 %s24, 1
        // Predicated region
        $region13: #{tpu_custom_call.1} parent=11 // pred_check
          %p227 = pneg %p123
        $region14: #{tpu_custom_call.1} parent=11 // pred_check_branch
          %229 = sbr.rel (%p227) target = $region16
        $region15: #{tpu_custom_call.1} parent=11 // pred_region
          %s231 = ssub.s32 4096, 4096
          %232 = vsyncadd [#allocation9], %s231
          %s233 = sshll.u32 [#allocation8], 4
          %s234 = int_to_ptr.vmem [resolvable:$true] %s233
          %239 = dma.hbm_to_vmem [thread:$0]  %s3, 4096, %s234, [#allocation9], 128, 128, 8
        $region16: #{tpu_custom_call.1} parent=11 // pred_fallthru
          _
        // Predicated region
        $region17: #{tpu_custom_call.1} parent=11 // pred_check
          %p240 = pneg %p144
        $region18: #{tpu_custom_call.1} parent=11 // pred_check_branch
          %242 = sbr.rel (%p240) target = $region20
        $region19: #{tpu_custom_call.1} parent=11 // pred_region
          %s244 = ssub.s32 4096, 4096
          %245 = vsyncadd [#allocation9], %s244
          %s246 = sshll.u32 [#allocation10], 4
          %s247 = int_to_ptr.vmem [resolvable:$true] %s246
          %252 = dma.hbm_to_vmem [thread:$0]  %s4, 4096, %s247, [#allocation9], 128, 128, 8
        $region20: #{tpu_custom_call.1} parent=11 // pred_fallthru
          _
        // Predicated region
        $region21: #{tpu_custom_call.1} parent=11 // pred_check
          %p253 = pneg %p165
        $region22: #{tpu_custom_call.1} parent=11 // pred_check_branch
          %255 = sbr.rel (%p253) target = $region24
        $region23: #{tpu_custom_call.1} parent=11 // pred_region
          %s257 = ssub.s32 4096, 4096
          %258 = vsyncadd [#allocation12], %s257
          %s259 = sshll.u32 [#allocation11], 4
          %s260 = int_to_ptr.vmem [resolvable:$true] %s259
          %265 = dma.hbm_to_vmem [thread:$0]  %s5, 4096, %s260, [#allocation12], 128, 128, 8
        $region24: #{tpu_custom_call.1} parent=11 // pred_fallthru
          _
        // Predicated region
        $region25: #{tpu_custom_call.1} parent=11 // pred_check
          %p266 = pneg %p186
        $region26: #{tpu_custom_call.1} parent=11 // pred_check_branch
          %268 = sbr.rel (%p266) target = $region28
        $region27: #{tpu_custom_call.1} parent=11 // pred_region
          %s270 = ssub.s32 12416, 12416
          %271 = vsyncadd [#allocation12], %s270
          %s272 = sshll.u32 [#allocation13], 4
          %s273 = int_to_ptr.vmem [resolvable:$true] %s272
          %278 = dma.hbm_to_vmem [thread:$0]  %s6, 12416, %s273, [#allocation12], 128, 128, 8
        $region28: #{tpu_custom_call.1} parent=11 // pred_fallthru
          _
      $region12: #{tpu_custom_call.1} parent=5 // pred_fallthru
        _
      %p279 = scmp.lt.s32.totalorder %s24, 2
      // Predicated region
      $region29: #{tpu_custom_call.1} parent=5 // pred_check
        %p280 = pneg %p279
      $region30: #{tpu_custom_call.1} parent=5 // pred_check_branch
        %282 = sbr.rel (%p280) target = $region32
      $region31: #{tpu_custom_call.1} parent=5 // pred_region
        // Predicated region
        $region33: #{tpu_custom_call.1} parent=31 // pred_check
          %p283 = pneg %p44
        $region34: #{tpu_custom_call.1} parent=31 // pred_check_branch
          %285 = sbr.rel (%p283) target = $region36
        $region35: #{tpu_custom_call.1} parent=31 // pred_region
          %s286 = sand.u32 %s34, 1
          %s287 = scalar_lea.sflag [#allocation3], %s286
          %s288 = sand.u32 %s34, 1
          %s289 = smul.addr %s288, 128
          %s290 = scalar_lea.vmem [#allocation2], %s289
          %s291 = smul.u32 16, %s24
          %s293 = ssub.s32 2048, 2048
          %294 = vsyncadd %s287, %s293
          %s295 = smul.addr %s291, 2
          %s296 = smul.addr %s295, 64
          %s297 = scalar_lea.hbm %s0, %s296
          %s298 = sshll.u32 %s290, 4
          %s299 = int_to_ptr.vmem [resolvable:$true] %s298
          %304 = dma.hbm_to_vmem [thread:$0]  %s297, 2048, %s299, %s287, 128, 128, 8
        $region36: #{tpu_custom_call.1} parent=31 // pred_fallthru
          _
        // Predicated region
        $region37: #{tpu_custom_call.1} parent=31 // pred_check
          %p305 = pneg %p70
        $region38: #{tpu_custom_call.1} parent=31 // pred_check_branch
          %307 = sbr.rel (%p305) target = $region40
        $region39: #{tpu_custom_call.1} parent=31 // pred_region
          %s308 = sand.u32 %s24, 1
          %s309 = scalar_lea.sflag [#allocation6], %s308
          %s310 = sand.u32 %s60, 1
          %s311 = smul.addr %s310, 128
          %s312 = scalar_lea.vmem [#allocation5], %s311
          %s313 = smul.u32 16, %s24
          %s315 = ssub.s32 2048, 2048
          %316 = vsyncadd %s309, %s315
          %s317 = smul.addr %s313, 2
          %s318 = smul.addr %s317, 64
          %s319 = scalar_lea.hbm %s1, %s318
          %s320 = sshll.u32 %s312, 4
          %s321 = int_to_ptr.vmem [resolvable:$true] %s320
          %326 = dma.hbm_to_vmem [thread:$0]  %s319, 2048, %s321, %s309, 128, 128, 8
        $region40: #{tpu_custom_call.1} parent=31 // pred_fallthru
          _
        // Predicated region
        $region41: #{tpu_custom_call.1} parent=31 // pred_check
          %p327 = pneg %p96
        $region42: #{tpu_custom_call.1} parent=31 // pred_check_branch
          %329 = sbr.rel (%p327) target = $region44
        $region43: #{tpu_custom_call.1} parent=31 // pred_region
          %s330 = sand.u32 %s24, 1
          %s331 = scalar_lea.sflag [#allocation6], %s330
          %s332 = sand.u32 %s86, 1
          %s333 = smul.addr %s332, 128
          %s334 = scalar_lea.vmem [#allocation7], %s333
          %s335 = smul.u32 16, %s24
          %s337 = ssub.s32 2048, 2048
          %338 = vsyncadd %s331, %s337
          %s339 = smul.addr %s335, 2
          %s340 = smul.addr %s339, 64
          %s341 = scalar_lea.hbm %s2, %s340
          %s342 = sshll.u32 %s334, 4
          %s343 = int_to_ptr.vmem [resolvable:$true] %s342
          %348 = dma.hbm_to_vmem [thread:$0]  %s341, 2048, %s343, %s331, 128, 128, 8
        $region44: #{tpu_custom_call.1} parent=31 // pred_fallthru
          _
      $region32: #{tpu_custom_call.1} parent=5 // pred_fallthru
        _
      %p349 = scmp.le.s32.totalorder 1, %s24
      %p350 = scmp.lt.s32.totalorder %s24, 3
      %p351 = pnand %p349, %p350
      %p352 = pneg %p351
      // Predicated region
      $region45: #{tpu_custom_call.1} parent=5 // pred_check
        _
      $region46: #{tpu_custom_call.1} parent=5 // pred_check_branch
        %354 = sbr.rel (%p351) target = $region48
      $region47: #{tpu_custom_call.1} parent=5 // pred_region
        %s355 = ssub.s32 %s24, 1
        %s356 = sand.u32 %s37, 1
        %s357 = scalar_lea.sflag [#allocation3], %s356
        %s358 = sand.u32 %s37, 1
        %s359 = smul.addr %s358, 128
        %s360 = scalar_lea.vmem [#allocation2], %s359
        // Predicated region
        $region49: #{tpu_custom_call.1} parent=47 // pred_check
          %p361 = pneg %p50
        $region50: #{tpu_custom_call.1} parent=47 // pred_check_branch
          %363 = sbr.rel (%p361) target = $region52
        $region51: #{tpu_custom_call.1} parent=47 // pred_region
          %364 = dma.done %s357, 2048
        $region52: #{tpu_custom_call.1} parent=47 // pred_fallthru
          _
        %s365 = sand.u32 %s29, 1
        %s366 = scalar_lea.sflag [#allocation6], %s365
        %s367 = sand.u32 %s63, 1
        %s368 = smul.addr %s367, 128
        %s369 = scalar_lea.vmem [#allocation5], %s368
        // Predicated region
        $region53: #{tpu_custom_call.1} parent=47 // pred_check
          %p370 = pneg %p76
        $region54: #{tpu_custom_call.1} parent=47 // pred_check_branch
          %372 = sbr.rel (%p370) target = $region56
        $region55: #{tpu_custom_call.1} parent=47 // pred_region
          %373 = dma.done %s366, 2048
        $region56: #{tpu_custom_call.1} parent=47 // pred_fallthru
          _
        %s374 = sand.u32 %s29, 1
        %s375 = scalar_lea.sflag [#allocation6], %s374
        %s376 = sand.u32 %s89, 1
        %s377 = smul.addr %s376, 128
        %s378 = scalar_lea.vmem [#allocation7], %s377
        // Predicated region
        $region57: #{tpu_custom_call.1} parent=47 // pred_check
          %p379 = pneg %p102
        $region58: #{tpu_custom_call.1} parent=47 // pred_check_branch
          %381 = sbr.rel (%p379) target = $region60
        $region59: #{tpu_custom_call.1} parent=47 // pred_region
          %382 = dma.done %s375, 2048
        $region60: #{tpu_custom_call.1} parent=47 // pred_fallthru
          _
        // Predicated region
        $region61: #{tpu_custom_call.1} parent=47 // pred_check
          %p383 = pneg %p123
        $region62: #{tpu_custom_call.1} parent=47 // pred_check_branch
          %385 = sbr.rel (%p383) target = $region64
        $region63: #{tpu_custom_call.1} parent=47 // pred_region
          %386 = dma.done [#allocation9], 4096
        $region64: #{tpu_custom_call.1} parent=47 // pred_fallthru
          _
        // Predicated region
        $region65: #{tpu_custom_call.1} parent=47 // pred_check
          %p387 = pneg %p144
        $region66: #{tpu_custom_call.1} parent=47 // pred_check_branch
          %389 = sbr.rel (%p387) target = $region68
        $region67: #{tpu_custom_call.1} parent=47 // pred_region
          %390 = dma.done [#allocation9], 4096
        $region68: #{tpu_custom_call.1} parent=47 // pred_fallthru
          _
        // Predicated region
        $region69: #{tpu_custom_call.1} parent=47 // pred_check
          %p391 = pneg %p165
        $region70: #{tpu_custom_call.1} parent=47 // pred_check_branch
          %393 = sbr.rel (%p391) target = $region72
        $region71: #{tpu_custom_call.1} parent=47 // pred_region
          %394 = dma.done [#allocation12], 4096
        $region72: #{tpu_custom_call.1} parent=47 // pred_fallthru
          _
        // Predicated region
        $region73: #{tpu_custom_call.1} parent=47 // pred_check
          %p395 = pneg %p186
        $region74: #{tpu_custom_call.1} parent=47 // pred_check_branch
          %397 = sbr.rel (%p395) target = $region76
        $region75: #{tpu_custom_call.1} parent=47 // pred_region
          %398 = dma.done [#allocation12], 12416
        $region76: #{tpu_custom_call.1} parent=47 // pred_fallthru
          _
        %s399 = sand.u32 %s37, 1
        %s400 = scalar_lea.sflag [#allocation3], %s399
        %s401 = sand.u32 %s37, 1
        %s402 = smul.addr %s401, 128
        %s403 = scalar_lea.vmem [#allocation2], %s402
        %p404 = pneg %p50
        %p405 = pneg %p47
        %s406 = sand.u32 %s29, 1
        %s407 = scalar_lea.sflag [#allocation6], %s406
        %s408 = sand.u32 %s63, 1
        %s409 = smul.addr %s408, 128
        %s410 = scalar_lea.vmem [#allocation5], %s409
        %p411 = pneg %p76
        %p412 = pneg %p73
        %s413 = sand.u32 %s29, 1
        %s414 = scalar_lea.sflag [#allocation6], %s413
        %s415 = sand.u32 %s89, 1
        %s416 = smul.addr %s415, 128
        %s417 = scalar_lea.vmem [#allocation7], %s416
        %p418 = pneg %p102
        %p419 = pneg %p99
        %p420 = pneg %p123
        %p421 = pneg %p120
        %p422 = pneg %p144
        %p423 = pneg %p141
        %p424 = pneg %p165
        %p425 = pneg %p162
        %p426 = pneg %p186
        %p427 = pneg %p183
        %p428 = pneg %p212
        %p429 = pneg %p209
        %s430 = sand.u32 %s199, 1
        %s431 = scalar_lea.sflag [#allocation4], %s430
        %s432 = sand.u32 %s199, 1
        %s433 = smul.addr %s432, 128
        %s434 = scalar_lea.vmem [#allocation14], %s433
        %s435 = smul.u32 16, %s29
        %s436 = smul.u32 16, %s29
        %s437 = smul.u32 16, %s29
        %s438 = smul.u32 16, %s29
        %v440 = vld [vmem:[#allocation13] sm:$0xff]
        %v441 = vld [vmem:[#allocation13 + $0x8] sm:$0xff]
        %v442 = vld [vmem:[#allocation13 + $0x10] sm:$0xff]
        %v443 = vld [vmem:[#allocation13 + $0x18] sm:$0xff]
        %v444 = vld [vmem:[#allocation13 + $0x20] sm:$0xff]
        %v445 = vld [vmem:[#allocation13 + $0x28] sm:$0xff]
        %v446 = vld [vmem:[#allocation13 + $0x30] sm:$0xff]
        %v447 = vld [vmem:[#allocation13 + $0x38] sm:$0xff]
        %v448 = vld [vmem:[#allocation13 + $0x40] sm:$0xff]
        %v449 = vld [vmem:[#allocation13 + $0x48] sm:$0xff]
        %v450 = vld [vmem:[#allocation13 + $0x50] sm:$0xff]
        %v451 = vld [vmem:[#allocation13 + $0x58] sm:$0xff]
        %v452 = vld [vmem:[#allocation13 + $0x60] sm:$0xff]
        %v453 = vld [vmem:[#allocation13 + $0x68] sm:$0xff]
        %v454 = vld [vmem:[#allocation13 + $0x70] sm:$0xff]
        %v455 = vld [vmem:[#allocation13 + $0x78] sm:$0xff]
        %v456 = vld [vmem:[#allocation13 + $0x80] sm:$0xff]
        %v457 = vld [vmem:[#allocation13 + $0x88] sm:$0xff]
        %v458 = vld [vmem:[#allocation13 + $0x90] sm:$0xff]
        %v459 = vld [vmem:[#allocation13 + $0x98] sm:$0xff]
        %v460 = vld [vmem:[#allocation13 + $0xa0] sm:$0xff]
        %v461 = vld [vmem:[#allocation13 + $0xa8] sm:$0xff]
        %v462 = vld [vmem:[#allocation13 + $0xb0] sm:$0xff]
        %v463 = vld [vmem:[#allocation13 + $0xb8] sm:$0xff]
        %v464 = vld [vmem:[#allocation13 + $0xc0] sm:$0xff]
        %v465 = vld [vmem:[#allocation13 + $0xc8] sm:$0xff]
        %v466 = vld [vmem:[#allocation13 + $0xd0] sm:$0xff]
        %v467 = vld [vmem:[#allocation13 + $0xd8] sm:$0xff]
        %v468 = vld [vmem:[#allocation13 + $0xe0] sm:$0xff]
        %v469 = vld [vmem:[#allocation13 + $0xe8] sm:$0xff]
        %v470 = vld [vmem:[#allocation13 + $0xf0] sm:$0xff]
        %v471 = vld [vmem:[#allocation13 + $0xf8] sm:$0xff]
        %v472 = vld [vmem:[#allocation13 + $0x100] sm:$0xff]
        %v473 = vld [vmem:[#allocation13 + $0x108] sm:$0xff]
        %v474 = vld [vmem:[#allocation13 + $0x110] sm:$0xff]
        %v475 = vld [vmem:[#allocation13 + $0x118] sm:$0xff]
        %v476 = vld [vmem:[#allocation13 + $0x120] sm:$0xff]
        %v477 = vld [vmem:[#allocation13 + $0x128] sm:$0xff]
        %v478 = vld [vmem:[#allocation13 + $0x130] sm:$0xff]
        %v479 = vld [vmem:[#allocation13 + $0x138] sm:$0xff]
        %v480 = vld [vmem:[#allocation13 + $0x140] sm:$0xff]
        %v481 = vld [vmem:[#allocation13 + $0x148] sm:$0xff]
        %v482 = vld [vmem:[#allocation13 + $0x150] sm:$0xff]
        %v483 = vld [vmem:[#allocation13 + $0x158] sm:$0xff]
        %v484 = vld [vmem:[#allocation13 + $0x160] sm:$0xff]
        %v485 = vld [vmem:[#allocation13 + $0x168] sm:$0xff]
        %v486 = vld [vmem:[#allocation13 + $0x170] sm:$0xff]
        %v487 = vld [vmem:[#allocation13 + $0x178] sm:$0xff]
        %v488 = vld [vmem:[#allocation13 + $0x180] sm:$0xff]
        %v489 = vld [vmem:[#allocation13 + $0x188] sm:$0xff]
        %v490 = vld [vmem:[#allocation13 + $0x190] sm:$0xff]
        %v491 = vld [vmem:[#allocation13 + $0x198] sm:$0xff]
        %v492 = vld [vmem:[#allocation13 + $0x1a0] sm:$0xff]
        %v493 = vld [vmem:[#allocation13 + $0x1a8] sm:$0xff]
        %v494 = vld [vmem:[#allocation13 + $0x1b0] sm:$0xff]
        %v495 = vld [vmem:[#allocation13 + $0x1b8] sm:$0xff]
        %v496 = vld [vmem:[#allocation13 + $0x1c0] sm:$0xff]
        %v497 = vld [vmem:[#allocation13 + $0x1c8] sm:$0xff]
        %v498 = vld [vmem:[#allocation13 + $0x1d0] sm:$0xff]
        %v499 = vld [vmem:[#allocation13 + $0x1d8] sm:$0xff]
        %v500 = vld [vmem:[#allocation13 + $0x1e0] sm:$0xff]
        %v501 = vld [vmem:[#allocation13 + $0x1e8] sm:$0xff]
        %v502 = vld [vmem:[#allocation13 + $0x1f0] sm:$0xff]
        %v503 = vld [vmem:[#allocation13 + $0x1f8] sm:$0xff]
        %v504 = vld [vmem:[#allocation13 + $0x200] sm:$0xff]
        %v505 = vld [vmem:[#allocation13 + $0x208] sm:$0xff]
        %v506 = vld [vmem:[#allocation13 + $0x210] sm:$0xff]
        %v507 = vld [vmem:[#allocation13 + $0x218] sm:$0xff]
        %v508 = vld [vmem:[#allocation13 + $0x220] sm:$0xff]
        %v509 = vld [vmem:[#allocation13 + $0x228] sm:$0xff]
        %v510 = vld [vmem:[#allocation13 + $0x230] sm:$0xff]
        %v511 = vld [vmem:[#allocation13 + $0x238] sm:$0xff]
        %v512 = vld [vmem:[#allocation13 + $0x240] sm:$0xff]
        %v513 = vld [vmem:[#allocation13 + $0x248] sm:$0xff]
        %v514 = vld [vmem:[#allocation13 + $0x250] sm:$0xff]
        %v515 = vld [vmem:[#allocation13 + $0x258] sm:$0xff]
        %v516 = vld [vmem:[#allocation13 + $0x260] sm:$0xff]
        %v517 = vld [vmem:[#allocation13 + $0x268] sm:$0xff]
        %v518 = vld [vmem:[#allocation13 + $0x270] sm:$0xff]
        %v519 = vld [vmem:[#allocation13 + $0x278] sm:$0xff]
        %v520 = vld [vmem:[#allocation13 + $0x280] sm:$0xff]
        %v521 = vld [vmem:[#allocation13 + $0x288] sm:$0xff]
        %v522 = vld [vmem:[#allocation13 + $0x290] sm:$0xff]
        %v523 = vld [vmem:[#allocation13 + $0x298] sm:$0xff]
        %v524 = vld [vmem:[#allocation13 + $0x2a0] sm:$0xff]
        %v525 = vld [vmem:[#allocation13 + $0x2a8] sm:$0xff]
        %v526 = vld [vmem:[#allocation13 + $0x2b0] sm:$0xff]
        %v527 = vld [vmem:[#allocation13 + $0x2b8] sm:$0xff]
        %v528 = vld [vmem:[#allocation13 + $0x2c0] sm:$0xff]
        %v529 = vld [vmem:[#allocation13 + $0x2c8] sm:$0xff]
        %v530 = vld [vmem:[#allocation13 + $0x2d0] sm:$0xff]
        %v531 = vld [vmem:[#allocation13 + $0x2d8] sm:$0xff]
        %v532 = vld [vmem:[#allocation13 + $0x2e0] sm:$0xff]
        %v533 = vld [vmem:[#allocation13 + $0x2e8] sm:$0xff]
        %v534 = vld [vmem:[#allocation13 + $0x2f0] sm:$0xff]
        %v535 = vld [vmem:[#allocation13 + $0x2f8] sm:$0xff]
        %v536 = vld [vmem:[#allocation13 + $0x300] sm:$0x1]
        %v537 = vld [vmem:[#allocation13 + $0x301] sm:$0x1]
        %v538 = vld [vmem:[#allocation13 + $0x302] sm:$0x1]
        %v539 = vld [vmem:[#allocation13 + $0x303] sm:$0x1]
        %v540 = vld [vmem:[#allocation13 + $0x304] sm:$0x1]
        %v541 = vld [vmem:[#allocation13 + $0x305] sm:$0x1]
        %v542 = vld [vmem:[#allocation13 + $0x306] sm:$0x1]
        %s543 = smul.u32 %s29, 128
        %s544 = scalar_lea.vmem [#allocation8], %s543
        %v545 = vld [vmem:[%s544] sm:$0xff]
        %v546 = vld [vmem:[%s544 + $0x8] sm:$0xff]
        %v547 = vld [vmem:[%s544 + $0x10] sm:$0xff]
        %v548 = vld [vmem:[%s544 + $0x18] sm:$0xff]
        %v549 = vld [vmem:[%s544 + $0x20] sm:$0xff]
        %v550 = vld [vmem:[%s544 + $0x28] sm:$0xff]
        %v551 = vld [vmem:[%s544 + $0x30] sm:$0xff]
        %v552 = vld [vmem:[%s544 + $0x38] sm:$0xff]
        %v553 = vld [vmem:[%s544 + $0x40] sm:$0xff]
        %v554 = vld [vmem:[%s544 + $0x48] sm:$0xff]
        %v555 = vld [vmem:[%s544 + $0x50] sm:$0xff]
        %v556 = vld [vmem:[%s544 + $0x58] sm:$0xff]
        %v557 = vld [vmem:[%s544 + $0x60] sm:$0xff]
        %v558 = vld [vmem:[%s544 + $0x68] sm:$0xff]
        %v559 = vld [vmem:[%s544 + $0x70] sm:$0xff]
        %v560 = vld [vmem:[%s544 + $0x78] sm:$0xff]
        %v561 = vld [vmem:[%s360] sm:$0xff]
        %v562 = vld [vmem:[%s360 + $0x8] sm:$0xff]
        %v563 = vld [vmem:[%s360 + $0x10] sm:$0xff]
        %v564 = vld [vmem:[%s360 + $0x18] sm:$0xff]
        %v565 = vld [vmem:[%s360 + $0x20] sm:$0xff]
        %v566 = vld [vmem:[%s360 + $0x28] sm:$0xff]
        %v567 = vld [vmem:[%s360 + $0x30] sm:$0xff]
        %v568 = vld [vmem:[%s360 + $0x38] sm:$0xff]
        %v569 = vld [vmem:[%s360 + $0x40] sm:$0xff]
        %v570 = vld [vmem:[%s360 + $0x48] sm:$0xff]
        %v571 = vld [vmem:[%s360 + $0x50] sm:$0xff]
        %v572 = vld [vmem:[%s360 + $0x58] sm:$0xff]
        %v573 = vld [vmem:[%s360 + $0x60] sm:$0xff]
        %v574 = vld [vmem:[%s360 + $0x68] sm:$0xff]
        %v575 = vld [vmem:[%s360 + $0x70] sm:$0xff]
        %v576 = vld [vmem:[%s360 + $0x78] sm:$0xff]
        %v577 = vld [vmem:[#allocation8] sm:$0xff]
        %v578 = vld [vmem:[#allocation8 + $0x8] sm:$0xff]
        %v579 = vld [vmem:[#allocation8 + $0x10] sm:$0xff]
        %v580 = vld [vmem:[#allocation8 + $0x18] sm:$0xff]
        %v581 = vld [vmem:[#allocation8 + $0x20] sm:$0xff]
        %v582 = vld [vmem:[#allocation8 + $0x28] sm:$0xff]
        %v583 = vld [vmem:[#allocation8 + $0x30] sm:$0xff]
        %v584 = vld [vmem:[#allocation8 + $0x38] sm:$0xff]
        %v585 = vld [vmem:[#allocation8 + $0x40] sm:$0xff]
        %v586 = vld [vmem:[#allocation8 + $0x48] sm:$0xff]
        %v587 = vld [vmem:[#allocation8 + $0x50] sm:$0xff]
        %v588 = vld [vmem:[#allocation8 + $0x58] sm:$0xff]
        %v589 = vld [vmem:[#allocation8 + $0x60] sm:$0xff]
        %v590 = vld [vmem:[#allocation8 + $0x68] sm:$0xff]
        %v591 = vld [vmem:[#allocation8 + $0x70] sm:$0xff]
        %v592 = vld [vmem:[#allocation8 + $0x78] sm:$0xff]
        %v593 = vld [vmem:[#allocation8 + $0x80] sm:$0xff]
        %v594 = vld [vmem:[#allocation8 + $0x88] sm:$0xff]
        %v595 = vld [vmem:[#allocation8 + $0x90] sm:$0xff]
        %v596 = vld [vmem:[#allocation8 + $0x98] sm:$0xff]
        %v597 = vld [vmem:[#allocation8 + $0xa0] sm:$0xff]
        %v598 = vld [vmem:[#allocation8 + $0xa8] sm:$0xff]
        %v599 = vld [vmem:[#allocation8 + $0xb0] sm:$0xff]
        %v600 = vld [vmem:[#allocation8 + $0xb8] sm:$0xff]
        %v601 = vld [vmem:[#allocation8 + $0xc0] sm:$0xff]
        %v602 = vld [vmem:[#allocation8 + $0xc8] sm:$0xff]
        %v603 = vld [vmem:[#allocation8 + $0xd0] sm:$0xff]
        %v604 = vld [vmem:[#allocation8 + $0xd8] sm:$0xff]
        %v605 = vld [vmem:[#allocation8 + $0xe0] sm:$0xff]
        %v606 = vld [vmem:[#allocation8 + $0xe8] sm:$0xff]
        %v607 = vld [vmem:[#allocation8 + $0xf0] sm:$0xff]
        %v608 = vld [vmem:[#allocation8 + $0xf8] sm:$0xff]
        %v609 = vlaneseq
        %v610 = vshrl.u32 %v609, 7
        %v611 = vsub.s32 0, %v610
        %v612 = vrot.slane %v536, %v611
        %613 = vmatprep.subr.mxu0 0.0
        %614 = vmatpush1.msra.mxu0 %v440
        %615 = vmatprep.subr.mxu0 0.0
        %616 = vmatpush1.msra.mxu0 %v441
        %617 = vmatprep.subr.mxu0 0.0
        %618 = vmatpush1.msra.mxu0 %v442
        %619 = vmatprep.subr.mxu0 0.0
        %620 = vmatpush1.msra.mxu0 %v443
        %621 = vmatprep.subr.mxu0 0.0
        %622 = vmatpush1.msra.mxu0 %v444
        %623 = vmatprep.subr.mxu0 0.0
        %624 = vmatpush1.msra.mxu0 %v445
        %625 = vmatprep.subr.mxu0 0.0
        %626 = vmatpush1.msra.mxu0 %v446
        %627 = vmatprep.subr.mxu0 0.0
        %628 = vmatpush1.msra.mxu0 %v447
        %629 = vmatprep.subr.mxu0 0.0
        %630 = vmatpush1.msra.mxu0 %v448
        %631 = vmatprep.subr.mxu0 0.0
        %632 = vmatpush1.msra.mxu0 %v449
        %633 = vmatprep.subr.mxu0 0.0
        %634 = vmatpush1.msra.mxu0 %v450
        %635 = vmatprep.subr.mxu0 0.0
        %636 = vmatpush1.msra.mxu0 %v451
        %637 = vmatprep.subr.mxu0 0.0
        %638 = vmatpush1.msra.mxu0 %v452
        %639 = vmatprep.subr.mxu0 0.0
        %640 = vmatpush1.msra.mxu0 %v453
        %641 = vmatprep.subr.mxu0 0.0
        %642 = vmatpush1.msra.mxu0 %v454
        %643 = vmatprep.subr.mxu0 0.0
        %644 = vmatpush1.msra.mxu0 %v455
        %645 = vmatprep.subr.mxu0 0.0
        %646 = vmatpush1.msra.mxu0 0.0
        %647 = vmatprep.subr.mxu0 0.0
        %648 = vmatpush1.msra.mxu0 0.0
        %649 = vmatprep.subr.mxu0 0.0
        %650 = vmatpush1.msra.mxu0 0.0
        %651 = vmatprep.subr.mxu0 0.0
        %652 = vmatpush1.msra.mxu0 0.0
        %653 = vmatprep.subr.mxu0 0.0
        %654 = vmatpush1.msra.mxu0 0.0
        %655 = vmatprep.subr.mxu0 0.0
        %656 = vmatpush1.msra.mxu0 0.0
        %657 = vmatprep.subr.mxu0 0.0
        %658 = vmatpush1.msra.mxu0 0.0
        %659 = vmatprep.subr.mxu0 0.0
        %660 = vmatpush1.msra.mxu0 0.0
        %661 = vmatprep.subr.mxu0 0.0
        %662 = vmatpush1.msra.mxu0 0.0
        %663 = vmatprep.subr.mxu0 0.0
        %664 = vmatpush1.msra.mxu0 0.0
        %665 = vmatprep.subr.mxu0 0.0
        %666 = vmatpush1.msra.mxu0 0.0
        %667 = vmatprep.subr.mxu0 0.0
        %668 = vmatpush1.msra.mxu0 0.0
        %669 = vmatprep.subr.mxu0 0.0
        %670 = vmatpush1.msra.mxu0 0.0
        %671 = vmatprep.subr.mxu0 0.0
        %672 = vmatpush1.msra.mxu0 0.0
        %673 = vmatprep.subr.mxu0 0.0
        %674 = vmatpush1.msra.mxu0 0.0
        %675 = vmatprep.subr.mxu0 0.0
        %676 = vmatpush1.msra.mxu0 0.0
        %677 = vmatprep.mubr.f32.mxu0 0.0
        %678 = vmatmul.mubr.f32.gmra.mrb[0].mxu0 %v577
        %v679 = vpop.f32.mrb[0].mxu0
        %v680 = vadd.f32 %v612, %v679
        %v681 = vpop.f32.mrb[0].mxu0
        %682 = vmatprep.mubr.f32.mxu0 0.0
        %683 = vmatmul.mubr.f32.gmra.mrb[0].mxu0 %v578
        %v684 = vpop.f32.mrb[0].mxu0
        %v685 = vadd.f32 %v612, %v684
        %v686 = vpop.f32.mrb[0].mxu0
        %687 = vmatprep.mubr.f32.mxu0 0.0
        %688 = vmatmul.mubr.f32.gmra.mrb[0].mxu0 %v579
        %v689 = vpop.f32.mrb[0].mxu0
        %v690 = vadd.f32 %v612, %v689
        %v691 = vpop.f32.mrb[0].mxu0
        %692 = vmatprep.mubr.f32.mxu0 0.0
        %693 = vmatmul.mubr.f32.gmra.mrb[0].mxu0 %v580
        %v694 = vpop.f32.mrb[0].mxu0
        %v695 = vadd.f32 %v612, %v694
        %v696 = vpop.f32.mrb[0].mxu0
        %697 = vmatprep.mubr.f32.mxu0 0.0
        %698 = vmatmul.mubr.f32.gmra.mrb[0].mxu0 %v581
        %v699 = vpop.f32.mrb[0].mxu0
        %v700 = vadd.f32 %v612, %v699
        %v701 = vpop.f32.mrb[0].mxu0
        %702 = vmatprep.mubr.f32.mxu0 0.0
        %703 = vmatmul.mubr.f32.gmra.mrb[0].mxu0 %v582
        %v704 = vpop.f32.mrb[0].mxu0
        %v705 = vadd.f32 %v612, %v704
        %v706 = vpop.f32.mrb[0].mxu0
        %707 = vmatprep.mubr.f32.mxu0 0.0
        %708 = vmatmul.mubr.f32.gmra.mrb[0].mxu0 %v583
        %v709 = vpop.f32.mrb[0].mxu0
        %v710 = vadd.f32 %v612, %v709
        %v711 = vpop.f32.mrb[0].mxu0
        %712 = vmatprep.mubr.f32.mxu0 0.0
        %713 = vmatmul.mubr.f32.gmra.mrb[0].mxu0 %v584
        %v714 = vpop.f32.mrb[0].mxu0
        %v715 = vadd.f32 %v612, %v714
        %v716 = vpop.f32.mrb[0].mxu0
        %717 = vmatprep.mubr.f32.mxu0 0.0
        %718 = vmatmul.mubr.f32.gmra.mrb[0].mxu0 %v585
        %v719 = vpop.f32.mrb[0].mxu0
        %v720 = vadd.f32 %v612, %v719
        %v721 = vpop.f32.mrb[0].mxu0
        %722 = vmatprep.mubr.f32.mxu0 0.0
        %723 = vmatmul.mubr.f32.gmra.mrb[0].mxu0 %v586
        %v724 = vpop.f32.mrb[0].mxu0
        %v725 = vadd.f32 %v612, %v724
        %v726 = vpop.f32.mrb[0].mxu0
        %727 = vmatprep.mubr.f32.mxu0 0.0
        %728 = vmatmul.mubr.f32.gmra.mrb[0].mxu0 %v587
        %v729 = vpop.f32.mrb[0].mxu0
        %v730 = vadd.f32 %v612, %v729
        %v731 = vpop.f32.mrb[0].mxu0
        %732 = vmatprep.mubr.f32.mxu0 0.0
        %733 = vmatmul.mubr.f32.gmra.mrb[0].mxu0 %v588
        %v734 = vpop.f32.mrb[0].mxu0
        %v735 = vadd.f32 %v612, %v734
        %v736 = vpop.f32.mrb[0].mxu0
        %737 = vmatprep.mubr.f32.mxu0 0.0
        %738 = vmatmul.mubr.f32.gmra.mrb[0].mxu0 %v589
        %v739 = vpop.f32.mrb[0].mxu0
        %v740 = vadd.f32 %v612, %v739
        %v741 = vpop.f32.mrb[0].mxu0
        %742 = vmatprep.mubr.f32.mxu0 0.0
        %743 = vmatmul.mubr.f32.gmra.mrb[0].mxu0 %v590
        %v744 = vpop.f32.mrb[0].mxu0
        %v745 = vadd.f32 %v612, %v744
        %v746 = vpop.f32.mrb[0].mxu0
        %747 = vmatprep.mubr.f32.mxu0 0.0
        %748 = vmatmul.mubr.f32.gmra.mrb[0].mxu0 %v591
        %v749 = vpop.f32.mrb[0].mxu0
        %v750 = vadd.f32 %v612, %v749
        %v751 = vpop.f32.mrb[0].mxu0
        %752 = vmatprep.mubr.f32.mxu0 0.0
        %753 = vmatmul.mubr.f32.gmra.mrb[0].mxu0 %v592
        %v754 = vpop.f32.mrb[0].mxu0
        %v755 = vadd.f32 %v612, %v754
        %v756 = vpop.f32.mrb[0].mxu0
        %757 = vmatprep.mubr.f32.mxu0 0.0
        %758 = vmatmul.mubr.f32.gmra.mrb[0].mxu0 %v593
        %v759 = vpop.f32.mrb[0].mxu0
        %v760 = vadd.f32 %v612, %v759
        %v761 = vpop.f32.mrb[0].mxu0
        %762 = vmatprep.mubr.f32.mxu0 0.0
        %763 = vmatmul.mubr.f32.gmra.mrb[0].mxu0 %v594
        %v764 = vpop.f32.mrb[0].mxu0
        %v765 = vadd.f32 %v612, %v764
        %v766 = vpop.f32.mrb[0].mxu0
        %767 = vmatprep.mubr.f32.mxu0 0.0
        %768 = vmatmul.mubr.f32.gmra.mrb[0].mxu0 %v595
        %v769 = vpop.f32.mrb[0].mxu0
        %v770 = vadd.f32 %v612, %v769
        %v771 = vpop.f32.mrb[0].mxu0
        %772 = vmatprep.mubr.f32.mxu0 0.0
        %773 = vmatmul.mubr.f32.gmra.mrb[0].mxu0 %v596
        %v774 = vpop.f32.mrb[0].mxu0
        %v775 = vadd.f32 %v612, %v774
        %v776 = vpop.f32.mrb[0].mxu0
        %777 = vmatprep.mubr.f32.mxu0 0.0
        %778 = vmatmul.mubr.f32.gmra.mrb[0].mxu0 %v597
        %v779 = vpop.f32.mrb[0].mxu0
        %v780 = vadd.f32 %v612, %v779
        %v781 = vpop.f32.mrb[0].mxu0
        %782 = vmatprep.mubr.f32.mxu0 0.0
        %783 = vmatmul.mubr.f32.gmra.mrb[0].mxu0 %v598
        %v784 = vpop.f32.mrb[0].mxu0
        %v785 = vadd.f32 %v612, %v784
        %v786 = vpop.f32.mrb[0].mxu0
        %787 = vmatprep.mubr.f32.mxu0 0.0
        %788 = vmatmul.mubr.f32.gmra.mrb[0].mxu0 %v599
        %v789 = vpop.f32.mrb[0].mxu0
        %v790 = vadd.f32 %v612, %v789
        %v791 = vpop.f32.mrb[0].mxu0
        %792 = vmatprep.mubr.f32.mxu0 0.0
        %793 = vmatmul.mubr.f32.gmra.mrb[0].mxu0 %v600
        %v794 = vpop.f32.mrb[0].mxu0
        %v795 = vadd.f32 %v612, %v794
        %v796 = vpop.f32.mrb[0].mxu0
        %797 = vmatprep.mubr.f32.mxu0 0.0
        %798 = vmatmul.mubr.f32.gmra.mrb[0].mxu0 %v601
        %v799 = vpop.f32.mrb[0].mxu0
        %v800 = vadd.f32 %v612, %v799
        %v801 = vpop.f32.mrb[0].mxu0
        %802 = vmatprep.mubr.f32.mxu0 0.0
        %803 = vmatmul.mubr.f32.gmra.mrb[0].mxu0 %v602
        %v804 = vpop.f32.mrb[0].mxu0
        %v805 = vadd.f32 %v612, %v804
        %v806 = vpop.f32.mrb[0].mxu0
        %807 = vmatprep.mubr.f32.mxu0 0.0
        %808 = vmatmul.mubr.f32.gmra.mrb[0].mxu0 %v603
        %v809 = vpop.f32.mrb[0].mxu0
        %v810 = vadd.f32 %v612, %v809
        %v811 = vpop.f32.mrb[0].mxu0
        %812 = vmatprep.mubr.f32.mxu0 0.0
        %813 = vmatmul.mubr.f32.gmra.mrb[0].mxu0 %v604
        %v814 = vpop.f32.mrb[0].mxu0
        %v815 = vadd.f32 %v612, %v814
        %v816 = vpop.f32.mrb[0].mxu0
        %817 = vmatprep.mubr.f32.mxu0 0.0
        %818 = vmatmul.mubr.f32.gmra.mrb[0].mxu0 %v605
        %v819 = vpop.f32.mrb[0].mxu0
        %v820 = vadd.f32 %v612, %v819
        %v821 = vpop.f32.mrb[0].mxu0
        %822 = vmatprep.mubr.f32.mxu0 0.0
        %823 = vmatmul.mubr.f32.gmra.mrb[0].mxu0 %v606
        %v824 = vpop.f32.mrb[0].mxu0
        %v825 = vadd.f32 %v612, %v824
        %v826 = vpop.f32.mrb[0].mxu0
        %827 = vmatprep.mubr.f32.mxu0 0.0
        %828 = vmatmul.mubr.f32.gmra.mrb[0].mxu0 %v607
        %v829 = vpop.f32.mrb[0].mxu0
        %v830 = vadd.f32 %v612, %v829
        %v831 = vpop.f32.mrb[0].mxu0
        %832 = vmatprep.mubr.f32.mxu0 0.0
        %833 = vmatmul.mubr.f32.gmra.mrb[0].mxu0 %v608
        %v834 = vpop.f32.mrb[0].mxu0
        %v835 = vadd.f32 %v612, %v834
        %v836 = vpop.f32.mrb[0].mxu0
        %837 = vdwg.mxu0
        %v838 = vmax.f32 %v680, 0.0
        %v839 = vmax.f32 %v685, 0.0
        %v840 = vmax.f32 %v690, 0.0
        %v841 = vmax.f32 %v695, 0.0
        %v842 = vmax.f32 %v700, 0.0
        %v843 = vmax.f32 %v705, 0.0
        %v844 = vmax.f32 %v710, 0.0
        %v845 = vmax.f32 %v715, 0.0
        %v846 = vmax.f32 %v720, 0.0
        %v847 = vmax.f32 %v725, 0.0
        %v848 = vmax.f32 %v730, 0.0
        %v849 = vmax.f32 %v735, 0.0
        %v850 = vmax.f32 %v740, 0.0
        %v851 = vmax.f32 %v745, 0.0
        %v852 = vmax.f32 %v750, 0.0
        %v853 = vmax.f32 %v755, 0.0
        %v854 = vmax.f32 %v760, 0.0
        %v855 = vmax.f32 %v765, 0.0
        %v856 = vmax.f32 %v770, 0.0
        %v857 = vmax.f32 %v775, 0.0
        %v858 = vmax.f32 %v780, 0.0
        %v859 = vmax.f32 %v785, 0.0
        %v860 = vmax.f32 %v790, 0.0
        %v861 = vmax.f32 %v795, 0.0
        %v862 = vmax.f32 %v800, 0.0
        %v863 = vmax.f32 %v805, 0.0
        %v864 = vmax.f32 %v810, 0.0
        %v865 = vmax.f32 %v815, 0.0
        %v866 = vmax.f32 %v820, 0.0
        %v867 = vmax.f32 %v825, 0.0
        %v868 = vmax.f32 %v830, 0.0
        %v869 = vmax.f32 %v835, 0.0
        %v870 = vpack.c.bf16 %v839, %v838
        %v871 = vpack.c.bf16 %v841, %v840
        %v872 = vpack.c.bf16 %v843, %v842
        %v873 = vpack.c.bf16 %v845, %v844
        %v874 = vpack.c.bf16 %v847, %v846
        %v875 = vpack.c.bf16 %v849, %v848
        %v876 = vpack.c.bf16 %v851, %v850
        %v877 = vpack.c.bf16 %v853, %v852
        %v878 = vpack.c.bf16 %v855, %v854
        %v879 = vpack.c.bf16 %v857, %v856
        %v880 = vpack.c.bf16 %v859, %v858
        %v881 = vpack.c.bf16 %v861, %v860
        %v882 = vpack.c.bf16 %v863, %v862
        %v883 = vpack.c.bf16 %v865, %v864
        %v884 = vpack.c.bf16 %v867, %v866
        %v885 = vpack.c.bf16 %v869, %v868
        %v902 = vunpack.c.l.b16 %v561
        %v903 = vunpack.c.h.b16 %v561
        %v904 = vunpack.c.l.b16 %v562
        %v905 = vunpack.c.h.b16 %v562
        %v906 = vunpack.c.l.b16 %v563
        %v907 = vunpack.c.h.b16 %v563
        %v908 = vunpack.c.l.b16 %v564
        %v909 = vunpack.c.h.b16 %v564
        %v910 = vunpack.c.l.b16 %v565
        %v911 = vunpack.c.h.b16 %v565
        %v912 = vunpack.c.l.b16 %v566
        %v913 = vunpack.c.h.b16 %v566
        %v914 = vunpack.c.l.b16 %v567
        %v915 = vunpack.c.h.b16 %v567
        %v916 = vunpack.c.l.b16 %v568
        %v917 = vunpack.c.h.b16 %v568
        %v918 = vunpack.c.l.b16 %v569
        %v919 = vunpack.c.h.b16 %v569
        %v920 = vunpack.c.l.b16 %v570
        %v921 = vunpack.c.h.b16 %v570
        %v922 = vunpack.c.l.b16 %v571
        %v923 = vunpack.c.h.b16 %v571
        %v924 = vunpack.c.l.b16 %v572
        %v925 = vunpack.c.h.b16 %v572
        %v926 = vunpack.c.l.b16 %v573
        %v927 = vunpack.c.h.b16 %v573
        %v928 = vunpack.c.l.b16 %v574
        %v929 = vunpack.c.h.b16 %v574
        %v930 = vunpack.c.l.b16 %v575
        %v931 = vunpack.c.h.b16 %v575
        %v932 = vunpack.c.l.b16 %v576
        %v933 = vunpack.c.h.b16 %v576
        %v934 = vpack.c.b16 %v904, %v902
        %v935 = vpack.c.b16 %v905, %v903
        %v936 = vpack.c.b16 %v908, %v906
        %v937 = vpack.c.b16 %v909, %v907
        %v938 = vpack.c.b16 %v912, %v910
        %v939 = vpack.c.b16 %v913, %v911
        %v940 = vpack.c.b16 %v916, %v914
        %v941 = vpack.c.b16 %v917, %v915
        %v942 = vpack.c.b16 %v920, %v918
        %v943 = vpack.c.b16 %v921, %v919
        %v944 = vpack.c.b16 %v924, %v922
        %v945 = vpack.c.b16 %v925, %v923
        %v946 = vpack.c.b16 %v928, %v926
        %v947 = vpack.c.b16 %v929, %v927
        %v948 = vpack.c.b16 %v932, %v930
        %v949 = vpack.c.b16 %v933, %v931
        %966 = vmatprep.subr.bf16.mxu0 0
        %967 = vmatpush1.bf16.msra.mxu0 %v870
        %968 = vmatprep.subr.bf16.mxu0 0
        %969 = vmatpush1.bf16.msra.mxu0 %v871
        %970 = vmatprep.subr.bf16.mxu0 0
        %971 = vmatpush1.bf16.msra.mxu0 %v872
        %972 = vmatprep.subr.bf16.mxu0 0
        %973 = vmatpush1.bf16.msra.mxu0 %v873
        %974 = vmatprep.subr.bf16.mxu0 0
        %975 = vmatpush1.bf16.msra.mxu0 %v874
        %976 = vmatprep.subr.bf16.mxu0 0
        %977 = vmatpush1.bf16.msra.mxu0 %v875
        %978 = vmatprep.subr.bf16.mxu0 0
        %979 = vmatpush1.bf16.msra.mxu0 %v876
        %980 = vmatprep.subr.bf16.mxu0 0
        %981 = vmatpush1.bf16.msra.mxu0 %v877
        %982 = vmatprep.subr.bf16.mxu0 0
        %983 = vmatpush1.bf16.msra.mxu0 %v878
        %984 = vmatprep.subr.bf16.mxu0 0
        %985 = vmatpush1.bf16.msra.mxu0 %v879
        %986 = vmatprep.subr.bf16.mxu0 0
        %987 = vmatpush1.bf16.msra.mxu0 %v880
        %988 = vmatprep.subr.bf16.mxu0 0
        %989 = vmatpush1.bf16.msra.mxu0 %v881
        %990 = vmatprep.subr.bf16.mxu0 0
        %991 = vmatpush1.bf16.msra.mxu0 %v882
        %992 = vmatprep.subr.bf16.mxu0 0
        %993 = vmatpush1.bf16.msra.mxu0 %v883
        %994 = vmatprep.subr.bf16.mxu0 0
        %995 = vmatpush1.bf16.msra.mxu0 %v884
        %996 = vmatprep.subr.bf16.mxu0 0
        %997 = vmatpush1.bf16.msra.mxu0 %v885
        %998 = vmatprep.mubr.bf16.mxu0 %v935
        %999 = vmatmul.mubr.bf16.gmra.mrb[0].mxu0 %v934
        %v1000 = vpop.f32.mrb[0].mxu0
        %v1001 = vadd.f32 0.0, %v1000
        %v1002 = vpop.f32.mrb[0].mxu0
        %v1003 = vpop.f32.mrb[0].mxu0
        %v1004 = vadd.f32 0.0, %v1003
        %v1005 = vpop.f32.mrb[0].mxu0
        %1006 = vmatprep.mubr.bf16.mxu0 %v937
        %1007 = vmatmul.mubr.bf16.gmra.mrb[0].mxu0 %v936
        %v1008 = vpop.f32.mrb[0].mxu0
        %v1009 = vadd.f32 0.0, %v1008
        %v1010 = vpop.f32.mrb[0].mxu0
        %v1011 = vpop.f32.mrb[0].mxu0
        %v1012 = vadd.f32 0.0, %v1011
        %v1013 = vpop.f32.mrb[0].mxu0
        %1014 = vmatprep.mubr.bf16.mxu0 %v939
        %1015 = vmatmul.mubr.bf16.gmra.mrb[0].mxu0 %v938
        %v1016 = vpop.f32.mrb[0].mxu0
        %v1017 = vadd.f32 0.0, %v1016
        %v1018 = vpop.f32.mrb[0].mxu0
        %v1019 = vpop.f32.mrb[0].mxu0
        %v1020 = vadd.f32 0.0, %v1019
        %v1021 = vpop.f32.mrb[0].mxu0
        %1022 = vmatprep.mubr.bf16.mxu0 %v941
        %1023 = vmatmul.mubr.bf16.gmra.mrb[0].mxu0 %v940
        %v1024 = vpop.f32.mrb[0].mxu0
        %v1025 = vadd.f32 0.0, %v1024
        %v1026 = vpop.f32.mrb[0].mxu0
        %v1027 = vpop.f32.mrb[0].mxu0
        %v1028 = vadd.f32 0.0, %v1027
        %v1029 = vpop.f32.mrb[0].mxu0
        %1030 = vmatprep.mubr.bf16.mxu0 %v943
        %1031 = vmatmul.mubr.bf16.gmra.mrb[0].mxu0 %v942
        %v1032 = vpop.f32.mrb[0].mxu0
        %v1033 = vadd.f32 0.0, %v1032
        %v1034 = vpop.f32.mrb[0].mxu0
        %v1035 = vpop.f32.mrb[0].mxu0
        %v1036 = vadd.f32 0.0, %v1035
        %v1037 = vpop.f32.mrb[0].mxu0
        %1038 = vmatprep.mubr.bf16.mxu0 %v945
        %1039 = vmatmul.mubr.bf16.gmra.mrb[0].mxu0 %v944
        %v1040 = vpop.f32.mrb[0].mxu0
        %v1041 = vadd.f32 0.0, %v1040
        %v1042 = vpop.f32.mrb[0].mxu0
        %v1043 = vpop.f32.mrb[0].mxu0
        %v1044 = vadd.f32 0.0, %v1043
        %v1045 = vpop.f32.mrb[0].mxu0
        %1046 = vmatprep.mubr.bf16.mxu0 %v947
        %1047 = vmatmul.mubr.bf16.gmra.mrb[0].mxu0 %v946
        %v1048 = vpop.f32.mrb[0].mxu0
        %v1049 = vadd.f32 0.0, %v1048
        %v1050 = vpop.f32.mrb[0].mxu0
        %v1051 = vpop.f32.mrb[0].mxu0
        %v1052 = vadd.f32 0.0, %v1051
        %v1053 = vpop.f32.mrb[0].mxu0
        %1054 = vmatprep.mubr.bf16.mxu0 %v949
        %1055 = vmatmul.mubr.bf16.gmra.mrb[0].mxu0 %v948
        %v1056 = vpop.f32.mrb[0].mxu0
        %v1057 = vadd.f32 0.0, %v1056
        %v1058 = vpop.f32.mrb[0].mxu0
        %v1059 = vpop.f32.mrb[0].mxu0
        %v1060 = vadd.f32 0.0, %v1059
        %v1061 = vpop.f32.mrb[0].mxu0
        %1062 = vdwg.mxu0
        %v1063 = vld [vmem:[%s369] sm:$0xff]
        %v1064 = vld [vmem:[%s369 + $0x8] sm:$0xff]
        %v1065 = vld [vmem:[%s369 + $0x10] sm:$0xff]
        %v1066 = vld [vmem:[%s369 + $0x18] sm:$0xff]
        %v1067 = vld [vmem:[%s369 + $0x20] sm:$0xff]
        %v1068 = vld [vmem:[%s369 + $0x28] sm:$0xff]
        %v1069 = vld [vmem:[%s369 + $0x30] sm:$0xff]
        %v1070 = vld [vmem:[%s369 + $0x38] sm:$0xff]
        %v1071 = vld [vmem:[%s369 + $0x40] sm:$0xff]
        %v1072 = vld [vmem:[%s369 + $0x48] sm:$0xff]
        %v1073 = vld [vmem:[%s369 + $0x50] sm:$0xff]
        %v1074 = vld [vmem:[%s369 + $0x58] sm:$0xff]
        %v1075 = vld [vmem:[%s369 + $0x60] sm:$0xff]
        %v1076 = vld [vmem:[%s369 + $0x68] sm:$0xff]
        %v1077 = vld [vmem:[%s369 + $0x70] sm:$0xff]
        %v1078 = vld [vmem:[%s369 + $0x78] sm:$0xff]
        %v1079 = vld [vmem:[#allocation10] sm:$0xff]
        %v1080 = vld [vmem:[#allocation10 + $0x8] sm:$0xff]
        %v1081 = vld [vmem:[#allocation10 + $0x10] sm:$0xff]
        %v1082 = vld [vmem:[#allocation10 + $0x18] sm:$0xff]
        %v1083 = vld [vmem:[#allocation10 + $0x20] sm:$0xff]
        %v1084 = vld [vmem:[#allocation10 + $0x28] sm:$0xff]
        %v1085 = vld [vmem:[#allocation10 + $0x30] sm:$0xff]
        %v1086 = vld [vmem:[#allocation10 + $0x38] sm:$0xff]
        %v1087 = vld [vmem:[#allocation10 + $0x40] sm:$0xff]
        %v1088 = vld [vmem:[#allocation10 + $0x48] sm:$0xff]
        %v1089 = vld [vmem:[#allocation10 + $0x50] sm:$0xff]
        %v1090 = vld [vmem:[#allocation10 + $0x58] sm:$0xff]
        %v1091 = vld [vmem:[#allocation10 + $0x60] sm:$0xff]
        %v1092 = vld [vmem:[#allocation10 + $0x68] sm:$0xff]
        %v1093 = vld [vmem:[#allocation10 + $0x70] sm:$0xff]
        %v1094 = vld [vmem:[#allocation10 + $0x78] sm:$0xff]
        %v1095 = vld [vmem:[#allocation10 + $0x80] sm:$0xff]
        %v1096 = vld [vmem:[#allocation10 + $0x88] sm:$0xff]
        %v1097 = vld [vmem:[#allocation10 + $0x90] sm:$0xff]
        %v1098 = vld [vmem:[#allocation10 + $0x98] sm:$0xff]
        %v1099 = vld [vmem:[#allocation10 + $0xa0] sm:$0xff]
        %v1100 = vld [vmem:[#allocation10 + $0xa8] sm:$0xff]
        %v1101 = vld [vmem:[#allocation10 + $0xb0] sm:$0xff]
        %v1102 = vld [vmem:[#allocation10 + $0xb8] sm:$0xff]
        %v1103 = vld [vmem:[#allocation10 + $0xc0] sm:$0xff]
        %v1104 = vld [vmem:[#allocation10 + $0xc8] sm:$0xff]
        %v1105 = vld [vmem:[#allocation10 + $0xd0] sm:$0xff]
        %v1106 = vld [vmem:[#allocation10 + $0xd8] sm:$0xff]
        %v1107 = vld [vmem:[#allocation10 + $0xe0] sm:$0xff]
        %v1108 = vld [vmem:[#allocation10 + $0xe8] sm:$0xff]
        %v1109 = vld [vmem:[#allocation10 + $0xf0] sm:$0xff]
        %v1110 = vld [vmem:[#allocation10 + $0xf8] sm:$0xff]
        %v1111 = vlaneseq
        %v1112 = vshrl.u32 %v1111, 7
        %v1113 = vsub.s32 0, %v1112
        %v1114 = vrot.slane %v537, %v1113
        %1115 = vmatprep.subr.mxu0 0.0
        %1116 = vmatpush1.msra.mxu0 %v456
        %1117 = vmatprep.subr.mxu0 0.0
        %1118 = vmatpush1.msra.mxu0 %v457
        %1119 = vmatprep.subr.mxu0 0.0
        %1120 = vmatpush1.msra.mxu0 %v458
        %1121 = vmatprep.subr.mxu0 0.0
        %1122 = vmatpush1.msra.mxu0 %v459
        %1123 = vmatprep.subr.mxu0 0.0
        %1124 = vmatpush1.msra.mxu0 %v460
        %1125 = vmatprep.subr.mxu0 0.0
        %1126 = vmatpush1.msra.mxu0 %v461
        %1127 = vmatprep.subr.mxu0 0.0
        %1128 = vmatpush1.msra.mxu0 %v462
        %1129 = vmatprep.subr.mxu0 0.0
        %1130 = vmatpush1.msra.mxu0 %v463
        %1131 = vmatprep.subr.mxu0 0.0
        %1132 = vmatpush1.msra.mxu0 %v464
        %1133 = vmatprep.subr.mxu0 0.0
        %1134 = vmatpush1.msra.mxu0 %v465
        %1135 = vmatprep.subr.mxu0 0.0
        %1136 = vmatpush1.msra.mxu0 %v466
        %1137 = vmatprep.subr.mxu0 0.0
        %1138 = vmatpush1.msra.mxu0 %v467
        %1139 = vmatprep.subr.mxu0 0.0
        %1140 = vmatpush1.msra.mxu0 %v468
        %1141 = vmatprep.subr.mxu0 0.0
        %1142 = vmatpush1.msra.mxu0 %v469
        %1143 = vmatprep.subr.mxu0 0.0
        %1144 = vmatpush1.msra.mxu0 %v470
        %1145 = vmatprep.subr.mxu0 0.0
        %1146 = vmatpush1.msra.mxu0 %v471
        %1147 = vmatprep.subr.mxu0 0.0
        %1148 = vmatpush1.msra.mxu0 0.0
        %1149 = vmatprep.subr.mxu0 0.0
        %1150 = vmatpush1.msra.mxu0 0.0
        %1151 = vmatprep.subr.mxu0 0.0
        %1152 = vmatpush1.msra.mxu0 0.0
        %1153 = vmatprep.subr.mxu0 0.0
        %1154 = vmatpush1.msra.mxu0 0.0
        %1155 = vmatprep.subr.mxu0 0.0
        %1156 = vmatpush1.msra.mxu0 0.0
        %1157 = vmatprep.subr.mxu0 0.0
        %1158 = vmatpush1.msra.mxu0 0.0
        %1159 = vmatprep.subr.mxu0 0.0
        %1160 = vmatpush1.msra.mxu0 0.0
        %1161 = vmatprep.subr.mxu0 0.0
        %1162 = vmatpush1.msra.mxu0 0.0
        %1163 = vmatprep.subr.mxu0 0.0
        %1164 = vmatpush1.msra.mxu0 0.0
        %1165 = vmatprep.subr.mxu0 0.0
        %1166 = vmatpush1.msra.mxu0 0.0
        %1167 = vmatprep.subr.mxu0 0.0
        %1168 = vmatpush1.msra.mxu0 0.0
        %1169 = vmatprep.subr.mxu0 0.0
        %1170 = vmatpush1.msra.mxu0 0.0
        %1171 = vmatprep.subr.mxu0 0.0
        %1172 = vmatpush1.msra.mxu0 0.0
        %1173 = vmatprep.subr.mxu0 0.0
        %1174 = vmatpush1.msra.mxu0 0.0
        %1175 = vmatprep.subr.mxu0 0.0
        %1176 = vmatpush1.msra.mxu0 0.0
        %1177 = vmatprep.subr.mxu0 0.0
        %1178 = vmatpush1.msra.mxu0 0.0
        %1179 = vmatprep.mubr.f32.mxu0 0.0
        %1180 = vmatmul.mubr.f32.gmra.mrb[0].mxu0 %v1079
        %v1181 = vpop.f32.mrb[0].mxu0
        %v1182 = vadd.f32 %v1114, %v1181
        %v1183 = vpop.f32.mrb[0].mxu0
        %1184 = vmatprep.mubr.f32.mxu0 0.0
        %1185 = vmatmul.mubr.f32.gmra.mrb[0].mxu0 %v1080
        %v1186 = vpop.f32.mrb[0].mxu0
        %v1187 = vadd.f32 %v1114, %v1186
        %v1188 = vpop.f32.mrb[0].mxu0
        %1189 = vmatprep.mubr.f32.mxu0 0.0
        %1190 = vmatmul.mubr.f32.gmra.mrb[0].mxu0 %v1081
        %v1191 = vpop.f32.mrb[0].mxu0
        %v1192 = vadd.f32 %v1114, %v1191
        %v1193 = vpop.f32.mrb[0].mxu0
        %1194 = vmatprep.mubr.f32.mxu0 0.0
        %1195 = vmatmul.mubr.f32.gmra.mrb[0].mxu0 %v1082
        %v1196 = vpop.f32.mrb[0].mxu0
        %v1197 = vadd.f32 %v1114, %v1196
        %v1198 = vpop.f32.mrb[0].mxu0
        %1199 = vmatprep.mubr.f32.mxu0 0.0
        %1200 = vmatmul.mubr.f32.gmra.mrb[0].mxu0 %v1083
        %v1201 = vpop.f32.mrb[0].mxu0
        %v1202 = vadd.f32 %v1114, %v1201
        %v1203 = vpop.f32.mrb[0].mxu0
        %1204 = vmatprep.mubr.f32.mxu0 0.0
        %1205 = vmatmul.mubr.f32.gmra.mrb[0].mxu0 %v1084
        %v1206 = vpop.f32.mrb[0].mxu0
        %v1207 = vadd.f32 %v1114, %v1206
        %v1208 = vpop.f32.mrb[0].mxu0
        %1209 = vmatprep.mubr.f32.mxu0 0.0
        %1210 = vmatmul.mubr.f32.gmra.mrb[0].mxu0 %v1085
        %v1211 = vpop.f32.mrb[0].mxu0
        %v1212 = vadd.f32 %v1114, %v1211
        %v1213 = vpop.f32.mrb[0].mxu0
        %1214 = vmatprep.mubr.f32.mxu0 0.0
        %1215 = vmatmul.mubr.f32.gmra.mrb[0].mxu0 %v1086
        %v1216 = vpop.f32.mrb[0].mxu0
        %v1217 = vadd.f32 %v1114, %v1216
        %v1218 = vpop.f32.mrb[0].mxu0
        %1219 = vmatprep.mubr.f32.mxu0 0.0
        %1220 = vmatmul.mubr.f32.gmra.mrb[0].mxu0 %v1087
        %v1221 = vpop.f32.mrb[0].mxu0
        %v1222 = vadd.f32 %v1114, %v1221
        %v1223 = vpop.f32.mrb[0].mxu0
        %1224 = vmatprep.mubr.f32.mxu0 0.0
        %1225 = vmatmul.mubr.f32.gmra.mrb[0].mxu0 %v1088
        %v1226 = vpop.f32.mrb[0].mxu0
        %v1227 = vadd.f32 %v1114, %v1226
        %v1228 = vpop.f32.mrb[0].mxu0
        %1229 = vmatprep.mubr.f32.mxu0 0.0
        %1230 = vmatmul.mubr.f32.gmra.mrb[0].mxu0 %v1089
        %v1231 = vpop.f32.mrb[0].mxu0
        %v1232 = vadd.f32 %v1114, %v1231
        %v1233 = vpop.f32.mrb[0].mxu0
        %1234 = vmatprep.mubr.f32.mxu0 0.0
        %1235 = vmatmul.mubr.f32.gmra.mrb[0].mxu0 %v1090
        %v1236 = vpop.f32.mrb[0].mxu0
        %v1237 = vadd.f32 %v1114, %v1236
        %v1238 = vpop.f32.mrb[0].mxu0
        %1239 = vmatprep.mubr.f32.mxu0 0.0
        %1240 = vmatmul.mubr.f32.gmra.mrb[0].mxu0 %v1091
        %v1241 = vpop.f32.mrb[0].mxu0
        %v1242 = vadd.f32 %v1114, %v1241
        %v1243 = vpop.f32.mrb[0].mxu0
        %1244 = vmatprep.mubr.f32.mxu0 0.0
        %1245 = vmatmul.mubr.f32.gmra.mrb[0].mxu0 %v1092
        %v1246 = vpop.f32.mrb[0].mxu0
        %v1247 = vadd.f32 %v1114, %v1246
        %v1248 = vpop.f32.mrb[0].mxu0
        %1249 = vmatprep.mubr.f32.mxu0 0.0
        %1250 = vmatmul.mubr.f32.gmra.mrb[0].mxu0 %v1093
        %v1251 = vpop.f32.mrb[0].mxu0
        %v1252 = vadd.f32 %v1114, %v1251
        %v1253 = vpop.f32.mrb[0].mxu0
        %1254 = vmatprep.mubr.f32.mxu0 0.0
        %1255 = vmatmul.mubr.f32.gmra.mrb[0].mxu0 %v1094
        %v1256 = vpop.f32.mrb[0].mxu0
        %v1257 = vadd.f32 %v1114, %v1256
        %v1258 = vpop.f32.mrb[0].mxu0
        %1259 = vmatprep.mubr.f32.mxu0 0.0
        %1260 = vmatmul.mubr.f32.gmra.mrb[0].mxu0 %v1095
        %v1261 = vpop.f32.mrb[0].mxu0
        %v1262 = vadd.f32 %v1114, %v1261
        %v1263 = vpop.f32.mrb[0].mxu0
        %1264 = vmatprep.mubr.f32.mxu0 0.0
        %1265 = vmatmul.mubr.f32.gmra.mrb[0].mxu0 %v1096
        %v1266 = vpop.f32.mrb[0].mxu0
        %v1267 = vadd.f32 %v1114, %v1266
        %v1268 = vpop.f32.mrb[0].mxu0
        %1269 = vmatprep.mubr.f32.mxu0 0.0
        %1270 = vmatmul.mubr.f32.gmra.mrb[0].mxu0 %v1097
        %v1271 = vpop.f32.mrb[0].mxu0
        %v1272 = vadd.f32 %v1114, %v1271
        %v1273 = vpop.f32.mrb[0].mxu0
        %1274 = vmatprep.mubr.f32.mxu0 0.0
        %1275 = vmatmul.mubr.f32.gmra.mrb[0].mxu0 %v1098
        %v1276 = vpop.f32.mrb[0].mxu0
        %v1277 = vadd.f32 %v1114, %v1276
        %v1278 = vpop.f32.mrb[0].mxu0
        %1279 = vmatprep.mubr.f32.mxu0 0.0
        %1280 = vmatmul.mubr.f32.gmra.mrb[0].mxu0 %v1099
        %v1281 = vpop.f32.mrb[0].mxu0
        %v1282 = vadd.f32 %v1114, %v1281
        %v1283 = vpop.f32.mrb[0].mxu0
        %1284 = vmatprep.mubr.f32.mxu0 0.0
        %1285 = vmatmul.mubr.f32.gmra.mrb[0].mxu0 %v1100
        %v1286 = vpop.f32.mrb[0].mxu0
        %v1287 = vadd.f32 %v1114, %v1286
        %v1288 = vpop.f32.mrb[0].mxu0
        %1289 = vmatprep.mubr.f32.mxu0 0.0
        %1290 = vmatmul.mubr.f32.gmra.mrb[0].mxu0 %v1101
        %v1291 = vpop.f32.mrb[0].mxu0
        %v1292 = vadd.f32 %v1114, %v1291
        %v1293 = vpop.f32.mrb[0].mxu0
        %1294 = vmatprep.mubr.f32.mxu0 0.0
        %1295 = vmatmul.mubr.f32.gmra.mrb[0].mxu0 %v1102
        %v1296 = vpop.f32.mrb[0].mxu0
        %v1297 = vadd.f32 %v1114, %v1296
        %v1298 = vpop.f32.mrb[0].mxu0
        %1299 = vmatprep.mubr.f32.mxu0 0.0
        %1300 = vmatmul.mubr.f32.gmra.mrb[0].mxu0 %v1103
        %v1301 = vpop.f32.mrb[0].mxu0
        %v1302 = vadd.f32 %v1114, %v1301
        %v1303 = vpop.f32.mrb[0].mxu0
        %1304 = vmatprep.mubr.f32.mxu0 0.0
        %1305 = vmatmul.mubr.f32.gmra.mrb[0].mxu0 %v1104
        %v1306 = vpop.f32.mrb[0].mxu0
        %v1307 = vadd.f32 %v1114, %v1306
        %v1308 = vpop.f32.mrb[0].mxu0
        %1309 = vmatprep.mubr.f32.mxu0 0.0
        %1310 = vmatmul.mubr.f32.gmra.mrb[0].mxu0 %v1105
        %v1311 = vpop.f32.mrb[0].mxu0
        %v1312 = vadd.f32 %v1114, %v1311
        %v1313 = vpop.f32.mrb[0].mxu0
        %1314 = vmatprep.mubr.f32.mxu0 0.0
        %1315 = vmatmul.mubr.f32.gmra.mrb[0].mxu0 %v1106
        %v1316 = vpop.f32.mrb[0].mxu0
        %v1317 = vadd.f32 %v1114, %v1316
        %v1318 = vpop.f32.mrb[0].mxu0
        %1319 = vmatprep.mubr.f32.mxu0 0.0
        %1320 = vmatmul.mubr.f32.gmra.mrb[0].mxu0 %v1107
        %v1321 = vpop.f32.mrb[0].mxu0
        %v1322 = vadd.f32 %v1114, %v1321
        %v1323 = vpop.f32.mrb[0].mxu0
        %1324 = vmatprep.mubr.f32.mxu0 0.0
        %1325 = vmatmul.mubr.f32.gmra.mrb[0].mxu0 %v1108
        %v1326 = vpop.f32.mrb[0].mxu0
        %v1327 = vadd.f32 %v1114, %v1326
        %v1328 = vpop.f32.mrb[0].mxu0
        %1329 = vmatprep.mubr.f32.mxu0 0.0
        %1330 = vmatmul.mubr.f32.gmra.mrb[0].mxu0 %v1109
        %v1331 = vpop.f32.mrb[0].mxu0
        %v1332 = vadd.f32 %v1114, %v1331
        %v1333 = vpop.f32.mrb[0].mxu0
        %1334 = vmatprep.mubr.f32.mxu0 0.0
        %1335 = vmatmul.mubr.f32.gmra.mrb[0].mxu0 %v1110
        %v1336 = vpop.f32.mrb[0].mxu0
        %v1337 = vadd.f32 %v1114, %v1336
        %v1338 = vpop.f32.mrb[0].mxu0
        %1339 = vdwg.mxu0
        %v1340 = vmax.f32 %v1182, 0.0
        %v1341 = vmax.f32 %v1187, 0.0
        %v1342 = vmax.f32 %v1192, 0.0
        %v1343 = vmax.f32 %v1197, 0.0
        %v1344 = vmax.f32 %v1202, 0.0
        %v1345 = vmax.f32 %v1207, 0.0
        %v1346 = vmax.f32 %v1212, 0.0
        %v1347 = vmax.f32 %v1217, 0.0
        %v1348 = vmax.f32 %v1222, 0.0
        %v1349 = vmax.f32 %v1227, 0.0
        %v1350 = vmax.f32 %v1232, 0.0
        %v1351 = vmax.f32 %v1237, 0.0
        %v1352 = vmax.f32 %v1242, 0.0
        %v1353 = vmax.f32 %v1247, 0.0
        %v1354 = vmax.f32 %v1252, 0.0
        %v1355 = vmax.f32 %v1257, 0.0
        %v1356 = vmax.f32 %v1262, 0.0
        %v1357 = vmax.f32 %v1267, 0.0
        %v1358 = vmax.f32 %v1272, 0.0
        %v1359 = vmax.f32 %v1277, 0.0
        %v1360 = vmax.f32 %v1282, 0.0
        %v1361 = vmax.f32 %v1287, 0.0
        %v1362 = vmax.f32 %v1292, 0.0
        %v1363 = vmax.f32 %v1297, 0.0
        %v1364 = vmax.f32 %v1302, 0.0
        %v1365 = vmax.f32 %v1307, 0.0
        %v1366 = vmax.f32 %v1312, 0.0
        %v1367 = vmax.f32 %v1317, 0.0
        %v1368 = vmax.f32 %v1322, 0.0
        %v1369 = vmax.f32 %v1327, 0.0
        %v1370 = vmax.f32 %v1332, 0.0
        %v1371 = vmax.f32 %v1337, 0.0
        %v1372 = vpack.c.bf16 %v1341, %v1340
        %v1373 = vpack.c.bf16 %v1343, %v1342
        %v1374 = vpack.c.bf16 %v1345, %v1344
        %v1375 = vpack.c.bf16 %v1347, %v1346
        %v1376 = vpack.c.bf16 %v1349, %v1348
        %v1377 = vpack.c.bf16 %v1351, %v1350
        %v1378 = vpack.c.bf16 %v1353, %v1352
        %v1379 = vpack.c.bf16 %v1355, %v1354
        %v1380 = vpack.c.bf16 %v1357, %v1356
        %v1381 = vpack.c.bf16 %v1359, %v1358
        %v1382 = vpack.c.bf16 %v1361, %v1360
        %v1383 = vpack.c.bf16 %v1363, %v1362
        %v1384 = vpack.c.bf16 %v1365, %v1364
        %v1385 = vpack.c.bf16 %v1367, %v1366
        %v1386 = vpack.c.bf16 %v1369, %v1368
        %v1387 = vpack.c.bf16 %v1371, %v1370
        %v1404 = vunpack.c.l.b16 %v1063
        %v1405 = vunpack.c.h.b16 %v1063
        %v1406 = vunpack.c.l.b16 %v1064
        %v1407 = vunpack.c.h.b16 %v1064
        %v1408 = vunpack.c.l.b16 %v1065
        %v1409 = vunpack.c.h.b16 %v1065
        %v1410 = vunpack.c.l.b16 %v1066
        %v1411 = vunpack.c.h.b16 %v1066
        %v1412 = vunpack.c.l.b16 %v1067
        %v1413 = vunpack.c.h.b16 %v1067
        %v1414 = vunpack.c.l.b16 %v1068
        %v1415 = vunpack.c.h.b16 %v1068
        %v1416 = vunpack.c.l.b16 %v1069
        %v1417 = vunpack.c.h.b16 %v1069
        %v1418 = vunpack.c.l.b16 %v1070
        %v1419 = vunpack.c.h.b16 %v1070
        %v1420 = vunpack.c.l.b16 %v1071
        %v1421 = vunpack.c.h.b16 %v1071
        %v1422 = vunpack.c.l.b16 %v1072
        %v1423 = vunpack.c.h.b16 %v1072
        %v1424 = vunpack.c.l.b16 %v1073
        %v1425 = vunpack.c.h.b16 %v1073
        %v1426 = vunpack.c.l.b16 %v1074
        %v1427 = vunpack.c.h.b16 %v1074
        %v1428 = vunpack.c.l.b16 %v1075
        %v1429 = vunpack.c.h.b16 %v1075
        %v1430 = vunpack.c.l.b16 %v1076
        %v1431 = vunpack.c.h.b16 %v1076
        %v1432 = vunpack.c.l.b16 %v1077
        %v1433 = vunpack.c.h.b16 %v1077
        %v1434 = vunpack.c.l.b16 %v1078
        %v1435 = vunpack.c.h.b16 %v1078
        %v1436 = vpack.c.b16 %v1406, %v1404
        %v1437 = vpack.c.b16 %v1407, %v1405
        %v1438 = vpack.c.b16 %v1410, %v1408
        %v1439 = vpack.c.b16 %v1411, %v1409
        %v1440 = vpack.c.b16 %v1414, %v1412
        %v1441 = vpack.c.b16 %v1415, %v1413
        %v1442 = vpack.c.b16 %v1418, %v1416
        %v1443 = vpack.c.b16 %v1419, %v1417
        %v1444 = vpack.c.b16 %v1422, %v1420
        %v1445 = vpack.c.b16 %v1423, %v1421
        %v1446 = vpack.c.b16 %v1426, %v1424
        %v1447 = vpack.c.b16 %v1427, %v1425
        %v1448 = vpack.c.b16 %v1430, %v1428
        %v1449 = vpack.c.b16 %v1431, %v1429
        %v1450 = vpack.c.b16 %v1434, %v1432
        %v1451 = vpack.c.b16 %v1435, %v1433
        %1468 = vmatprep.subr.bf16.mxu0 0
        %1469 = vmatpush1.bf16.msra.mxu0 %v1372
        %1470 = vmatprep.subr.bf16.mxu0 0
        %1471 = vmatpush1.bf16.msra.mxu0 %v1373
        %1472 = vmatprep.subr.bf16.mxu0 0
        %1473 = vmatpush1.bf16.msra.mxu0 %v1374
        %1474 = vmatprep.subr.bf16.mxu0 0
        %1475 = vmatpush1.bf16.msra.mxu0 %v1375
        %1476 = vmatprep.subr.bf16.mxu0 0
        %1477 = vmatpush1.bf16.msra.mxu0 %v1376
        %1478 = vmatprep.subr.bf16.mxu0 0
        %1479 = vmatpush1.bf16.msra.mxu0 %v1377
        %1480 = vmatprep.subr.bf16.mxu0 0
        %1481 = vmatpush1.bf16.msra.mxu0 %v1378
        %1482 = vmatprep.subr.bf16.mxu0 0
        %1483 = vmatpush1.bf16.msra.mxu0 %v1379
        %1484 = vmatprep.subr.bf16.mxu0 0
        %1485 = vmatpush1.bf16.msra.mxu0 %v1380
        %1486 = vmatprep.subr.bf16.mxu0 0
        %1487 = vmatpush1.bf16.msra.mxu0 %v1381
        %1488 = vmatprep.subr.bf16.mxu0 0
        %1489 = vmatpush1.bf16.msra.mxu0 %v1382
        %1490 = vmatprep.subr.bf16.mxu0 0
        %1491 = vmatpush1.bf16.msra.mxu0 %v1383
        %1492 = vmatprep.subr.bf16.mxu0 0
        %1493 = vmatpush1.bf16.msra.mxu0 %v1384
        %1494 = vmatprep.subr.bf16.mxu0 0
        %1495 = vmatpush1.bf16.msra.mxu0 %v1385
        %1496 = vmatprep.subr.bf16.mxu0 0
        %1497 = vmatpush1.bf16.msra.mxu0 %v1386
        %1498 = vmatprep.subr.bf16.mxu0 0
        %1499 = vmatpush1.bf16.msra.mxu0 %v1387
        %1500 = vmatprep.mubr.bf16.mxu0 %v1437
        %1501 = vmatmul.mubr.bf16.gmra.mrb[0].mxu0 %v1436
        %v1502 = vpop.f32.mrb[0].mxu0
        %v1503 = vadd.f32 0.0, %v1502
        %v1504 = vpop.f32.mrb[0].mxu0
        %v1505 = vpop.f32.mrb[0].mxu0
        %v1506 = vadd.f32 0.0, %v1505
        %v1507 = vpop.f32.mrb[0].mxu0
        %1508 = vmatprep.mubr.bf16.mxu0 %v1439
        %1509 = vmatmul.mubr.bf16.gmra.mrb[0].mxu0 %v1438
        %v1510 = vpop.f32.mrb[0].mxu0
        %v1511 = vadd.f32 0.0, %v1510
        %v1512 = vpop.f32.mrb[0].mxu0
        %v1513 = vpop.f32.mrb[0].mxu0
        %v1514 = vadd.f32 0.0, %v1513
        %v1515 = vpop.f32.mrb[0].mxu0
        %1516 = vmatprep.mubr.bf16.mxu0 %v1441
        %1517 = vmatmul.mubr.bf16.gmra.mrb[0].mxu0 %v1440
        %v1518 = vpop.f32.mrb[0].mxu0
        %v1519 = vadd.f32 0.0, %v1518
        %v1520 = vpop.f32.mrb[0].mxu0
        %v1521 = vpop.f32.mrb[0].mxu0
        %v1522 = vadd.f32 0.0, %v1521
        %v1523 = vpop.f32.mrb[0].mxu0
        %1524 = vmatprep.mubr.bf16.mxu0 %v1443
        %1525 = vmatmul.mubr.bf16.gmra.mrb[0].mxu0 %v1442
        %v1526 = vpop.f32.mrb[0].mxu0
        %v1527 = vadd.f32 0.0, %v1526
        %v1528 = vpop.f32.mrb[0].mxu0
        %v1529 = vpop.f32.mrb[0].mxu0
        %v1530 = vadd.f32 0.0, %v1529
        %v1531 = vpop.f32.mrb[0].mxu0
        %1532 = vmatprep.mubr.bf16.mxu0 %v1445
        %1533 = vmatmul.mubr.bf16.gmra.mrb[0].mxu0 %v1444
        %v1534 = vpop.f32.mrb[0].mxu0
        %v1535 = vadd.f32 0.0, %v1534
        %v1536 = vpop.f32.mrb[0].mxu0
        %v1537 = vpop.f32.mrb[0].mxu0
        %v1538 = vadd.f32 0.0, %v1537
        %v1539 = vpop.f32.mrb[0].mxu0
        %1540 = vmatprep.mubr.bf16.mxu0 %v1447
        %1541 = vmatmul.mubr.bf16.gmra.mrb[0].mxu0 %v1446
        %v1542 = vpop.f32.mrb[0].mxu0
        %v1543 = vadd.f32 0.0, %v1542
        %v1544 = vpop.f32.mrb[0].mxu0
        %v1545 = vpop.f32.mrb[0].mxu0
        %v1546 = vadd.f32 0.0, %v1545
        %v1547 = vpop.f32.mrb[0].mxu0
        %1548 = vmatprep.mubr.bf16.mxu0 %v1449
        %1549 = vmatmul.mubr.bf16.gmra.mrb[0].mxu0 %v1448
        %v1550 = vpop.f32.mrb[0].mxu0
        %v1551 = vadd.f32 0.0, %v1550
        %v1552 = vpop.f32.mrb[0].mxu0
        %v1553 = vpop.f32.mrb[0].mxu0
        %v1554 = vadd.f32 0.0, %v1553
        %v1555 = vpop.f32.mrb[0].mxu0
        %1556 = vmatprep.mubr.bf16.mxu0 %v1451
        %1557 = vmatmul.mubr.bf16.gmra.mrb[0].mxu0 %v1450
        %v1558 = vpop.f32.mrb[0].mxu0
        %v1559 = vadd.f32 0.0, %v1558
        %v1560 = vpop.f32.mrb[0].mxu0
        %v1561 = vpop.f32.mrb[0].mxu0
        %v1562 = vadd.f32 0.0, %v1561
        %v1563 = vpop.f32.mrb[0].mxu0
        %1564 = vdwg.mxu0
        %v1565 = vld [vmem:[%s378] sm:$0xff]
        %v1566 = vld [vmem:[%s378 + $0x8] sm:$0xff]
        %v1567 = vld [vmem:[%s378 + $0x10] sm:$0xff]
        %v1568 = vld [vmem:[%s378 + $0x18] sm:$0xff]
        %v1569 = vld [vmem:[%s378 + $0x20] sm:$0xff]
        %v1570 = vld [vmem:[%s378 + $0x28] sm:$0xff]
        %v1571 = vld [vmem:[%s378 + $0x30] sm:$0xff]
        %v1572 = vld [vmem:[%s378 + $0x38] sm:$0xff]
        %v1573 = vld [vmem:[%s378 + $0x40] sm:$0xff]
        %v1574 = vld [vmem:[%s378 + $0x48] sm:$0xff]
        %v1575 = vld [vmem:[%s378 + $0x50] sm:$0xff]
        %v1576 = vld [vmem:[%s378 + $0x58] sm:$0xff]
        %v1577 = vld [vmem:[%s378 + $0x60] sm:$0xff]
        %v1578 = vld [vmem:[%s378 + $0x68] sm:$0xff]
        %v1579 = vld [vmem:[%s378 + $0x70] sm:$0xff]
        %v1580 = vld [vmem:[%s378 + $0x78] sm:$0xff]
        %v1581 = vld [vmem:[#allocation11] sm:$0xff]
        %v1582 = vld [vmem:[#allocation11 + $0x8] sm:$0xff]
        %v1583 = vld [vmem:[#allocation11 + $0x10] sm:$0xff]
        %v1584 = vld [vmem:[#allocation11 + $0x18] sm:$0xff]
        %v1585 = vld [vmem:[#allocation11 + $0x20] sm:$0xff]
        %v1586 = vld [vmem:[#allocation11 + $0x28] sm:$0xff]
        %v1587 = vld [vmem:[#allocation11 + $0x30] sm:$0xff]
        %v1588 = vld [vmem:[#allocation11 + $0x38] sm:$0xff]
        %v1589 = vld [vmem:[#allocation11 + $0x40] sm:$0xff]
        %v1590 = vld [vmem:[#allocation11 + $0x48] sm:$0xff]
        %v1591 = vld [vmem:[#allocation11 + $0x50] sm:$0xff]
        %v1592 = vld [vmem:[#allocation11 + $0x58] sm:$0xff]
        %v1593 = vld [vmem:[#allocation11 + $0x60] sm:$0xff]
        %v1594 = vld [vmem:[#allocation11 + $0x68] sm:$0xff]
        %v1595 = vld [vmem:[#allocation11 + $0x70] sm:$0xff]
        %v1596 = vld [vmem:[#allocation11 + $0x78] sm:$0xff]
        %v1597 = vld [vmem:[#allocation11 + $0x80] sm:$0xff]
        %v1598 = vld [vmem:[#allocation11 + $0x88] sm:$0xff]
        %v1599 = vld [vmem:[#allocation11 + $0x90] sm:$0xff]
        %v1600 = vld [vmem:[#allocation11 + $0x98] sm:$0xff]
        %v1601 = vld [vmem:[#allocation11 + $0xa0] sm:$0xff]
        %v1602 = vld [vmem:[#allocation11 + $0xa8] sm:$0xff]
        %v1603 = vld [vmem:[#allocation11 + $0xb0] sm:$0xff]
        %v1604 = vld [vmem:[#allocation11 + $0xb8] sm:$0xff]
        %v1605 = vld [vmem:[#allocation11 + $0xc0] sm:$0xff]
        %v1606 = vld [vmem:[#allocation11 + $0xc8] sm:$0xff]
        %v1607 = vld [vmem:[#allocation11 + $0xd0] sm:$0xff]
        %v1608 = vld [vmem:[#allocation11 + $0xd8] sm:$0xff]
        %v1609 = vld [vmem:[#allocation11 + $0xe0] sm:$0xff]
        %v1610 = vld [vmem:[#allocation11 + $0xe8] sm:$0xff]
        %v1611 = vld [vmem:[#allocation11 + $0xf0] sm:$0xff]
        %v1612 = vld [vmem:[#allocation11 + $0xf8] sm:$0xff]
        %v1613 = vlaneseq
        %v1614 = vshrl.u32 %v1613, 7
        %v1615 = vsub.s32 0, %v1614
        %v1616 = vrot.slane %v538, %v1615
        %1617 = vmatprep.subr.mxu0 0.0
        %1618 = vmatpush1.msra.mxu0 %v472
        %1619 = vmatprep.subr.mxu0 0.0
        %1620 = vmatpush1.msra.mxu0 %v473
        %1621 = vmatprep.subr.mxu0 0.0
        %1622 = vmatpush1.msra.mxu0 %v474
        %1623 = vmatprep.subr.mxu0 0.0
        %1624 = vmatpush1.msra.mxu0 %v475
        %1625 = vmatprep.subr.mxu0 0.0
        %1626 = vmatpush1.msra.mxu0 %v476
        %1627 = vmatprep.subr.mxu0 0.0
        %1628 = vmatpush1.msra.mxu0 %v477
        %1629 = vmatprep.subr.mxu0 0.0
        %1630 = vmatpush1.msra.mxu0 %v478
        %1631 = vmatprep.subr.mxu0 0.0
        %1632 = vmatpush1.msra.mxu0 %v479
        %1633 = vmatprep.subr.mxu0 0.0
        %1634 = vmatpush1.msra.mxu0 %v480
        %1635 = vmatprep.subr.mxu0 0.0
        %1636 = vmatpush1.msra.mxu0 %v481
        %1637 = vmatprep.subr.mxu0 0.0
        %1638 = vmatpush1.msra.mxu0 %v482
        %1639 = vmatprep.subr.mxu0 0.0
        %1640 = vmatpush1.msra.mxu0 %v483
        %1641 = vmatprep.subr.mxu0 0.0
        %1642 = vmatpush1.msra.mxu0 %v484
        %1643 = vmatprep.subr.mxu0 0.0
        %1644 = vmatpush1.msra.mxu0 %v485
        %1645 = vmatprep.subr.mxu0 0.0
        %1646 = vmatpush1.msra.mxu0 %v486
        %1647 = vmatprep.subr.mxu0 0.0
        %1648 = vmatpush1.msra.mxu0 %v487
        %1649 = vmatprep.subr.mxu0 0.0
        %1650 = vmatpush1.msra.mxu0 0.0
        %1651 = vmatprep.subr.mxu0 0.0
        %1652 = vmatpush1.msra.mxu0 0.0
        %1653 = vmatprep.subr.mxu0 0.0
        %1654 = vmatpush1.msra.mxu0 0.0
        %1655 = vmatprep.subr.mxu0 0.0
        %1656 = vmatpush1.msra.mxu0 0.0
        %1657 = vmatprep.subr.mxu0 0.0
        %1658 = vmatpush1.msra.mxu0 0.0
        %1659 = vmatprep.subr.mxu0 0.0
        %1660 = vmatpush1.msra.mxu0 0.0
        %1661 = vmatprep.subr.mxu0 0.0
        %1662 = vmatpush1.msra.mxu0 0.0
        %1663 = vmatprep.subr.mxu0 0.0
        %1664 = vmatpush1.msra.mxu0 0.0
        %1665 = vmatprep.subr.mxu0 0.0
        %1666 = vmatpush1.msra.mxu0 0.0
        %1667 = vmatprep.subr.mxu0 0.0
        %1668 = vmatpush1.msra.mxu0 0.0
        %1669 = vmatprep.subr.mxu0 0.0
        %1670 = vmatpush1.msra.mxu0 0.0
        %1671 = vmatprep.subr.mxu0 0.0
        %1672 = vmatpush1.msra.mxu0 0.0
        %1673 = vmatprep.subr.mxu0 0.0
        %1674 = vmatpush1.msra.mxu0 0.0
        %1675 = vmatprep.subr.mxu0 0.0
        %1676 = vmatpush1.msra.mxu0 0.0
        %1677 = vmatprep.subr.mxu0 0.0
        %1678 = vmatpush1.msra.mxu0 0.0
        %1679 = vmatprep.subr.mxu0 0.0
        %1680 = vmatpush1.msra.mxu0 0.0
        %1681 = vmatprep.mubr.f32.mxu0 0.0
        %1682 = vmatmul.mubr.f32.gmra.mrb[0].mxu0 %v1581
        %v1683 = vpop.f32.mrb[0].mxu0
        %v1684 = vadd.f32 %v1616, %v1683
        %v1685 = vpop.f32.mrb[0].mxu0
        %1686 = vmatprep.mubr.f32.mxu0 0.0
        %1687 = vmatmul.mubr.f32.gmra.mrb[0].mxu0 %v1582
        %v1688 = vpop.f32.mrb[0].mxu0
        %v1689 = vadd.f32 %v1616, %v1688
        %v1690 = vpop.f32.mrb[0].mxu0
        %1691 = vmatprep.mubr.f32.mxu0 0.0
        %1692 = vmatmul.mubr.f32.gmra.mrb[0].mxu0 %v1583
        %v1693 = vpop.f32.mrb[0].mxu0
        %v1694 = vadd.f32 %v1616, %v1693
        %v1695 = vpop.f32.mrb[0].mxu0
        %1696 = vmatprep.mubr.f32.mxu0 0.0
        %1697 = vmatmul.mubr.f32.gmra.mrb[0].mxu0 %v1584
        %v1698 = vpop.f32.mrb[0].mxu0
        %v1699 = vadd.f32 %v1616, %v1698
        %v1700 = vpop.f32.mrb[0].mxu0
        %1701 = vmatprep.mubr.f32.mxu0 0.0
        %1702 = vmatmul.mubr.f32.gmra.mrb[0].mxu0 %v1585
        %v1703 = vpop.f32.mrb[0].mxu0
        %v1704 = vadd.f32 %v1616, %v1703
        %v1705 = vpop.f32.mrb[0].mxu0
        %1706 = vmatprep.mubr.f32.mxu0 0.0
        %1707 = vmatmul.mubr.f32.gmra.mrb[0].mxu0 %v1586
        %v1708 = vpop.f32.mrb[0].mxu0
        %v1709 = vadd.f32 %v1616, %v1708
        %v1710 = vpop.f32.mrb[0].mxu0
        %1711 = vmatprep.mubr.f32.mxu0 0.0
        %1712 = vmatmul.mubr.f32.gmra.mrb[0].mxu0 %v1587
        %v1713 = vpop.f32.mrb[0].mxu0
        %v1714 = vadd.f32 %v1616, %v1713
        %v1715 = vpop.f32.mrb[0].mxu0
        %1716 = vmatprep.mubr.f32.mxu0 0.0
        %1717 = vmatmul.mubr.f32.gmra.mrb[0].mxu0 %v1588
        %v1718 = vpop.f32.mrb[0].mxu0
        %v1719 = vadd.f32 %v1616, %v1718
        %v1720 = vpop.f32.mrb[0].mxu0
        %1721 = vmatprep.mubr.f32.mxu0 0.0
        %1722 = vmatmul.mubr.f32.gmra.mrb[0].mxu0 %v1589
        %v1723 = vpop.f32.mrb[0].mxu0
        %v1724 = vadd.f32 %v1616, %v1723
        %v1725 = vpop.f32.mrb[0].mxu0
        %1726 = vmatprep.mubr.f32.mxu0 0.0
        %1727 = vmatmul.mubr.f32.gmra.mrb[0].mxu0 %v1590
        %v1728 = vpop.f32.mrb[0].mxu0
        %v1729 = vadd.f32 %v1616, %v1728
        %v1730 = vpop.f32.mrb[0].mxu0
        %1731 = vmatprep.mubr.f32.mxu0 0.0
        %1732 = vmatmul.mubr.f32.gmra.mrb[0].mxu0 %v1591
        %v1733 = vpop.f32.mrb[0].mxu0
        %v1734 = vadd.f32 %v1616, %v1733
        %v1735 = vpop.f32.mrb[0].mxu0
        %1736 = vmatprep.mubr.f32.mxu0 0.0
        %1737 = vmatmul.mubr.f32.gmra.mrb[0].mxu0 %v1592
        %v1738 = vpop.f32.mrb[0].mxu0
        %v1739 = vadd.f32 %v1616, %v1738
        %v1740 = vpop.f32.mrb[0].mxu0
        %1741 = vmatprep.mubr.f32.mxu0 0.0
        %1742 = vmatmul.mubr.f32.gmra.mrb[0].mxu0 %v1593
        %v1743 = vpop.f32.mrb[0].mxu0
        %v1744 = vadd.f32 %v1616, %v1743
        %v1745 = vpop.f32.mrb[0].mxu0
        %1746 = vmatprep.mubr.f32.mxu0 0.0
        %1747 = vmatmul.mubr.f32.gmra.mrb[0].mxu0 %v1594
        %v1748 = vpop.f32.mrb[0].mxu0
        %v1749 = vadd.f32 %v1616, %v1748
        %v1750 = vpop.f32.mrb[0].mxu0
        %1751 = vmatprep.mubr.f32.mxu0 0.0
        %1752 = vmatmul.mubr.f32.gmra.mrb[0].mxu0 %v1595
        %v1753 = vpop.f32.mrb[0].mxu0
        %v1754 = vadd.f32 %v1616, %v1753
        %v1755 = vpop.f32.mrb[0].mxu0
        %1756 = vmatprep.mubr.f32.mxu0 0.0
        %1757 = vmatmul.mubr.f32.gmra.mrb[0].mxu0 %v1596
        %v1758 = vpop.f32.mrb[0].mxu0
        %v1759 = vadd.f32 %v1616, %v1758
        %v1760 = vpop.f32.mrb[0].mxu0
        %1761 = vmatprep.mubr.f32.mxu0 0.0
        %1762 = vmatmul.mubr.f32.gmra.mrb[0].mxu0 %v1597
        %v1763 = vpop.f32.mrb[0].mxu0
        %v1764 = vadd.f32 %v1616, %v1763
        %v1765 = vpop.f32.mrb[0].mxu0
        %1766 = vmatprep.mubr.f32.mxu0 0.0
        %1767 = vmatmul.mubr.f32.gmra.mrb[0].mxu0 %v1598
        %v1768 = vpop.f32.mrb[0].mxu0
        %v1769 = vadd.f32 %v1616, %v1768
        %v1770 = vpop.f32.mrb[0].mxu0
        %1771 = vmatprep.mubr.f32.mxu0 0.0
        %1772 = vmatmul.mubr.f32.gmra.mrb[0].mxu0 %v1599
        %v1773 = vpop.f32.mrb[0].mxu0
        %v1774 = vadd.f32 %v1616, %v1773
        %v1775 = vpop.f32.mrb[0].mxu0
        %1776 = vmatprep.mubr.f32.mxu0 0.0
        %1777 = vmatmul.mubr.f32.gmra.mrb[0].mxu0 %v1600
        %v1778 = vpop.f32.mrb[0].mxu0
        %v1779 = vadd.f32 %v1616, %v1778
        %v1780 = vpop.f32.mrb[0].mxu0
        %1781 = vmatprep.mubr.f32.mxu0 0.0
        %1782 = vmatmul.mubr.f32.gmra.mrb[0].mxu0 %v1601
        %v1783 = vpop.f32.mrb[0].mxu0
        %v1784 = vadd.f32 %v1616, %v1783
        %v1785 = vpop.f32.mrb[0].mxu0
        %1786 = vmatprep.mubr.f32.mxu0 0.0
        %1787 = vmatmul.mubr.f32.gmra.mrb[0].mxu0 %v1602
        %v1788 = vpop.f32.mrb[0].mxu0
        %v1789 = vadd.f32 %v1616, %v1788
        %v1790 = vpop.f32.mrb[0].mxu0
        %1791 = vmatprep.mubr.f32.mxu0 0.0
        %1792 = vmatmul.mubr.f32.gmra.mrb[0].mxu0 %v1603
        %v1793 = vpop.f32.mrb[0].mxu0
        %v1794 = vadd.f32 %v1616, %v1793
        %v1795 = vpop.f32.mrb[0].mxu0
        %1796 = vmatprep.mubr.f32.mxu0 0.0
        %1797 = vmatmul.mubr.f32.gmra.mrb[0].mxu0 %v1604
        %v1798 = vpop.f32.mrb[0].mxu0
        %v1799 = vadd.f32 %v1616, %v1798
        %v1800 = vpop.f32.mrb[0].mxu0
        %1801 = vmatprep.mubr.f32.mxu0 0.0
        %1802 = vmatmul.mubr.f32.gmra.mrb[0].mxu0 %v1605
        %v1803 = vpop.f32.mrb[0].mxu0
        %v1804 = vadd.f32 %v1616, %v1803
        %v1805 = vpop.f32.mrb[0].mxu0
        %1806 = vmatprep.mubr.f32.mxu0 0.0
        %1807 = vmatmul.mubr.f32.gmra.mrb[0].mxu0 %v1606
        %v1808 = vpop.f32.mrb[0].mxu0
        %v1809 = vadd.f32 %v1616, %v1808
        %v1810 = vpop.f32.mrb[0].mxu0
        %1811 = vmatprep.mubr.f32.mxu0 0.0
        %1812 = vmatmul.mubr.f32.gmra.mrb[0].mxu0 %v1607
        %v1813 = vpop.f32.mrb[0].mxu0
        %v1814 = vadd.f32 %v1616, %v1813
        %v1815 = vpop.f32.mrb[0].mxu0
        %1816 = vmatprep.mubr.f32.mxu0 0.0
        %1817 = vmatmul.mubr.f32.gmra.mrb[0].mxu0 %v1608
        %v1818 = vpop.f32.mrb[0].mxu0
        %v1819 = vadd.f32 %v1616, %v1818
        %v1820 = vpop.f32.mrb[0].mxu0
        %1821 = vmatprep.mubr.f32.mxu0 0.0
        %1822 = vmatmul.mubr.f32.gmra.mrb[0].mxu0 %v1609
        %v1823 = vpop.f32.mrb[0].mxu0
        %v1824 = vadd.f32 %v1616, %v1823
        %v1825 = vpop.f32.mrb[0].mxu0
        %1826 = vmatprep.mubr.f32.mxu0 0.0
        %1827 = vmatmul.mubr.f32.gmra.mrb[0].mxu0 %v1610
        %v1828 = vpop.f32.mrb[0].mxu0
        %v1829 = vadd.f32 %v1616, %v1828
        %v1830 = vpop.f32.mrb[0].mxu0
        %1831 = vmatprep.mubr.f32.mxu0 0.0
        %1832 = vmatmul.mubr.f32.gmra.mrb[0].mxu0 %v1611
        %v1833 = vpop.f32.mrb[0].mxu0
        %v1834 = vadd.f32 %v1616, %v1833
        %v1835 = vpop.f32.mrb[0].mxu0
        %1836 = vmatprep.mubr.f32.mxu0 0.0
        %1837 = vmatmul.mubr.f32.gmra.mrb[0].mxu0 %v1612
        %v1838 = vpop.f32.mrb[0].mxu0
        %v1839 = vadd.f32 %v1616, %v1838
        %v1840 = vpop.f32.mrb[0].mxu0
        %1841 = vdwg.mxu0
        %v1842 = vmax.f32 %v1684, 0.0
        %v1843 = vmax.f32 %v1689, 0.0
        %v1844 = vmax.f32 %v1694, 0.0
        %v1845 = vmax.f32 %v1699, 0.0
        %v1846 = vmax.f32 %v1704, 0.0
        %v1847 = vmax.f32 %v1709, 0.0
        %v1848 = vmax.f32 %v1714, 0.0
        %v1849 = vmax.f32 %v1719, 0.0
        %v1850 = vmax.f32 %v1724, 0.0
        %v1851 = vmax.f32 %v1729, 0.0
        %v1852 = vmax.f32 %v1734, 0.0
        %v1853 = vmax.f32 %v1739, 0.0
        %v1854 = vmax.f32 %v1744, 0.0
        %v1855 = vmax.f32 %v1749, 0.0
        %v1856 = vmax.f32 %v1754, 0.0
        %v1857 = vmax.f32 %v1759, 0.0
        %v1858 = vmax.f32 %v1764, 0.0
        %v1859 = vmax.f32 %v1769, 0.0
        %v1860 = vmax.f32 %v1774, 0.0
        %v1861 = vmax.f32 %v1779, 0.0
        %v1862 = vmax.f32 %v1784, 0.0
        %v1863 = vmax.f32 %v1789, 0.0
        %v1864 = vmax.f32 %v1794, 0.0
        %v1865 = vmax.f32 %v1799, 0.0
        %v1866 = vmax.f32 %v1804, 0.0
        %v1867 = vmax.f32 %v1809, 0.0
        %v1868 = vmax.f32 %v1814, 0.0
        %v1869 = vmax.f32 %v1819, 0.0
        %v1870 = vmax.f32 %v1824, 0.0
        %v1871 = vmax.f32 %v1829, 0.0
        %v1872 = vmax.f32 %v1834, 0.0
        %v1873 = vmax.f32 %v1839, 0.0
        %v1874 = vpack.c.bf16 %v1843, %v1842
        %v1875 = vpack.c.bf16 %v1845, %v1844
        %v1876 = vpack.c.bf16 %v1847, %v1846
        %v1877 = vpack.c.bf16 %v1849, %v1848
        %v1878 = vpack.c.bf16 %v1851, %v1850
        %v1879 = vpack.c.bf16 %v1853, %v1852
        %v1880 = vpack.c.bf16 %v1855, %v1854
        %v1881 = vpack.c.bf16 %v1857, %v1856
        %v1882 = vpack.c.bf16 %v1859, %v1858
        %v1883 = vpack.c.bf16 %v1861, %v1860
        %v1884 = vpack.c.bf16 %v1863, %v1862
        %v1885 = vpack.c.bf16 %v1865, %v1864
        %v1886 = vpack.c.bf16 %v1867, %v1866
        %v1887 = vpack.c.bf16 %v1869, %v1868
        %v1888 = vpack.c.bf16 %v1871, %v1870
        %v1889 = vpack.c.bf16 %v1873, %v1872
        %v1906 = vunpack.c.l.b16 %v1565
        %v1907 = vunpack.c.h.b16 %v1565
        %v1908 = vunpack.c.l.b16 %v1566
        %v1909 = vunpack.c.h.b16 %v1566
        %v1910 = vunpack.c.l.b16 %v1567
        %v1911 = vunpack.c.h.b16 %v1567
        %v1912 = vunpack.c.l.b16 %v1568
        %v1913 = vunpack.c.h.b16 %v1568
        %v1914 = vunpack.c.l.b16 %v1569
        %v1915 = vunpack.c.h.b16 %v1569
        %v1916 = vunpack.c.l.b16 %v1570
        %v1917 = vunpack.c.h.b16 %v1570
        %v1918 = vunpack.c.l.b16 %v1571
        %v1919 = vunpack.c.h.b16 %v1571
        %v1920 = vunpack.c.l.b16 %v1572
        %v1921 = vunpack.c.h.b16 %v1572
        %v1922 = vunpack.c.l.b16 %v1573
        %v1923 = vunpack.c.h.b16 %v1573
        %v1924 = vunpack.c.l.b16 %v1574
        %v1925 = vunpack.c.h.b16 %v1574
        %v1926 = vunpack.c.l.b16 %v1575
        %v1927 = vunpack.c.h.b16 %v1575
        %v1928 = vunpack.c.l.b16 %v1576
        %v1929 = vunpack.c.h.b16 %v1576
        %v1930 = vunpack.c.l.b16 %v1577
        %v1931 = vunpack.c.h.b16 %v1577
        %v1932 = vunpack.c.l.b16 %v1578
        %v1933 = vunpack.c.h.b16 %v1578
        %v1934 = vunpack.c.l.b16 %v1579
        %v1935 = vunpack.c.h.b16 %v1579
        %v1936 = vunpack.c.l.b16 %v1580
        %v1937 = vunpack.c.h.b16 %v1580
        %v1938 = vpack.c.b16 %v1908, %v1906
        %v1939 = vpack.c.b16 %v1909, %v1907
        %v1940 = vpack.c.b16 %v1912, %v1910
        %v1941 = vpack.c.b16 %v1913, %v1911
        %v1942 = vpack.c.b16 %v1916, %v1914
        %v1943 = vpack.c.b16 %v1917, %v1915
        %v1944 = vpack.c.b16 %v1920, %v1918
        %v1945 = vpack.c.b16 %v1921, %v1919
        %v1946 = vpack.c.b16 %v1924, %v1922
        %v1947 = vpack.c.b16 %v1925, %v1923
        %v1948 = vpack.c.b16 %v1928, %v1926
        %v1949 = vpack.c.b16 %v1929, %v1927
        %v1950 = vpack.c.b16 %v1932, %v1930
        %v1951 = vpack.c.b16 %v1933, %v1931
        %v1952 = vpack.c.b16 %v1936, %v1934
        %v1953 = vpack.c.b16 %v1937, %v1935
        %1970 = vmatprep.subr.bf16.mxu0 0
        %1971 = vmatpush1.bf16.msra.mxu0 %v1874
        %1972 = vmatprep.subr.bf16.mxu0 0
        %1973 = vmatpush1.bf16.msra.mxu0 %v1875
        %1974 = vmatprep.subr.bf16.mxu0 0
        %1975 = vmatpush1.bf16.msra.mxu0 %v1876
        %1976 = vmatprep.subr.bf16.mxu0 0
        %1977 = vmatpush1.bf16.msra.mxu0 %v1877
        %1978 = vmatprep.subr.bf16.mxu0 0
        %1979 = vmatpush1.bf16.msra.mxu0 %v1878
        %1980 = vmatprep.subr.bf16.mxu0 0
        %1981 = vmatpush1.bf16.msra.mxu0 %v1879
        %1982 = vmatprep.subr.bf16.mxu0 0
        %1983 = vmatpush1.bf16.msra.mxu0 %v1880
        %1984 = vmatprep.subr.bf16.mxu0 0
        %1985 = vmatpush1.bf16.msra.mxu0 %v1881
        %1986 = vmatprep.subr.bf16.mxu0 0
        %1987 = vmatpush1.bf16.msra.mxu0 %v1882
        %1988 = vmatprep.subr.bf16.mxu0 0
        %1989 = vmatpush1.bf16.msra.mxu0 %v1883
        %1990 = vmatprep.subr.bf16.mxu0 0
        %1991 = vmatpush1.bf16.msra.mxu0 %v1884
        %1992 = vmatprep.subr.bf16.mxu0 0
        %1993 = vmatpush1.bf16.msra.mxu0 %v1885
        %1994 = vmatprep.subr.bf16.mxu0 0
        %1995 = vmatpush1.bf16.msra.mxu0 %v1886
        %1996 = vmatprep.subr.bf16.mxu0 0
        %1997 = vmatpush1.bf16.msra.mxu0 %v1887
        %1998 = vmatprep.subr.bf16.mxu0 0
        %1999 = vmatpush1.bf16.msra.mxu0 %v1888
        %2000 = vmatprep.subr.bf16.mxu0 0
        %2001 = vmatpush1.bf16.msra.mxu0 %v1889
        %2002 = vmatprep.mubr.bf16.mxu0 %v1939
        %2003 = vmatmul.mubr.bf16.gmra.mrb[0].mxu0 %v1938
        %v2004 = vpop.f32.mrb[0].mxu0
        %v2005 = vadd.f32 0.0, %v2004
        %v2006 = vpop.f32.mrb[0].mxu0
        %v2007 = vpop.f32.mrb[0].mxu0
        %v2008 = vadd.f32 0.0, %v2007
        %v2009 = vpop.f32.mrb[0].mxu0
        %2010 = vmatprep.mubr.bf16.mxu0 %v1941
        %2011 = vmatmul.mubr.bf16.gmra.mrb[0].mxu0 %v1940
        %v2012 = vpop.f32.mrb[0].mxu0
        %v2013 = vadd.f32 0.0, %v2012
        %v2014 = vpop.f32.mrb[0].mxu0
        %v2015 = vpop.f32.mrb[0].mxu0
        %v2016 = vadd.f32 0.0, %v2015
        %v2017 = vpop.f32.mrb[0].mxu0
        %2018 = vmatprep.mubr.bf16.mxu0 %v1943
        %2019 = vmatmul.mubr.bf16.gmra.mrb[0].mxu0 %v1942
        %v2020 = vpop.f32.mrb[0].mxu0
        %v2021 = vadd.f32 0.0, %v2020
        %v2022 = vpop.f32.mrb[0].mxu0
        %v2023 = vpop.f32.mrb[0].mxu0
        %v2024 = vadd.f32 0.0, %v2023
        %v2025 = vpop.f32.mrb[0].mxu0
        %2026 = vmatprep.mubr.bf16.mxu0 %v1945
        %2027 = vmatmul.mubr.bf16.gmra.mrb[0].mxu0 %v1944
        %v2028 = vpop.f32.mrb[0].mxu0
        %v2029 = vadd.f32 0.0, %v2028
        %v2030 = vpop.f32.mrb[0].mxu0
        %v2031 = vpop.f32.mrb[0].mxu0
        %v2032 = vadd.f32 0.0, %v2031
        %v2033 = vpop.f32.mrb[0].mxu0
        %2034 = vmatprep.mubr.bf16.mxu0 %v1947
        %2035 = vmatmul.mubr.bf16.gmra.mrb[0].mxu0 %v1946
        %v2036 = vpop.f32.mrb[0].mxu0
        %v2037 = vadd.f32 0.0, %v2036
        %v2038 = vpop.f32.mrb[0].mxu0
        %v2039 = vpop.f32.mrb[0].mxu0
        %v2040 = vadd.f32 0.0, %v2039
        %v2041 = vpop.f32.mrb[0].mxu0
        %2042 = vmatprep.mubr.bf16.mxu0 %v1949
        %2043 = vmatmul.mubr.bf16.gmra.mrb[0].mxu0 %v1948
        %v2044 = vpop.f32.mrb[0].mxu0
        %v2045 = vadd.f32 0.0, %v2044
        %v2046 = vpop.f32.mrb[0].mxu0
        %v2047 = vpop.f32.mrb[0].mxu0
        %v2048 = vadd.f32 0.0, %v2047
        %v2049 = vpop.f32.mrb[0].mxu0
        %2050 = vmatprep.mubr.bf16.mxu0 %v1951
        %2051 = vmatmul.mubr.bf16.gmra.mrb[0].mxu0 %v1950
        %v2052 = vpop.f32.mrb[0].mxu0
        %v2053 = vadd.f32 0.0, %v2052
        %v2054 = vpop.f32.mrb[0].mxu0
        %v2055 = vpop.f32.mrb[0].mxu0
        %v2056 = vadd.f32 0.0, %v2055
        %v2057 = vpop.f32.mrb[0].mxu0
        %2058 = vmatprep.mubr.bf16.mxu0 %v1953
        %2059 = vmatmul.mubr.bf16.gmra.mrb[0].mxu0 %v1952
        %v2060 = vpop.f32.mrb[0].mxu0
        %v2061 = vadd.f32 0.0, %v2060
        %v2062 = vpop.f32.mrb[0].mxu0
        %v2063 = vpop.f32.mrb[0].mxu0
        %v2064 = vadd.f32 0.0, %v2063
        %v2065 = vpop.f32.mrb[0].mxu0
        %2066 = vdwg.mxu0
        %v2067 = vlaneseq
        %v2068 = vshrl.u32 %v2067, 7
        %v2069 = vsub.s32 0, %v2068
        %v2070 = vrot.slane %v542, %v2069
        %v2071 = vmul.f32 %v545, %v2070
        %v2072 = vmul.f32 %v546, %v2070
        %v2073 = vmul.f32 %v547, %v2070
        %v2074 = vmul.f32 %v548, %v2070
        %v2075 = vmul.f32 %v549, %v2070
        %v2076 = vmul.f32 %v550, %v2070
        %v2077 = vmul.f32 %v551, %v2070
        %v2078 = vmul.f32 %v552, %v2070
        %v2079 = vmul.f32 %v553, %v2070
        %v2080 = vmul.f32 %v554, %v2070
        %v2081 = vmul.f32 %v555, %v2070
        %v2082 = vmul.f32 %v556, %v2070
        %v2083 = vmul.f32 %v557, %v2070
        %v2084 = vmul.f32 %v558, %v2070
        %v2085 = vmul.f32 %v559, %v2070
        %v2086 = vmul.f32 %v560, %v2070
        %2087 = vadd.xlane.f32.xlu0 %v2071
        %v2088 = vpop.xlane.xlu0 %2087
        %2089 = vadd.xlane.f32.xlu0 %v2072
        %v2090 = vpop.xlane.xlu0 %2089
        %2091 = vadd.xlane.f32.xlu0 %v2073
        %v2092 = vpop.xlane.xlu0 %2091
        %2093 = vadd.xlane.f32.xlu0 %v2074
        %v2094 = vpop.xlane.xlu0 %2093
        %2095 = vadd.xlane.f32.xlu0 %v2075
        %v2096 = vpop.xlane.xlu0 %2095
        %2097 = vadd.xlane.f32.xlu0 %v2076
        %v2098 = vpop.xlane.xlu0 %2097
        %2099 = vadd.xlane.f32.xlu0 %v2077
        %v2100 = vpop.xlane.xlu0 %2099
        %2101 = vadd.xlane.f32.xlu0 %v2078
        %v2102 = vpop.xlane.xlu0 %2101
        %2103 = vadd.xlane.f32.xlu0 %v2079
        %v2104 = vpop.xlane.xlu0 %2103
        %2105 = vadd.xlane.f32.xlu0 %v2080
        %v2106 = vpop.xlane.xlu0 %2105
        %2107 = vadd.xlane.f32.xlu0 %v2081
        %v2108 = vpop.xlane.xlu0 %2107
        %2109 = vadd.xlane.f32.xlu0 %v2082
        %v2110 = vpop.xlane.xlu0 %2109
        %2111 = vadd.xlane.f32.xlu0 %v2083
        %v2112 = vpop.xlane.xlu0 %2111
        %2113 = vadd.xlane.f32.xlu0 %v2084
        %v2114 = vpop.xlane.xlu0 %2113
        %2115 = vadd.xlane.f32.xlu0 %v2085
        %v2116 = vpop.xlane.xlu0 %2115
        %2117 = vadd.xlane.f32.xlu0 %v2086
        %v2118 = vpop.xlane.xlu0 %2117
        %v2119 = vlaneseq
        %v2120 = vshrl.u32 %v2119, 7
        %v2121 = vsub.s32 0, %v2120
        %v2122 = vrot.slane %v541, %v2121
        %v2123 = vmul.f32 %v1001, %v2122
        %v2124 = vmul.f32 %v1004, %v2122
        %v2125 = vmul.f32 %v1009, %v2122
        %v2126 = vmul.f32 %v1012, %v2122
        %v2127 = vmul.f32 %v1017, %v2122
        %v2128 = vmul.f32 %v1020, %v2122
        %v2129 = vmul.f32 %v1025, %v2122
        %v2130 = vmul.f32 %v1028, %v2122
        %v2131 = vmul.f32 %v1033, %v2122
        %v2132 = vmul.f32 %v1036, %v2122
        %v2133 = vmul.f32 %v1041, %v2122
        %v2134 = vmul.f32 %v1044, %v2122
        %v2135 = vmul.f32 %v1049, %v2122
        %v2136 = vmul.f32 %v1052, %v2122
        %v2137 = vmul.f32 %v1057, %v2122
        %v2138 = vmul.f32 %v1060, %v2122
        %2139 = vadd.xlane.f32.xlu0 %v2123
        %v2140 = vpop.xlane.xlu0 %2139
        %2141 = vadd.xlane.f32.xlu0 %v2124
        %v2142 = vpop.xlane.xlu0 %2141
        %2143 = vadd.xlane.f32.xlu0 %v2125
        %v2144 = vpop.xlane.xlu0 %2143
        %2145 = vadd.xlane.f32.xlu0 %v2126
        %v2146 = vpop.xlane.xlu0 %2145
        %2147 = vadd.xlane.f32.xlu0 %v2127
        %v2148 = vpop.xlane.xlu0 %2147
        %2149 = vadd.xlane.f32.xlu0 %v2128
        %v2150 = vpop.xlane.xlu0 %2149
        %2151 = vadd.xlane.f32.xlu0 %v2129
        %v2152 = vpop.xlane.xlu0 %2151
        %2153 = vadd.xlane.f32.xlu0 %v2130
        %v2154 = vpop.xlane.xlu0 %2153
        %2155 = vadd.xlane.f32.xlu0 %v2131
        %v2156 = vpop.xlane.xlu0 %2155
        %2157 = vadd.xlane.f32.xlu0 %v2132
        %v2158 = vpop.xlane.xlu0 %2157
        %2159 = vadd.xlane.f32.xlu0 %v2133
        %v2160 = vpop.xlane.xlu0 %2159
        %2161 = vadd.xlane.f32.xlu0 %v2134
        %v2162 = vpop.xlane.xlu0 %2161
        %2163 = vadd.xlane.f32.xlu0 %v2135
        %v2164 = vpop.xlane.xlu0 %2163
        %2165 = vadd.xlane.f32.xlu0 %v2136
        %v2166 = vpop.xlane.xlu0 %2165
        %2167 = vadd.xlane.f32.xlu0 %v2137
        %v2168 = vpop.xlane.xlu0 %2167
        %2169 = vadd.xlane.f32.xlu0 %v2138
        %v2170 = vpop.xlane.xlu0 %2169
        %v2171 = vadd.f32 %v2140, %v2088
        %v2172 = vadd.f32 %v2142, %v2090
        %v2173 = vadd.f32 %v2144, %v2092
        %v2174 = vadd.f32 %v2146, %v2094
        %v2175 = vadd.f32 %v2148, %v2096
        %v2176 = vadd.f32 %v2150, %v2098
        %v2177 = vadd.f32 %v2152, %v2100
        %v2178 = vadd.f32 %v2154, %v2102
        %v2179 = vadd.f32 %v2156, %v2104
        %v2180 = vadd.f32 %v2158, %v2106
        %v2181 = vadd.f32 %v2160, %v2108
        %v2182 = vadd.f32 %v2162, %v2110
        %v2183 = vadd.f32 %v2164, %v2112
        %v2184 = vadd.f32 %v2166, %v2114
        %v2185 = vadd.f32 %v2168, %v2116
        %v2186 = vadd.f32 %v2170, %v2118
        %vm2187 = vcmp.ge.f32.partialorder %v2171, 0.0
        %vm2188 = vcmp.ge.f32.partialorder %v2172, 0.0
        %vm2189 = vcmp.ge.f32.partialorder %v2173, 0.0
        %vm2190 = vcmp.ge.f32.partialorder %v2174, 0.0
        %vm2191 = vcmp.ge.f32.partialorder %v2175, 0.0
        %vm2192 = vcmp.ge.f32.partialorder %v2176, 0.0
        %vm2193 = vcmp.ge.f32.partialorder %v2177, 0.0
        %vm2194 = vcmp.ge.f32.partialorder %v2178, 0.0
        %vm2195 = vcmp.ge.f32.partialorder %v2179, 0.0
        %vm2196 = vcmp.ge.f32.partialorder %v2180, 0.0
        %vm2197 = vcmp.ge.f32.partialorder %v2181, 0.0
        %vm2198 = vcmp.ge.f32.partialorder %v2182, 0.0
        %vm2199 = vcmp.ge.f32.partialorder %v2183, 0.0
        %vm2200 = vcmp.ge.f32.partialorder %v2184, 0.0
        %vm2201 = vcmp.ge.f32.partialorder %v2185, 0.0
        %vm2202 = vcmp.ge.f32.partialorder %v2186, 0.0
        %v2203 = vmul.f32 %v2171, 0.01
        %v2204 = vmul.f32 %v2172, 0.01
        %v2205 = vmul.f32 %v2173, 0.01
        %v2206 = vmul.f32 %v2174, 0.01
        %v2207 = vmul.f32 %v2175, 0.01
        %v2208 = vmul.f32 %v2176, 0.01
        %v2209 = vmul.f32 %v2177, 0.01
        %v2210 = vmul.f32 %v2178, 0.01
        %v2211 = vmul.f32 %v2179, 0.01
        %v2212 = vmul.f32 %v2180, 0.01
        %v2213 = vmul.f32 %v2181, 0.01
        %v2214 = vmul.f32 %v2182, 0.01
        %v2215 = vmul.f32 %v2183, 0.01
        %v2216 = vmul.f32 %v2184, 0.01
        %v2217 = vmul.f32 %v2185, 0.01
        %v2218 = vmul.f32 %v2186, 0.01
        %v2219 = vsel %vm2187, %v2171, %v2203
        %v2220 = vsel %vm2188, %v2172, %v2204
        %v2221 = vsel %vm2189, %v2173, %v2205
        %v2222 = vsel %vm2190, %v2174, %v2206
        %v2223 = vsel %vm2191, %v2175, %v2207
        %v2224 = vsel %vm2192, %v2176, %v2208
        %v2225 = vsel %vm2193, %v2177, %v2209
        %v2226 = vsel %vm2194, %v2178, %v2210
        %v2227 = vsel %vm2195, %v2179, %v2211
        %v2228 = vsel %vm2196, %v2180, %v2212
        %v2229 = vsel %vm2197, %v2181, %v2213
        %v2230 = vsel %vm2198, %v2182, %v2214
        %v2231 = vsel %vm2199, %v2183, %v2215
        %v2232 = vsel %vm2200, %v2184, %v2216
        %v2233 = vsel %vm2201, %v2185, %v2217
        %v2234 = vsel %vm2202, %v2186, %v2218
        %v2235 = vmul.f32 %v1503, %v2122
        %v2236 = vmul.f32 %v1506, %v2122
        %v2237 = vmul.f32 %v1511, %v2122
        %v2238 = vmul.f32 %v1514, %v2122
        %v2239 = vmul.f32 %v1519, %v2122
        %v2240 = vmul.f32 %v1522, %v2122
        %v2241 = vmul.f32 %v1527, %v2122
        %v2242 = vmul.f32 %v1530, %v2122
        %v2243 = vmul.f32 %v1535, %v2122
        %v2244 = vmul.f32 %v1538, %v2122
        %v2245 = vmul.f32 %v1543, %v2122
        %v2246 = vmul.f32 %v1546, %v2122
        %v2247 = vmul.f32 %v1551, %v2122
        %v2248 = vmul.f32 %v1554, %v2122
        %v2249 = vmul.f32 %v1559, %v2122
        %v2250 = vmul.f32 %v1562, %v2122
        %2251 = vadd.xlane.f32.xlu0 %v2235
        %v2252 = vpop.xlane.xlu0 %2251
        %2253 = vadd.xlane.f32.xlu0 %v2236
        %v2254 = vpop.xlane.xlu0 %2253
        %2255 = vadd.xlane.f32.xlu0 %v2237
        %v2256 = vpop.xlane.xlu0 %2255
        %2257 = vadd.xlane.f32.xlu0 %v2238
        %v2258 = vpop.xlane.xlu0 %2257
        %2259 = vadd.xlane.f32.xlu0 %v2239
        %v2260 = vpop.xlane.xlu0 %2259
        %2261 = vadd.xlane.f32.xlu0 %v2240
        %v2262 = vpop.xlane.xlu0 %2261
        %2263 = vadd.xlane.f32.xlu0 %v2241
        %v2264 = vpop.xlane.xlu0 %2263
        %2265 = vadd.xlane.f32.xlu0 %v2242
        %v2266 = vpop.xlane.xlu0 %2265
        %2267 = vadd.xlane.f32.xlu0 %v2243
        %v2268 = vpop.xlane.xlu0 %2267
        %2269 = vadd.xlane.f32.xlu0 %v2244
        %v2270 = vpop.xlane.xlu0 %2269
        %2271 = vadd.xlane.f32.xlu0 %v2245
        %v2272 = vpop.xlane.xlu0 %2271
        %2273 = vadd.xlane.f32.xlu0 %v2246
        %v2274 = vpop.xlane.xlu0 %2273
        %2275 = vadd.xlane.f32.xlu0 %v2247
        %v2276 = vpop.xlane.xlu0 %2275
        %2277 = vadd.xlane.f32.xlu0 %v2248
        %v2278 = vpop.xlane.xlu0 %2277
        %2279 = vadd.xlane.f32.xlu0 %v2249
        %v2280 = vpop.xlane.xlu0 %2279
        %2281 = vadd.xlane.f32.xlu0 %v2250
        %v2282 = vpop.xlane.xlu0 %2281
        %v2283 = vadd.f32 %v2252, %v2088
        %v2284 = vadd.f32 %v2254, %v2090
        %v2285 = vadd.f32 %v2256, %v2092
        %v2286 = vadd.f32 %v2258, %v2094
        %v2287 = vadd.f32 %v2260, %v2096
        %v2288 = vadd.f32 %v2262, %v2098
        %v2289 = vadd.f32 %v2264, %v2100
        %v2290 = vadd.f32 %v2266, %v2102
        %v2291 = vadd.f32 %v2268, %v2104
        %v2292 = vadd.f32 %v2270, %v2106
        %v2293 = vadd.f32 %v2272, %v2108
        %v2294 = vadd.f32 %v2274, %v2110
        %v2295 = vadd.f32 %v2276, %v2112
        %v2296 = vadd.f32 %v2278, %v2114
        %v2297 = vadd.f32 %v2280, %v2116
        %v2298 = vadd.f32 %v2282, %v2118
        %vm2299 = vcmp.ge.f32.partialorder %v2283, 0.0
        %vm2300 = vcmp.ge.f32.partialorder %v2284, 0.0
        %vm2301 = vcmp.ge.f32.partialorder %v2285, 0.0
        %vm2302 = vcmp.ge.f32.partialorder %v2286, 0.0
        %vm2303 = vcmp.ge.f32.partialorder %v2287, 0.0
        %vm2304 = vcmp.ge.f32.partialorder %v2288, 0.0
        %vm2305 = vcmp.ge.f32.partialorder %v2289, 0.0
        %vm2306 = vcmp.ge.f32.partialorder %v2290, 0.0
        %vm2307 = vcmp.ge.f32.partialorder %v2291, 0.0
        %vm2308 = vcmp.ge.f32.partialorder %v2292, 0.0
        %vm2309 = vcmp.ge.f32.partialorder %v2293, 0.0
        %vm2310 = vcmp.ge.f32.partialorder %v2294, 0.0
        %vm2311 = vcmp.ge.f32.partialorder %v2295, 0.0
        %vm2312 = vcmp.ge.f32.partialorder %v2296, 0.0
        %vm2313 = vcmp.ge.f32.partialorder %v2297, 0.0
        %vm2314 = vcmp.ge.f32.partialorder %v2298, 0.0
        %v2315 = vmul.f32 %v2283, 0.01
        %v2316 = vmul.f32 %v2284, 0.01
        %v2317 = vmul.f32 %v2285, 0.01
        %v2318 = vmul.f32 %v2286, 0.01
        %v2319 = vmul.f32 %v2287, 0.01
        %v2320 = vmul.f32 %v2288, 0.01
        %v2321 = vmul.f32 %v2289, 0.01
        %v2322 = vmul.f32 %v2290, 0.01
        %v2323 = vmul.f32 %v2291, 0.01
        %v2324 = vmul.f32 %v2292, 0.01
        %v2325 = vmul.f32 %v2293, 0.01
        %v2326 = vmul.f32 %v2294, 0.01
        %v2327 = vmul.f32 %v2295, 0.01
        %v2328 = vmul.f32 %v2296, 0.01
        %v2329 = vmul.f32 %v2297, 0.01
        %v2330 = vmul.f32 %v2298, 0.01
        %v2331 = vsel %vm2299, %v2283, %v2315
        %v2332 = vsel %vm2300, %v2284, %v2316
        %v2333 = vsel %vm2301, %v2285, %v2317
        %v2334 = vsel %vm2302, %v2286, %v2318
        %v2335 = vsel %vm2303, %v2287, %v2319
        %v2336 = vsel %vm2304, %v2288, %v2320
        %v2337 = vsel %vm2305, %v2289, %v2321
        %v2338 = vsel %vm2306, %v2290, %v2322
        %v2339 = vsel %vm2307, %v2291, %v2323
        %v2340 = vsel %vm2308, %v2292, %v2324
        %v2341 = vsel %vm2309, %v2293, %v2325
        %v2342 = vsel %vm2310, %v2294, %v2326
        %v2343 = vsel %vm2311, %v2295, %v2327
        %v2344 = vsel %vm2312, %v2296, %v2328
        %v2345 = vsel %vm2313, %v2297, %v2329
        %v2346 = vsel %vm2314, %v2298, %v2330
        %v2347 = vmul.f32 %v2005, %v2122
        %v2348 = vmul.f32 %v2008, %v2122
        %v2349 = vmul.f32 %v2013, %v2122
        %v2350 = vmul.f32 %v2016, %v2122
        %v2351 = vmul.f32 %v2021, %v2122
        %v2352 = vmul.f32 %v2024, %v2122
        %v2353 = vmul.f32 %v2029, %v2122
        %v2354 = vmul.f32 %v2032, %v2122
        %v2355 = vmul.f32 %v2037, %v2122
        %v2356 = vmul.f32 %v2040, %v2122
        %v2357 = vmul.f32 %v2045, %v2122
        %v2358 = vmul.f32 %v2048, %v2122
        %v2359 = vmul.f32 %v2053, %v2122
        %v2360 = vmul.f32 %v2056, %v2122
        %v2361 = vmul.f32 %v2061, %v2122
        %v2362 = vmul.f32 %v2064, %v2122
        %2363 = vadd.xlane.f32.xlu0 %v2347
        %v2364 = vpop.xlane.xlu0 %2363
        %2365 = vadd.xlane.f32.xlu0 %v2348
        %v2366 = vpop.xlane.xlu0 %2365
        %2367 = vadd.xlane.f32.xlu0 %v2349
        %v2368 = vpop.xlane.xlu0 %2367
        %2369 = vadd.xlane.f32.xlu0 %v2350
        %v2370 = vpop.xlane.xlu0 %2369
        %2371 = vadd.xlane.f32.xlu0 %v2351
        %v2372 = vpop.xlane.xlu0 %2371
        %2373 = vadd.xlane.f32.xlu0 %v2352
        %v2374 = vpop.xlane.xlu0 %2373
        %2375 = vadd.xlane.f32.xlu0 %v2353
        %v2376 = vpop.xlane.xlu0 %2375
        %2377 = vadd.xlane.f32.xlu0 %v2354
        %v2378 = vpop.xlane.xlu0 %2377
        %2379 = vadd.xlane.f32.xlu0 %v2355
        %v2380 = vpop.xlane.xlu0 %2379
        %2381 = vadd.xlane.f32.xlu0 %v2356
        %v2382 = vpop.xlane.xlu0 %2381
        %2383 = vadd.xlane.f32.xlu0 %v2357
        %v2384 = vpop.xlane.xlu0 %2383
        %2385 = vadd.xlane.f32.xlu0 %v2358
        %v2386 = vpop.xlane.xlu0 %2385
        %2387 = vadd.xlane.f32.xlu0 %v2359
        %v2388 = vpop.xlane.xlu0 %2387
        %2389 = vadd.xlane.f32.xlu0 %v2360
        %v2390 = vpop.xlane.xlu0 %2389
        %2391 = vadd.xlane.f32.xlu0 %v2361
        %v2392 = vpop.xlane.xlu0 %2391
        %2393 = vadd.xlane.f32.xlu0 %v2362
        %v2394 = vpop.xlane.xlu0 %2393
        %v2395 = vadd.f32 %v2364, %v2088
        %v2396 = vadd.f32 %v2366, %v2090
        %v2397 = vadd.f32 %v2368, %v2092
        %v2398 = vadd.f32 %v2370, %v2094
        %v2399 = vadd.f32 %v2372, %v2096
        %v2400 = vadd.f32 %v2374, %v2098
        %v2401 = vadd.f32 %v2376, %v2100
        %v2402 = vadd.f32 %v2378, %v2102
        %v2403 = vadd.f32 %v2380, %v2104
        %v2404 = vadd.f32 %v2382, %v2106
        %v2405 = vadd.f32 %v2384, %v2108
        %v2406 = vadd.f32 %v2386, %v2110
        %v2407 = vadd.f32 %v2388, %v2112
        %v2408 = vadd.f32 %v2390, %v2114
        %v2409 = vadd.f32 %v2392, %v2116
        %v2410 = vadd.f32 %v2394, %v2118
        %vm2411 = vcmp.ge.f32.partialorder %v2395, 0.0
        %vm2412 = vcmp.ge.f32.partialorder %v2396, 0.0
        %vm2413 = vcmp.ge.f32.partialorder %v2397, 0.0
        %vm2414 = vcmp.ge.f32.partialorder %v2398, 0.0
        %vm2415 = vcmp.ge.f32.partialorder %v2399, 0.0
        %vm2416 = vcmp.ge.f32.partialorder %v2400, 0.0
        %vm2417 = vcmp.ge.f32.partialorder %v2401, 0.0
        %vm2418 = vcmp.ge.f32.partialorder %v2402, 0.0
        %vm2419 = vcmp.ge.f32.partialorder %v2403, 0.0
        %vm2420 = vcmp.ge.f32.partialorder %v2404, 0.0
        %vm2421 = vcmp.ge.f32.partialorder %v2405, 0.0
        %vm2422 = vcmp.ge.f32.partialorder %v2406, 0.0
        %vm2423 = vcmp.ge.f32.partialorder %v2407, 0.0
        %vm2424 = vcmp.ge.f32.partialorder %v2408, 0.0
        %vm2425 = vcmp.ge.f32.partialorder %v2409, 0.0
        %vm2426 = vcmp.ge.f32.partialorder %v2410, 0.0
        %v2427 = vmul.f32 %v2395, 0.01
        %v2428 = vmul.f32 %v2396, 0.01
        %v2429 = vmul.f32 %v2397, 0.01
        %v2430 = vmul.f32 %v2398, 0.01
        %v2431 = vmul.f32 %v2399, 0.01
        %v2432 = vmul.f32 %v2400, 0.01
        %v2433 = vmul.f32 %v2401, 0.01
        %v2434 = vmul.f32 %v2402, 0.01
        %v2435 = vmul.f32 %v2403, 0.01
        %v2436 = vmul.f32 %v2404, 0.01
        %v2437 = vmul.f32 %v2405, 0.01
        %v2438 = vmul.f32 %v2406, 0.01
        %v2439 = vmul.f32 %v2407, 0.01
        %v2440 = vmul.f32 %v2408, 0.01
        %v2441 = vmul.f32 %v2409, 0.01
        %v2442 = vmul.f32 %v2410, 0.01
        %v2443 = vsel %vm2411, %v2395, %v2427
        %v2444 = vsel %vm2412, %v2396, %v2428
        %v2445 = vsel %vm2413, %v2397, %v2429
        %v2446 = vsel %vm2414, %v2398, %v2430
        %v2447 = vsel %vm2415, %v2399, %v2431
        %v2448 = vsel %vm2416, %v2400, %v2432
        %v2449 = vsel %vm2417, %v2401, %v2433
        %v2450 = vsel %vm2418, %v2402, %v2434
        %v2451 = vsel %vm2419, %v2403, %v2435
        %v2452 = vsel %vm2420, %v2404, %v2436
        %v2453 = vsel %vm2421, %v2405, %v2437
        %v2454 = vsel %vm2422, %v2406, %v2438
        %v2455 = vsel %vm2423, %v2407, %v2439
        %v2456 = vsel %vm2424, %v2408, %v2440
        %v2457 = vsel %vm2425, %v2409, %v2441
        %v2458 = vsel %vm2426, %v2410, %v2442
        %v2459 = vmax.f32 %v2331, %v2443
        %v2460 = vmax.f32 %v2332, %v2444
        %v2461 = vmax.f32 %v2333, %v2445
        %v2462 = vmax.f32 %v2334, %v2446
        %v2463 = vmax.f32 %v2335, %v2447
        %v2464 = vmax.f32 %v2336, %v2448
        %v2465 = vmax.f32 %v2337, %v2449
        %v2466 = vmax.f32 %v2338, %v2450
        %v2467 = vmax.f32 %v2339, %v2451
        %v2468 = vmax.f32 %v2340, %v2452
        %v2469 = vmax.f32 %v2341, %v2453
        %v2470 = vmax.f32 %v2342, %v2454
        %v2471 = vmax.f32 %v2343, %v2455
        %v2472 = vmax.f32 %v2344, %v2456
        %v2473 = vmax.f32 %v2345, %v2457
        %v2474 = vmax.f32 %v2346, %v2458
        %v2475 = vmax.f32 %v2219, %v2459
        %v2476 = vmax.f32 %v2220, %v2460
        %v2477 = vmax.f32 %v2221, %v2461
        %v2478 = vmax.f32 %v2222, %v2462
        %v2479 = vmax.f32 %v2223, %v2463
        %v2480 = vmax.f32 %v2224, %v2464
        %v2481 = vmax.f32 %v2225, %v2465
        %v2482 = vmax.f32 %v2226, %v2466
        %v2483 = vmax.f32 %v2227, %v2467
        %v2484 = vmax.f32 %v2228, %v2468
        %v2485 = vmax.f32 %v2229, %v2469
        %v2486 = vmax.f32 %v2230, %v2470
        %v2487 = vmax.f32 %v2231, %v2471
        %v2488 = vmax.f32 %v2232, %v2472
        %v2489 = vmax.f32 %v2233, %v2473
        %v2490 = vmax.f32 %v2234, %v2474
        %v2491 = vsub.f32 %v2219, %v2475
        %v2492 = vsub.f32 %v2220, %v2476
        %v2493 = vsub.f32 %v2221, %v2477
        %v2494 = vsub.f32 %v2222, %v2478
        %v2495 = vsub.f32 %v2223, %v2479
        %v2496 = vsub.f32 %v2224, %v2480
        %v2497 = vsub.f32 %v2225, %v2481
        %v2498 = vsub.f32 %v2226, %v2482
        %v2499 = vsub.f32 %v2227, %v2483
        %v2500 = vsub.f32 %v2228, %v2484
        %v2501 = vsub.f32 %v2229, %v2485
        %v2502 = vsub.f32 %v2230, %v2486
        %v2503 = vsub.f32 %v2231, %v2487
        %v2504 = vsub.f32 %v2232, %v2488
        %v2505 = vsub.f32 %v2233, %v2489
        %v2506 = vsub.f32 %v2234, %v2490
        %v2507 = vmul.f32 %v2491, 1.442695
        %v2508 = vpow.pop %v2507
        %v2509 = vmul.f32 %v2492, 1.442695
        %v2510 = vpow.pop %v2509
        %v2511 = vmul.f32 %v2493, 1.442695
        %v2512 = vpow.pop %v2511
        %v2513 = vmul.f32 %v2494, 1.442695
        %v2514 = vpow.pop %v2513
        %v2515 = vmul.f32 %v2495, 1.442695
        %v2516 = vpow.pop %v2515
        %v2517 = vmul.f32 %v2496, 1.442695
        %v2518 = vpow.pop %v2517
        %v2519 = vmul.f32 %v2497, 1.442695
        %v2520 = vpow.pop %v2519
        %v2521 = vmul.f32 %v2498, 1.442695
        %v2522 = vpow.pop %v2521
        %v2523 = vmul.f32 %v2499, 1.442695
        %v2524 = vpow.pop %v2523
        %v2525 = vmul.f32 %v2500, 1.442695
        %v2526 = vpow.pop %v2525
        %v2527 = vmul.f32 %v2501, 1.442695
        %v2528 = vpow.pop %v2527
        %v2529 = vmul.f32 %v2502, 1.442695
        %v2530 = vpow.pop %v2529
        %v2531 = vmul.f32 %v2503, 1.442695
        %v2532 = vpow.pop %v2531
        %v2533 = vmul.f32 %v2504, 1.442695
        %v2534 = vpow.pop %v2533
        %v2535 = vmul.f32 %v2505, 1.442695
        %v2536 = vpow.pop %v2535
        %v2537 = vmul.f32 %v2506, 1.442695
        %v2538 = vpow.pop %v2537
        %v2539 = vsub.f32 %v2331, %v2475
        %v2540 = vsub.f32 %v2332, %v2476
        %v2541 = vsub.f32 %v2333, %v2477
        %v2542 = vsub.f32 %v2334, %v2478
        %v2543 = vsub.f32 %v2335, %v2479
        %v2544 = vsub.f32 %v2336, %v2480
        %v2545 = vsub.f32 %v2337, %v2481
        %v2546 = vsub.f32 %v2338, %v2482
        %v2547 = vsub.f32 %v2339, %v2483
        %v2548 = vsub.f32 %v2340, %v2484
        %v2549 = vsub.f32 %v2341, %v2485
        %v2550 = vsub.f32 %v2342, %v2486
        %v2551 = vsub.f32 %v2343, %v2487
        %v2552 = vsub.f32 %v2344, %v2488
        %v2553 = vsub.f32 %v2345, %v2489
        %v2554 = vsub.f32 %v2346, %v2490
        %v2555 = vmul.f32 %v2539, 1.442695
        %v2556 = vpow.pop %v2555
        %v2557 = vmul.f32 %v2540, 1.442695
        %v2558 = vpow.pop %v2557
        %v2559 = vmul.f32 %v2541, 1.442695
        %v2560 = vpow.pop %v2559
        %v2561 = vmul.f32 %v2542, 1.442695
        %v2562 = vpow.pop %v2561
        %v2563 = vmul.f32 %v2543, 1.442695
        %v2564 = vpow.pop %v2563
        %v2565 = vmul.f32 %v2544, 1.442695
        %v2566 = vpow.pop %v2565
        %v2567 = vmul.f32 %v2545, 1.442695
        %v2568 = vpow.pop %v2567
        %v2569 = vmul.f32 %v2546, 1.442695
        %v2570 = vpow.pop %v2569
        %v2571 = vmul.f32 %v2547, 1.442695
        %v2572 = vpow.pop %v2571
        %v2573 = vmul.f32 %v2548, 1.442695
        %v2574 = vpow.pop %v2573
        %v2575 = vmul.f32 %v2549, 1.442695
        %v2576 = vpow.pop %v2575
        %v2577 = vmul.f32 %v2550, 1.442695
        %v2578 = vpow.pop %v2577
        %v2579 = vmul.f32 %v2551, 1.442695
        %v2580 = vpow.pop %v2579
        %v2581 = vmul.f32 %v2552, 1.442695
        %v2582 = vpow.pop %v2581
        %v2583 = vmul.f32 %v2553, 1.442695
        %v2584 = vpow.pop %v2583
        %v2585 = vmul.f32 %v2554, 1.442695
        %v2586 = vpow.pop %v2585
        %v2587 = vsub.f32 %v2443, %v2475
        %v2588 = vsub.f32 %v2444, %v2476
        %v2589 = vsub.f32 %v2445, %v2477
        %v2590 = vsub.f32 %v2446, %v2478
        %v2591 = vsub.f32 %v2447, %v2479
        %v2592 = vsub.f32 %v2448, %v2480
        %v2593 = vsub.f32 %v2449, %v2481
        %v2594 = vsub.f32 %v2450, %v2482
        %v2595 = vsub.f32 %v2451, %v2483
        %v2596 = vsub.f32 %v2452, %v2484
        %v2597 = vsub.f32 %v2453, %v2485
        %v2598 = vsub.f32 %v2454, %v2486
        %v2599 = vsub.f32 %v2455, %v2487
        %v2600 = vsub.f32 %v2456, %v2488
        %v2601 = vsub.f32 %v2457, %v2489
        %v2602 = vsub.f32 %v2458, %v2490
        %v2603 = vmul.f32 %v2587, 1.442695
        %v2604 = vpow.pop %v2603
        %v2605 = vmul.f32 %v2588, 1.442695
        %v2606 = vpow.pop %v2605
        %v2607 = vmul.f32 %v2589, 1.442695
        %v2608 = vpow.pop %v2607
        %v2609 = vmul.f32 %v2590, 1.442695
        %v2610 = vpow.pop %v2609
        %v2611 = vmul.f32 %v2591, 1.442695
        %v2612 = vpow.pop %v2611
        %v2613 = vmul.f32 %v2592, 1.442695
        %v2614 = vpow.pop %v2613
        %v2615 = vmul.f32 %v2593, 1.442695
        %v2616 = vpow.pop %v2615
        %v2617 = vmul.f32 %v2594, 1.442695
        %v2618 = vpow.pop %v2617
        %v2619 = vmul.f32 %v2595, 1.442695
        %v2620 = vpow.pop %v2619
        %v2621 = vmul.f32 %v2596, 1.442695
        %v2622 = vpow.pop %v2621
        %v2623 = vmul.f32 %v2597, 1.442695
        %v2624 = vpow.pop %v2623
        %v2625 = vmul.f32 %v2598, 1.442695
        %v2626 = vpow.pop %v2625
        %v2627 = vmul.f32 %v2599, 1.442695
        %v2628 = vpow.pop %v2627
        %v2629 = vmul.f32 %v2600, 1.442695
        %v2630 = vpow.pop %v2629
        %v2631 = vmul.f32 %v2601, 1.442695
        %v2632 = vpow.pop %v2631
        %v2633 = vmul.f32 %v2602, 1.442695
        %v2634 = vpow.pop %v2633
        %v2635 = vadd.f32 %v2508, %v2556
        %v2636 = vadd.f32 %v2510, %v2558
        %v2637 = vadd.f32 %v2512, %v2560
        %v2638 = vadd.f32 %v2514, %v2562
        %v2639 = vadd.f32 %v2516, %v2564
        %v2640 = vadd.f32 %v2518, %v2566
        %v2641 = vadd.f32 %v2520, %v2568
        %v2642 = vadd.f32 %v2522, %v2570
        %v2643 = vadd.f32 %v2524, %v2572
        %v2644 = vadd.f32 %v2526, %v2574
        %v2645 = vadd.f32 %v2528, %v2576
        %v2646 = vadd.f32 %v2530, %v2578
        %v2647 = vadd.f32 %v2532, %v2580
        %v2648 = vadd.f32 %v2534, %v2582
        %v2649 = vadd.f32 %v2536, %v2584
        %v2650 = vadd.f32 %v2538, %v2586
        %v2651 = vadd.f32 %v2635, %v2604
        %v2652 = vadd.f32 %v2636, %v2606
        %v2653 = vadd.f32 %v2637, %v2608
        %v2654 = vadd.f32 %v2638, %v2610
        %v2655 = vadd.f32 %v2639, %v2612
        %v2656 = vadd.f32 %v2640, %v2614
        %v2657 = vadd.f32 %v2641, %v2616
        %v2658 = vadd.f32 %v2642, %v2618
        %v2659 = vadd.f32 %v2643, %v2620
        %v2660 = vadd.f32 %v2644, %v2622
        %v2661 = vadd.f32 %v2645, %v2624
        %v2662 = vadd.f32 %v2646, %v2626
        %v2663 = vadd.f32 %v2647, %v2628
        %v2664 = vadd.f32 %v2648, %v2630
        %v2665 = vadd.f32 %v2649, %v2632
        %v2666 = vadd.f32 %v2650, %v2634
        %v2667 = vrcp.pop %v2651
        %v2668 = vrcp.pop %v2652
        %v2669 = vrcp.pop %v2653
        %v2670 = vrcp.pop %v2654
        %v2671 = vrcp.pop %v2655
        %v2672 = vrcp.pop %v2656
        %v2673 = vrcp.pop %v2657
        %v2674 = vrcp.pop %v2658
        %v2675 = vrcp.pop %v2659
        %v2676 = vrcp.pop %v2660
        %v2677 = vrcp.pop %v2661
        %v2678 = vrcp.pop %v2662
        %v2679 = vrcp.pop %v2663
        %v2680 = vrcp.pop %v2664
        %v2681 = vrcp.pop %v2665
        %v2682 = vrcp.pop %v2666
        %v2683 = vmul.f32 %v2508, %v1001
        %v2684 = vmul.f32 %v2510, %v1004
        %v2685 = vmul.f32 %v2512, %v1009
        %v2686 = vmul.f32 %v2514, %v1012
        %v2687 = vmul.f32 %v2516, %v1017
        %v2688 = vmul.f32 %v2518, %v1020
        %v2689 = vmul.f32 %v2520, %v1025
        %v2690 = vmul.f32 %v2522, %v1028
        %v2691 = vmul.f32 %v2524, %v1033
        %v2692 = vmul.f32 %v2526, %v1036
        %v2693 = vmul.f32 %v2528, %v1041
        %v2694 = vmul.f32 %v2530, %v1044
        %v2695 = vmul.f32 %v2532, %v1049
        %v2696 = vmul.f32 %v2534, %v1052
        %v2697 = vmul.f32 %v2536, %v1057
        %v2698 = vmul.f32 %v2538, %v1060
        %v2699 = vmul.f32 %v2556, %v1503
        %v2700 = vmul.f32 %v2558, %v1506
        %v2701 = vmul.f32 %v2560, %v1511
        %v2702 = vmul.f32 %v2562, %v1514
        %v2703 = vmul.f32 %v2564, %v1519
        %v2704 = vmul.f32 %v2566, %v1522
        %v2705 = vmul.f32 %v2568, %v1527
        %v2706 = vmul.f32 %v2570, %v1530
        %v2707 = vmul.f32 %v2572, %v1535
        %v2708 = vmul.f32 %v2574, %v1538
        %v2709 = vmul.f32 %v2576, %v1543
        %v2710 = vmul.f32 %v2578, %v1546
        %v2711 = vmul.f32 %v2580, %v1551
        %v2712 = vmul.f32 %v2582, %v1554
        %v2713 = vmul.f32 %v2584, %v1559
        %v2714 = vmul.f32 %v2586, %v1562
        %v2715 = vadd.f32 %v2683, %v2699
        %v2716 = vadd.f32 %v2684, %v2700
        %v2717 = vadd.f32 %v2685, %v2701
        %v2718 = vadd.f32 %v2686, %v2702
        %v2719 = vadd.f32 %v2687, %v2703
        %v2720 = vadd.f32 %v2688, %v2704
        %v2721 = vadd.f32 %v2689, %v2705
        %v2722 = vadd.f32 %v2690, %v2706
        %v2723 = vadd.f32 %v2691, %v2707
        %v2724 = vadd.f32 %v2692, %v2708
        %v2725 = vadd.f32 %v2693, %v2709
        %v2726 = vadd.f32 %v2694, %v2710
        %v2727 = vadd.f32 %v2695, %v2711
        %v2728 = vadd.f32 %v2696, %v2712
        %v2729 = vadd.f32 %v2697, %v2713
        %v2730 = vadd.f32 %v2698, %v2714
        %v2731 = vmul.f32 %v2604, %v2005
        %v2732 = vmul.f32 %v2606, %v2008
        %v2733 = vmul.f32 %v2608, %v2013
        %v2734 = vmul.f32 %v2610, %v2016
        %v2735 = vmul.f32 %v2612, %v2021
        %v2736 = vmul.f32 %v2614, %v2024
        %v2737 = vmul.f32 %v2616, %v2029
        %v2738 = vmul.f32 %v2618, %v2032
        %v2739 = vmul.f32 %v2620, %v2037
        %v2740 = vmul.f32 %v2622, %v2040
        %v2741 = vmul.f32 %v2624, %v2045
        %v2742 = vmul.f32 %v2626, %v2048
        %v2743 = vmul.f32 %v2628, %v2053
        %v2744 = vmul.f32 %v2630, %v2056
        %v2745 = vmul.f32 %v2632, %v2061
        %v2746 = vmul.f32 %v2634, %v2064
        %v2747 = vadd.f32 %v2715, %v2731
        %v2748 = vadd.f32 %v2716, %v2732
        %v2749 = vadd.f32 %v2717, %v2733
        %v2750 = vadd.f32 %v2718, %v2734
        %v2751 = vadd.f32 %v2719, %v2735
        %v2752 = vadd.f32 %v2720, %v2736
        %v2753 = vadd.f32 %v2721, %v2737
        %v2754 = vadd.f32 %v2722, %v2738
        %v2755 = vadd.f32 %v2723, %v2739
        %v2756 = vadd.f32 %v2724, %v2740
        %v2757 = vadd.f32 %v2725, %v2741
        %v2758 = vadd.f32 %v2726, %v2742
        %v2759 = vadd.f32 %v2727, %v2743
        %v2760 = vadd.f32 %v2728, %v2744
        %v2761 = vadd.f32 %v2729, %v2745
        %v2762 = vadd.f32 %v2730, %v2746
        %v2763 = vmul.f32 %v2747, %v2667
        %v2764 = vmul.f32 %v2748, %v2668
        %v2765 = vmul.f32 %v2749, %v2669
        %v2766 = vmul.f32 %v2750, %v2670
        %v2767 = vmul.f32 %v2751, %v2671
        %v2768 = vmul.f32 %v2752, %v2672
        %v2769 = vmul.f32 %v2753, %v2673
        %v2770 = vmul.f32 %v2754, %v2674
        %v2771 = vmul.f32 %v2755, %v2675
        %v2772 = vmul.f32 %v2756, %v2676
        %v2773 = vmul.f32 %v2757, %v2677
        %v2774 = vmul.f32 %v2758, %v2678
        %v2775 = vmul.f32 %v2759, %v2679
        %v2776 = vmul.f32 %v2760, %v2680
        %v2777 = vmul.f32 %v2761, %v2681
        %v2778 = vmul.f32 %v2762, %v2682
        %2779 = vmatprep.subr.mxu0 0.0
        %2780 = vmatpush1.msra.mxu0 %v504
        %2781 = vmatprep.subr.mxu0 0.0
        %2782 = vmatpush1.msra.mxu0 %v505
        %2783 = vmatprep.subr.mxu0 0.0
        %2784 = vmatpush1.msra.mxu0 %v506
        %2785 = vmatprep.subr.mxu0 0.0
        %2786 = vmatpush1.msra.mxu0 %v507
        %2787 = vmatprep.subr.mxu0 0.0
        %2788 = vmatpush1.msra.mxu0 %v508
        %2789 = vmatprep.subr.mxu0 0.0
        %2790 = vmatpush1.msra.mxu0 %v509
        %2791 = vmatprep.subr.mxu0 0.0
        %2792 = vmatpush1.msra.mxu0 %v510
        %2793 = vmatprep.subr.mxu0 0.0
        %2794 = vmatpush1.msra.mxu0 %v511
        %2795 = vmatprep.subr.mxu0 0.0
        %2796 = vmatpush1.msra.mxu0 %v512
        %2797 = vmatprep.subr.mxu0 0.0
        %2798 = vmatpush1.msra.mxu0 %v513
        %2799 = vmatprep.subr.mxu0 0.0
        %2800 = vmatpush1.msra.mxu0 %v514
        %2801 = vmatprep.subr.mxu0 0.0
        %2802 = vmatpush1.msra.mxu0 %v515
        %2803 = vmatprep.subr.mxu0 0.0
        %2804 = vmatpush1.msra.mxu0 %v516
        %2805 = vmatprep.subr.mxu0 0.0
        %2806 = vmatpush1.msra.mxu0 %v517
        %2807 = vmatprep.subr.mxu0 0.0
        %2808 = vmatpush1.msra.mxu0 %v518
        %2809 = vmatprep.subr.mxu0 0.0
        %2810 = vmatpush1.msra.mxu0 %v519
        %2811 = vmatprep.subr.mxu0 0.0
        %2812 = vmatpush1.msra.mxu0 0.0
        %2813 = vmatprep.subr.mxu0 0.0
        %2814 = vmatpush1.msra.mxu0 0.0
        %2815 = vmatprep.subr.mxu0 0.0
        %2816 = vmatpush1.msra.mxu0 0.0
        %2817 = vmatprep.subr.mxu0 0.0
        %2818 = vmatpush1.msra.mxu0 0.0
        %2819 = vmatprep.subr.mxu0 0.0
        %2820 = vmatpush1.msra.mxu0 0.0
        %2821 = vmatprep.subr.mxu0 0.0
        %2822 = vmatpush1.msra.mxu0 0.0
        %2823 = vmatprep.subr.mxu0 0.0
        %2824 = vmatpush1.msra.mxu0 0.0
        %2825 = vmatprep.subr.mxu0 0.0
        %2826 = vmatpush1.msra.mxu0 0.0
        %2827 = vmatprep.subr.mxu0 0.0
        %2828 = vmatpush1.msra.mxu0 0.0
        %2829 = vmatprep.subr.mxu0 0.0
        %2830 = vmatpush1.msra.mxu0 0.0
        %2831 = vmatprep.subr.mxu0 0.0
        %2832 = vmatpush1.msra.mxu0 0.0
        %2833 = vmatprep.subr.mxu0 0.0
        %2834 = vmatpush1.msra.mxu0 0.0
        %2835 = vmatprep.subr.mxu0 0.0
        %2836 = vmatpush1.msra.mxu0 0.0
        %2837 = vmatprep.subr.mxu0 0.0
        %2838 = vmatpush1.msra.mxu0 0.0
        %2839 = vmatprep.subr.mxu0 0.0
        %2840 = vmatpush1.msra.mxu0 0.0
        %2841 = vmatprep.subr.mxu0 0.0
        %2842 = vmatpush1.msra.mxu0 0.0
        %2843 = vmatprep.mubr.f32.mxu0 0.0
        %2844 = vmatmul.mubr.f32.gmra.mrb[0].mxu0 %v2763
        %v2845 = vpop.f32.mrb[0].mxu0
        %v2846 = vadd.f32 0.0, %v2845
        %v2847 = vpop.f32.mrb[0].mxu0
        %2848 = vmatprep.mubr.f32.mxu0 0.0
        %2849 = vmatmul.mubr.f32.gmra.mrb[0].mxu0 %v2764
        %v2850 = vpop.f32.mrb[0].mxu0
        %v2851 = vadd.f32 0.0, %v2850
        %v2852 = vpop.f32.mrb[0].mxu0
        %2853 = vmatprep.mubr.f32.mxu0 0.0
        %2854 = vmatmul.mubr.f32.gmra.mrb[0].mxu0 %v2765
        %v2855 = vpop.f32.mrb[0].mxu0
        %v2856 = vadd.f32 0.0, %v2855
        %v2857 = vpop.f32.mrb[0].mxu0
        %2858 = vmatprep.mubr.f32.mxu0 0.0
        %2859 = vmatmul.mubr.f32.gmra.mrb[0].mxu0 %v2766
        %v2860 = vpop.f32.mrb[0].mxu0
        %v2861 = vadd.f32 0.0, %v2860
        %v2862 = vpop.f32.mrb[0].mxu0
        %2863 = vmatprep.mubr.f32.mxu0 0.0
        %2864 = vmatmul.mubr.f32.gmra.mrb[0].mxu0 %v2767
        %v2865 = vpop.f32.mrb[0].mxu0
        %v2866 = vadd.f32 0.0, %v2865
        %v2867 = vpop.f32.mrb[0].mxu0
        %2868 = vmatprep.mubr.f32.mxu0 0.0
        %2869 = vmatmul.mubr.f32.gmra.mrb[0].mxu0 %v2768
        %v2870 = vpop.f32.mrb[0].mxu0
        %v2871 = vadd.f32 0.0, %v2870
        %v2872 = vpop.f32.mrb[0].mxu0
        %2873 = vmatprep.mubr.f32.mxu0 0.0
        %2874 = vmatmul.mubr.f32.gmra.mrb[0].mxu0 %v2769
        %v2875 = vpop.f32.mrb[0].mxu0
        %v2876 = vadd.f32 0.0, %v2875
        %v2877 = vpop.f32.mrb[0].mxu0
        %2878 = vmatprep.mubr.f32.mxu0 0.0
        %2879 = vmatmul.mubr.f32.gmra.mrb[0].mxu0 %v2770
        %v2880 = vpop.f32.mrb[0].mxu0
        %v2881 = vadd.f32 0.0, %v2880
        %v2882 = vpop.f32.mrb[0].mxu0
        %2883 = vmatprep.mubr.f32.mxu0 0.0
        %2884 = vmatmul.mubr.f32.gmra.mrb[0].mxu0 %v2771
        %v2885 = vpop.f32.mrb[0].mxu0
        %v2886 = vadd.f32 0.0, %v2885
        %v2887 = vpop.f32.mrb[0].mxu0
        %2888 = vmatprep.mubr.f32.mxu0 0.0
        %2889 = vmatmul.mubr.f32.gmra.mrb[0].mxu0 %v2772
        %v2890 = vpop.f32.mrb[0].mxu0
        %v2891 = vadd.f32 0.0, %v2890
        %v2892 = vpop.f32.mrb[0].mxu0
        %2893 = vmatprep.mubr.f32.mxu0 0.0
        %2894 = vmatmul.mubr.f32.gmra.mrb[0].mxu0 %v2773
        %v2895 = vpop.f32.mrb[0].mxu0
        %v2896 = vadd.f32 0.0, %v2895
        %v2897 = vpop.f32.mrb[0].mxu0
        %2898 = vmatprep.mubr.f32.mxu0 0.0
        %2899 = vmatmul.mubr.f32.gmra.mrb[0].mxu0 %v2774
        %v2900 = vpop.f32.mrb[0].mxu0
        %v2901 = vadd.f32 0.0, %v2900
        %v2902 = vpop.f32.mrb[0].mxu0
        %2903 = vmatprep.mubr.f32.mxu0 0.0
        %2904 = vmatmul.mubr.f32.gmra.mrb[0].mxu0 %v2775
        %v2905 = vpop.f32.mrb[0].mxu0
        %v2906 = vadd.f32 0.0, %v2905
        %v2907 = vpop.f32.mrb[0].mxu0
        %2908 = vmatprep.mubr.f32.mxu0 0.0
        %2909 = vmatmul.mubr.f32.gmra.mrb[0].mxu0 %v2776
        %v2910 = vpop.f32.mrb[0].mxu0
        %v2911 = vadd.f32 0.0, %v2910
        %v2912 = vpop.f32.mrb[0].mxu0
        %2913 = vmatprep.mubr.f32.mxu0 0.0
        %2914 = vmatmul.mubr.f32.gmra.mrb[0].mxu0 %v2777
        %v2915 = vpop.f32.mrb[0].mxu0
        %v2916 = vadd.f32 0.0, %v2915
        %v2917 = vpop.f32.mrb[0].mxu0
        %2918 = vmatprep.mubr.f32.mxu0 0.0
        %2919 = vmatmul.mubr.f32.gmra.mrb[0].mxu0 %v2778
        %v2920 = vpop.f32.mrb[0].mxu0
        %v2921 = vadd.f32 0.0, %v2920
        %v2922 = vpop.f32.mrb[0].mxu0
        %2923 = vdwg.mxu0
        %2924 = vmatprep.subr.mxu0 0.0
        %2925 = vmatpush1.msra.mxu0 %v488
        %2926 = vmatprep.subr.mxu0 0.0
        %2927 = vmatpush1.msra.mxu0 %v489
        %2928 = vmatprep.subr.mxu0 0.0
        %2929 = vmatpush1.msra.mxu0 %v490
        %2930 = vmatprep.subr.mxu0 0.0
        %2931 = vmatpush1.msra.mxu0 %v491
        %2932 = vmatprep.subr.mxu0 0.0
        %2933 = vmatpush1.msra.mxu0 %v492
        %2934 = vmatprep.subr.mxu0 0.0
        %2935 = vmatpush1.msra.mxu0 %v493
        %2936 = vmatprep.subr.mxu0 0.0
        %2937 = vmatpush1.msra.mxu0 %v494
        %2938 = vmatprep.subr.mxu0 0.0
        %2939 = vmatpush1.msra.mxu0 %v495
        %2940 = vmatprep.subr.mxu0 0.0
        %2941 = vmatpush1.msra.mxu0 %v496
        %2942 = vmatprep.subr.mxu0 0.0
        %2943 = vmatpush1.msra.mxu0 %v497
        %2944 = vmatprep.subr.mxu0 0.0
        %2945 = vmatpush1.msra.mxu0 %v498
        %2946 = vmatprep.subr.mxu0 0.0
        %2947 = vmatpush1.msra.mxu0 %v499
        %2948 = vmatprep.subr.mxu0 0.0
        %2949 = vmatpush1.msra.mxu0 %v500
        %2950 = vmatprep.subr.mxu0 0.0
        %2951 = vmatpush1.msra.mxu0 %v501
        %2952 = vmatprep.subr.mxu0 0.0
        %2953 = vmatpush1.msra.mxu0 %v502
        %2954 = vmatprep.subr.mxu0 0.0
        %2955 = vmatpush1.msra.mxu0 %v503
        %2956 = vmatprep.subr.mxu0 0.0
        %2957 = vmatpush1.msra.mxu0 0.0
        %2958 = vmatprep.subr.mxu0 0.0
        %2959 = vmatpush1.msra.mxu0 0.0
        %2960 = vmatprep.subr.mxu0 0.0
        %2961 = vmatpush1.msra.mxu0 0.0
        %2962 = vmatprep.subr.mxu0 0.0
        %2963 = vmatpush1.msra.mxu0 0.0
        %2964 = vmatprep.subr.mxu0 0.0
        %2965 = vmatpush1.msra.mxu0 0.0
        %2966 = vmatprep.subr.mxu0 0.0
        %2967 = vmatpush1.msra.mxu0 0.0
        %2968 = vmatprep.subr.mxu0 0.0
        %2969 = vmatpush1.msra.mxu0 0.0
        %2970 = vmatprep.subr.mxu0 0.0
        %2971 = vmatpush1.msra.mxu0 0.0
        %2972 = vmatprep.subr.mxu0 0.0
        %2973 = vmatpush1.msra.mxu0 0.0
        %2974 = vmatprep.subr.mxu0 0.0
        %2975 = vmatpush1.msra.mxu0 0.0
        %2976 = vmatprep.subr.mxu0 0.0
        %2977 = vmatpush1.msra.mxu0 0.0
        %2978 = vmatprep.subr.mxu0 0.0
        %2979 = vmatpush1.msra.mxu0 0.0
        %2980 = vmatprep.subr.mxu0 0.0
        %2981 = vmatpush1.msra.mxu0 0.0
        %2982 = vmatprep.subr.mxu0 0.0
        %2983 = vmatpush1.msra.mxu0 0.0
        %2984 = vmatprep.subr.mxu0 0.0
        %2985 = vmatpush1.msra.mxu0 0.0
        %2986 = vmatprep.subr.mxu0 0.0
        %2987 = vmatpush1.msra.mxu0 0.0
        %2988 = vmatprep.mubr.f32.mxu0 0.0
        %2989 = vmatmul.mubr.f32.gmra.mrb[0].mxu0 %v545
        %v2990 = vpop.f32.mrb[0].mxu0
        %v2991 = vadd.f32 %v2846, %v2990
        %v2992 = vpop.f32.mrb[0].mxu0
        %2993 = vmatprep.mubr.f32.mxu0 0.0
        %2994 = vmatmul.mubr.f32.gmra.mrb[0].mxu0 %v546
        %v2995 = vpop.f32.mrb[0].mxu0
        %v2996 = vadd.f32 %v2851, %v2995
        %v2997 = vpop.f32.mrb[0].mxu0
        %2998 = vmatprep.mubr.f32.mxu0 0.0
        %2999 = vmatmul.mubr.f32.gmra.mrb[0].mxu0 %v547
        %v3000 = vpop.f32.mrb[0].mxu0
        %v3001 = vadd.f32 %v2856, %v3000
        %v3002 = vpop.f32.mrb[0].mxu0
        %3003 = vmatprep.mubr.f32.mxu0 0.0
        %3004 = vmatmul.mubr.f32.gmra.mrb[0].mxu0 %v548
        %v3005 = vpop.f32.mrb[0].mxu0
        %v3006 = vadd.f32 %v2861, %v3005
        %v3007 = vpop.f32.mrb[0].mxu0
        %3008 = vmatprep.mubr.f32.mxu0 0.0
        %3009 = vmatmul.mubr.f32.gmra.mrb[0].mxu0 %v549
        %v3010 = vpop.f32.mrb[0].mxu0
        %v3011 = vadd.f32 %v2866, %v3010
        %v3012 = vpop.f32.mrb[0].mxu0
        %3013 = vmatprep.mubr.f32.mxu0 0.0
        %3014 = vmatmul.mubr.f32.gmra.mrb[0].mxu0 %v550
        %v3015 = vpop.f32.mrb[0].mxu0
        %v3016 = vadd.f32 %v2871, %v3015
        %v3017 = vpop.f32.mrb[0].mxu0
        %3018 = vmatprep.mubr.f32.mxu0 0.0
        %3019 = vmatmul.mubr.f32.gmra.mrb[0].mxu0 %v551
        %v3020 = vpop.f32.mrb[0].mxu0
        %v3021 = vadd.f32 %v2876, %v3020
        %v3022 = vpop.f32.mrb[0].mxu0
        %3023 = vmatprep.mubr.f32.mxu0 0.0
        %3024 = vmatmul.mubr.f32.gmra.mrb[0].mxu0 %v552
        %v3025 = vpop.f32.mrb[0].mxu0
        %v3026 = vadd.f32 %v2881, %v3025
        %v3027 = vpop.f32.mrb[0].mxu0
        %3028 = vmatprep.mubr.f32.mxu0 0.0
        %3029 = vmatmul.mubr.f32.gmra.mrb[0].mxu0 %v553
        %v3030 = vpop.f32.mrb[0].mxu0
        %v3031 = vadd.f32 %v2886, %v3030
        %v3032 = vpop.f32.mrb[0].mxu0
        %3033 = vmatprep.mubr.f32.mxu0 0.0
        %3034 = vmatmul.mubr.f32.gmra.mrb[0].mxu0 %v554
        %v3035 = vpop.f32.mrb[0].mxu0
        %v3036 = vadd.f32 %v2891, %v3035
        %v3037 = vpop.f32.mrb[0].mxu0
        %3038 = vmatprep.mubr.f32.mxu0 0.0
        %3039 = vmatmul.mubr.f32.gmra.mrb[0].mxu0 %v555
        %v3040 = vpop.f32.mrb[0].mxu0
        %v3041 = vadd.f32 %v2896, %v3040
        %v3042 = vpop.f32.mrb[0].mxu0
        %3043 = vmatprep.mubr.f32.mxu0 0.0
        %3044 = vmatmul.mubr.f32.gmra.mrb[0].mxu0 %v556
        %v3045 = vpop.f32.mrb[0].mxu0
        %v3046 = vadd.f32 %v2901, %v3045
        %v3047 = vpop.f32.mrb[0].mxu0
        %3048 = vmatprep.mubr.f32.mxu0 0.0
        %3049 = vmatmul.mubr.f32.gmra.mrb[0].mxu0 %v557
        %v3050 = vpop.f32.mrb[0].mxu0
        %v3051 = vadd.f32 %v2906, %v3050
        %v3052 = vpop.f32.mrb[0].mxu0
        %3053 = vmatprep.mubr.f32.mxu0 0.0
        %3054 = vmatmul.mubr.f32.gmra.mrb[0].mxu0 %v558
        %v3055 = vpop.f32.mrb[0].mxu0
        %v3056 = vadd.f32 %v2911, %v3055
        %v3057 = vpop.f32.mrb[0].mxu0
        %3058 = vmatprep.mubr.f32.mxu0 0.0
        %3059 = vmatmul.mubr.f32.gmra.mrb[0].mxu0 %v559
        %v3060 = vpop.f32.mrb[0].mxu0
        %v3061 = vadd.f32 %v2916, %v3060
        %v3062 = vpop.f32.mrb[0].mxu0
        %3063 = vmatprep.mubr.f32.mxu0 0.0
        %3064 = vmatmul.mubr.f32.gmra.mrb[0].mxu0 %v560
        %v3065 = vpop.f32.mrb[0].mxu0
        %v3066 = vadd.f32 %v2921, %v3065
        %v3067 = vpop.f32.mrb[0].mxu0
        %3068 = vdwg.mxu0
        %v3069 = vlaneseq
        %v3070 = vshrl.u32 %v3069, 7
        %v3071 = vsub.s32 0, %v3070
        %v3072 = vrot.slane %v539, %v3071
        %v3073 = vadd.f32 %v2991, %v3072
        %v3074 = vadd.f32 %v2996, %v3072
        %v3075 = vadd.f32 %v3001, %v3072
        %v3076 = vadd.f32 %v3006, %v3072
        %v3077 = vadd.f32 %v3011, %v3072
        %v3078 = vadd.f32 %v3016, %v3072
        %v3079 = vadd.f32 %v3021, %v3072
        %v3080 = vadd.f32 %v3026, %v3072
        %v3081 = vadd.f32 %v3031, %v3072
        %v3082 = vadd.f32 %v3036, %v3072
        %v3083 = vadd.f32 %v3041, %v3072
        %v3084 = vadd.f32 %v3046, %v3072
        %v3085 = vadd.f32 %v3051, %v3072
        %v3086 = vadd.f32 %v3056, %v3072
        %v3087 = vadd.f32 %v3061, %v3072
        %v3088 = vadd.f32 %v3066, %v3072
        %v3089 = vmax.f32 %v3073, 0.0
        %v3090 = vmax.f32 %v3074, 0.0
        %v3091 = vmax.f32 %v3075, 0.0
        %v3092 = vmax.f32 %v3076, 0.0
        %v3093 = vmax.f32 %v3077, 0.0
        %v3094 = vmax.f32 %v3078, 0.0
        %v3095 = vmax.f32 %v3079, 0.0
        %v3096 = vmax.f32 %v3080, 0.0
        %v3097 = vmax.f32 %v3081, 0.0
        %v3098 = vmax.f32 %v3082, 0.0
        %v3099 = vmax.f32 %v3083, 0.0
        %v3100 = vmax.f32 %v3084, 0.0
        %v3101 = vmax.f32 %v3085, 0.0
        %v3102 = vmax.f32 %v3086, 0.0
        %v3103 = vmax.f32 %v3087, 0.0
        %v3104 = vmax.f32 %v3088, 0.0
        %v3105 = vmul.f32 %v3089, %v3089
        %v3106 = vmul.f32 %v3090, %v3090
        %v3107 = vmul.f32 %v3091, %v3091
        %v3108 = vmul.f32 %v3092, %v3092
        %v3109 = vmul.f32 %v3093, %v3093
        %v3110 = vmul.f32 %v3094, %v3094
        %v3111 = vmul.f32 %v3095, %v3095
        %v3112 = vmul.f32 %v3096, %v3096
        %v3113 = vmul.f32 %v3097, %v3097
        %v3114 = vmul.f32 %v3098, %v3098
        %v3115 = vmul.f32 %v3099, %v3099
        %v3116 = vmul.f32 %v3100, %v3100
        %v3117 = vmul.f32 %v3101, %v3101
        %v3118 = vmul.f32 %v3102, %v3102
        %v3119 = vmul.f32 %v3103, %v3103
        %v3120 = vmul.f32 %v3104, %v3104
        %3121 = vadd.xlane.f32.xlu0 %v3105
        %v3122 = vpop.xlane.xlu0 %3121
        %3123 = vadd.xlane.f32.xlu0 %v3106
        %v3124 = vpop.xlane.xlu0 %3123
        %3125 = vadd.xlane.f32.xlu0 %v3107
        %v3126 = vpop.xlane.xlu0 %3125
        %3127 = vadd.xlane.f32.xlu0 %v3108
        %v3128 = vpop.xlane.xlu0 %3127
        %3129 = vadd.xlane.f32.xlu0 %v3109
        %v3130 = vpop.xlane.xlu0 %3129
        %3131 = vadd.xlane.f32.xlu0 %v3110
        %v3132 = vpop.xlane.xlu0 %3131
        %3133 = vadd.xlane.f32.xlu0 %v3111
        %v3134 = vpop.xlane.xlu0 %3133
        %3135 = vadd.xlane.f32.xlu0 %v3112
        %v3136 = vpop.xlane.xlu0 %3135
        %3137 = vadd.xlane.f32.xlu0 %v3113
        %v3138 = vpop.xlane.xlu0 %3137
        %3139 = vadd.xlane.f32.xlu0 %v3114
        %v3140 = vpop.xlane.xlu0 %3139
        %3141 = vadd.xlane.f32.xlu0 %v3115
        %v3142 = vpop.xlane.xlu0 %3141
        %3143 = vadd.xlane.f32.xlu0 %v3116
        %v3144 = vpop.xlane.xlu0 %3143
        %3145 = vadd.xlane.f32.xlu0 %v3117
        %v3146 = vpop.xlane.xlu0 %3145
        %3147 = vadd.xlane.f32.xlu0 %v3118
        %v3148 = vpop.xlane.xlu0 %3147
        %3149 = vadd.xlane.f32.xlu0 %v3119
        %v3150 = vpop.xlane.xlu0 %3149
        %3151 = vadd.xlane.f32.xlu0 %v3120
        %v3152 = vpop.xlane.xlu0 %3151
        %v3153 = vmax.f32 %v3122, 1e-24
        %v3154 = vmax.f32 %v3124, 1e-24
        %v3155 = vmax.f32 %v3126, 1e-24
        %v3156 = vmax.f32 %v3128, 1e-24
        %v3157 = vmax.f32 %v3130, 1e-24
        %v3158 = vmax.f32 %v3132, 1e-24
        %v3159 = vmax.f32 %v3134, 1e-24
        %v3160 = vmax.f32 %v3136, 1e-24
        %v3161 = vmax.f32 %v3138, 1e-24
        %v3162 = vmax.f32 %v3140, 1e-24
        %v3163 = vmax.f32 %v3142, 1e-24
        %v3164 = vmax.f32 %v3144, 1e-24
        %v3165 = vmax.f32 %v3146, 1e-24
        %v3166 = vmax.f32 %v3148, 1e-24
        %v3167 = vmax.f32 %v3150, 1e-24
        %v3168 = vmax.f32 %v3152, 1e-24
        %v3169 = vrsqrt.pop %v3153
        %v3170 = vrsqrt.pop %v3154
        %v3171 = vrsqrt.pop %v3155
        %v3172 = vrsqrt.pop %v3156
        %v3173 = vrsqrt.pop %v3157
        %v3174 = vrsqrt.pop %v3158
        %v3175 = vrsqrt.pop %v3159
        %v3176 = vrsqrt.pop %v3160
        %v3177 = vrsqrt.pop %v3161
        %v3178 = vrsqrt.pop %v3162
        %v3179 = vrsqrt.pop %v3163
        %v3180 = vrsqrt.pop %v3164
        %v3181 = vrsqrt.pop %v3165
        %v3182 = vrsqrt.pop %v3166
        %v3183 = vrsqrt.pop %v3167
        %v3184 = vrsqrt.pop %v3168
        %v3185 = vmul.f32 %v3089, %v3169
        %v3186 = vmul.f32 %v3090, %v3170
        %v3187 = vmul.f32 %v3091, %v3171
        %v3188 = vmul.f32 %v3092, %v3172
        %v3189 = vmul.f32 %v3093, %v3173
        %v3190 = vmul.f32 %v3094, %v3174
        %v3191 = vmul.f32 %v3095, %v3175
        %v3192 = vmul.f32 %v3096, %v3176
        %v3193 = vmul.f32 %v3097, %v3177
        %v3194 = vmul.f32 %v3098, %v3178
        %v3195 = vmul.f32 %v3099, %v3179
        %v3196 = vmul.f32 %v3100, %v3180
        %v3197 = vmul.f32 %v3101, %v3181
        %v3198 = vmul.f32 %v3102, %v3182
        %v3199 = vmul.f32 %v3103, %v3183
        %v3200 = vmul.f32 %v3104, %v3184
        %v3201 = vmax.f32 %v3185, 0.0
        %v3202 = vmax.f32 %v3186, 0.0
        %v3203 = vmax.f32 %v3187, 0.0
        %v3204 = vmax.f32 %v3188, 0.0
        %v3205 = vmax.f32 %v3189, 0.0
        %v3206 = vmax.f32 %v3190, 0.0
        %v3207 = vmax.f32 %v3191, 0.0
        %v3208 = vmax.f32 %v3192, 0.0
        %v3209 = vmax.f32 %v3193, 0.0
        %v3210 = vmax.f32 %v3194, 0.0
        %v3211 = vmax.f32 %v3195, 0.0
        %v3212 = vmax.f32 %v3196, 0.0
        %v3213 = vmax.f32 %v3197, 0.0
        %v3214 = vmax.f32 %v3198, 0.0
        %v3215 = vmax.f32 %v3199, 0.0
        %v3216 = vmax.f32 %v3200, 0.0
        %v3217 = vlaneseq
        %v3218 = vshrl.u32 %v3217, 7
        %v3219 = vsub.s32 0, %v3218
        %v3220 = vrot.slane %v540, %v3219
        %3221 = vmatprep.subr.mxu0 0.0
        %3222 = vmatpush1.msra.mxu0 %v520
        %3223 = vmatprep.subr.mxu0 0.0
        %3224 = vmatpush1.msra.mxu0 %v521
        %3225 = vmatprep.subr.mxu0 0.0
        %3226 = vmatpush1.msra.mxu0 %v522
        %3227 = vmatprep.subr.mxu0 0.0
        %3228 = vmatpush1.msra.mxu0 %v523
        %3229 = vmatprep.subr.mxu0 0.0
        %3230 = vmatpush1.msra.mxu0 %v524
        %3231 = vmatprep.subr.mxu0 0.0
        %3232 = vmatpush1.msra.mxu0 %v525
        %3233 = vmatprep.subr.mxu0 0.0
        %3234 = vmatpush1.msra.mxu0 %v526
        %3235 = vmatprep.subr.mxu0 0.0
        %3236 = vmatpush1.msra.mxu0 %v527
        %3237 = vmatprep.subr.mxu0 0.0
        %3238 = vmatpush1.msra.mxu0 %v528
        %3239 = vmatprep.subr.mxu0 0.0
        %3240 = vmatpush1.msra.mxu0 %v529
        %3241 = vmatprep.subr.mxu0 0.0
        %3242 = vmatpush1.msra.mxu0 %v530
        %3243 = vmatprep.subr.mxu0 0.0
        %3244 = vmatpush1.msra.mxu0 %v531
        %3245 = vmatprep.subr.mxu0 0.0
        %3246 = vmatpush1.msra.mxu0 %v532
        %3247 = vmatprep.subr.mxu0 0.0
        %3248 = vmatpush1.msra.mxu0 %v533
        %3249 = vmatprep.subr.mxu0 0.0
        %3250 = vmatpush1.msra.mxu0 %v534
        %3251 = vmatprep.subr.mxu0 0.0
        %3252 = vmatpush1.msra.mxu0 %v535
        %3253 = vmatprep.subr.mxu0 0.0
        %3254 = vmatpush1.msra.mxu0 0.0
        %3255 = vmatprep.subr.mxu0 0.0
        %3256 = vmatpush1.msra.mxu0 0.0
        %3257 = vmatprep.subr.mxu0 0.0
        %3258 = vmatpush1.msra.mxu0 0.0
        %3259 = vmatprep.subr.mxu0 0.0
        %3260 = vmatpush1.msra.mxu0 0.0
        %3261 = vmatprep.subr.mxu0 0.0
        %3262 = vmatpush1.msra.mxu0 0.0
        %3263 = vmatprep.subr.mxu0 0.0
        %3264 = vmatpush1.msra.mxu0 0.0
        %3265 = vmatprep.subr.mxu0 0.0
        %3266 = vmatpush1.msra.mxu0 0.0
        %3267 = vmatprep.subr.mxu0 0.0
        %3268 = vmatpush1.msra.mxu0 0.0
        %3269 = vmatprep.subr.mxu0 0.0
        %3270 = vmatpush1.msra.mxu0 0.0
        %3271 = vmatprep.subr.mxu0 0.0
        %3272 = vmatpush1.msra.mxu0 0.0
        %3273 = vmatprep.subr.mxu0 0.0
        %3274 = vmatpush1.msra.mxu0 0.0
        %3275 = vmatprep.subr.mxu0 0.0
        %3276 = vmatpush1.msra.mxu0 0.0
        %3277 = vmatprep.subr.mxu0 0.0
        %3278 = vmatpush1.msra.mxu0 0.0
        %3279 = vmatprep.subr.mxu0 0.0
        %3280 = vmatpush1.msra.mxu0 0.0
        %3281 = vmatprep.subr.mxu0 0.0
        %3282 = vmatpush1.msra.mxu0 0.0
        %3283 = vmatprep.subr.mxu0 0.0
        %3284 = vmatpush1.msra.mxu0 0.0
        %3285 = vmatprep.mubr.f32.mxu0 0.0
        %3286 = vmatmul.mubr.f32.gmra.mrb[0].mxu0 %v3201
        %v3287 = vpop.f32.mrb[0].mxu0
        %v3288 = vadd.f32 %v3220, %v3287
        %v3289 = vpop.f32.mrb[0].mxu0
        %3290 = vmatprep.mubr.f32.mxu0 0.0
        %3291 = vmatmul.mubr.f32.gmra.mrb[0].mxu0 %v3202
        %v3292 = vpop.f32.mrb[0].mxu0
        %v3293 = vadd.f32 %v3220, %v3292
        %v3294 = vpop.f32.mrb[0].mxu0
        %3295 = vmatprep.mubr.f32.mxu0 0.0
        %3296 = vmatmul.mubr.f32.gmra.mrb[0].mxu0 %v3203
        %v3297 = vpop.f32.mrb[0].mxu0
        %v3298 = vadd.f32 %v3220, %v3297
        %v3299 = vpop.f32.mrb[0].mxu0
        %3300 = vmatprep.mubr.f32.mxu0 0.0
        %3301 = vmatmul.mubr.f32.gmra.mrb[0].mxu0 %v3204
        %v3302 = vpop.f32.mrb[0].mxu0
        %v3303 = vadd.f32 %v3220, %v3302
        %v3304 = vpop.f32.mrb[0].mxu0
        %3305 = vmatprep.mubr.f32.mxu0 0.0
        %3306 = vmatmul.mubr.f32.gmra.mrb[0].mxu0 %v3205
        %v3307 = vpop.f32.mrb[0].mxu0
        %v3308 = vadd.f32 %v3220, %v3307
        %v3309 = vpop.f32.mrb[0].mxu0
        %3310 = vmatprep.mubr.f32.mxu0 0.0
        %3311 = vmatmul.mubr.f32.gmra.mrb[0].mxu0 %v3206
        %v3312 = vpop.f32.mrb[0].mxu0
        %v3313 = vadd.f32 %v3220, %v3312
        %v3314 = vpop.f32.mrb[0].mxu0
        %3315 = vmatprep.mubr.f32.mxu0 0.0
        %3316 = vmatmul.mubr.f32.gmra.mrb[0].mxu0 %v3207
        %v3317 = vpop.f32.mrb[0].mxu0
        %v3318 = vadd.f32 %v3220, %v3317
        %v3319 = vpop.f32.mrb[0].mxu0
        %3320 = vmatprep.mubr.f32.mxu0 0.0
        %3321 = vmatmul.mubr.f32.gmra.mrb[0].mxu0 %v3208
        %v3322 = vpop.f32.mrb[0].mxu0
        %v3323 = vadd.f32 %v3220, %v3322
        %v3324 = vpop.f32.mrb[0].mxu0
        %3325 = vmatprep.mubr.f32.mxu0 0.0
        %3326 = vmatmul.mubr.f32.gmra.mrb[0].mxu0 %v3209
        %v3327 = vpop.f32.mrb[0].mxu0
        %v3328 = vadd.f32 %v3220, %v3327
        %v3329 = vpop.f32.mrb[0].mxu0
        %3330 = vmatprep.mubr.f32.mxu0 0.0
        %3331 = vmatmul.mubr.f32.gmra.mrb[0].mxu0 %v3210
        %v3332 = vpop.f32.mrb[0].mxu0
        %v3333 = vadd.f32 %v3220, %v3332
        %v3334 = vpop.f32.mrb[0].mxu0
        %3335 = vmatprep.mubr.f32.mxu0 0.0
        %3336 = vmatmul.mubr.f32.gmra.mrb[0].mxu0 %v3211
        %v3337 = vpop.f32.mrb[0].mxu0
        %v3338 = vadd.f32 %v3220, %v3337
        %v3339 = vpop.f32.mrb[0].mxu0
        %3340 = vmatprep.mubr.f32.mxu0 0.0
        %3341 = vmatmul.mubr.f32.gmra.mrb[0].mxu0 %v3212
        %v3342 = vpop.f32.mrb[0].mxu0
        %v3343 = vadd.f32 %v3220, %v3342
        %v3344 = vpop.f32.mrb[0].mxu0
        %3345 = vmatprep.mubr.f32.mxu0 0.0
        %3346 = vmatmul.mubr.f32.gmra.mrb[0].mxu0 %v3213
        %v3347 = vpop.f32.mrb[0].mxu0
        %v3348 = vadd.f32 %v3220, %v3347
        %v3349 = vpop.f32.mrb[0].mxu0
        %3350 = vmatprep.mubr.f32.mxu0 0.0
        %3351 = vmatmul.mubr.f32.gmra.mrb[0].mxu0 %v3214
        %v3352 = vpop.f32.mrb[0].mxu0
        %v3353 = vadd.f32 %v3220, %v3352
        %v3354 = vpop.f32.mrb[0].mxu0
        %3355 = vmatprep.mubr.f32.mxu0 0.0
        %3356 = vmatmul.mubr.f32.gmra.mrb[0].mxu0 %v3215
        %v3357 = vpop.f32.mrb[0].mxu0
        %v3358 = vadd.f32 %v3220, %v3357
        %v3359 = vpop.f32.mrb[0].mxu0
        %3360 = vmatprep.mubr.f32.mxu0 0.0
        %3361 = vmatmul.mubr.f32.gmra.mrb[0].mxu0 %v3216
        %v3362 = vpop.f32.mrb[0].mxu0
        %v3363 = vadd.f32 %v3220, %v3362
        %v3364 = vpop.f32.mrb[0].mxu0
        %3365 = vdwg.mxu0
        %3366 = vst [vmem:[%s434] sm:$0xff] %v3288
        %3367 = vst [vmem:[%s434 + $0x8] sm:$0xff] %v3293
        %3368 = vst [vmem:[%s434 + $0x10] sm:$0xff] %v3298
        %3369 = vst [vmem:[%s434 + $0x18] sm:$0xff] %v3303
        %3370 = vst [vmem:[%s434 + $0x20] sm:$0xff] %v3308
        %3371 = vst [vmem:[%s434 + $0x28] sm:$0xff] %v3313
        %3372 = vst [vmem:[%s434 + $0x30] sm:$0xff] %v3318
        %3373 = vst [vmem:[%s434 + $0x38] sm:$0xff] %v3323
        %3374 = vst [vmem:[%s434 + $0x40] sm:$0xff] %v3328
        %3375 = vst [vmem:[%s434 + $0x48] sm:$0xff] %v3333
        %3376 = vst [vmem:[%s434 + $0x50] sm:$0xff] %v3338
        %3377 = vst [vmem:[%s434 + $0x58] sm:$0xff] %v3343
        %3378 = vst [vmem:[%s434 + $0x60] sm:$0xff] %v3348
        %3379 = vst [vmem:[%s434 + $0x68] sm:$0xff] %v3353
        %3380 = vst [vmem:[%s434 + $0x70] sm:$0xff] %v3358
        %3381 = vst [vmem:[%s434 + $0x78] sm:$0xff] %v3363
        %s3382 = sand.u32 %s199, 1
        %s3383 = scalar_lea.sflag [#allocation4], %s3382
        %s3384 = sand.u32 %s199, 1
        %s3385 = smul.addr %s3384, 128
        %s3386 = scalar_lea.vmem [#allocation14], %s3385
        // Predicated region
        $region77: #{tpu_custom_call.1} parent=47 // pred_check
          %p3387 = pneg %p209
        $region78: #{tpu_custom_call.1} parent=47 // pred_check_branch
          %3389 = sbr.rel (%p3387) target = $region80
        $region79: #{tpu_custom_call.1} parent=47 // pred_region
          %s3390 = smul.u32 16, %s29
          %s3392 = ssub.s32 2048, 2048
          %3393 = vsyncadd %s3383, %s3392
          %s3394 = smul.addr %s3390, 128
          %s3395 = scalar_lea.hbm %s7, %s3394
          %s3396 = sshll.u32 %s3386, 4
          %s3397 = int_to_ptr.vmem [resolvable:$true] %s3396
          %3402 = dma.vmem_to_hbm [thread:$0]  %s3397, 2048, %s3395, %s3383, 128, 128, 8
        $region80: #{tpu_custom_call.1} parent=47 // pred_fallthru
          _
      $region48: #{tpu_custom_call.1} parent=5 // pred_fallthru
        _
      %p3403 = scmp.le.s32.totalorder 2, %s24
      // Predicated region
      $region81: #{tpu_custom_call.1} parent=5 // pred_check
        %p3404 = pneg %p3403
      $region82: #{tpu_custom_call.1} parent=5 // pred_check_branch
        %3406 = sbr.rel (%p3404) target = $region84
      $region83: #{tpu_custom_call.1} parent=5 // pred_region
        %s3407 = ssub.s32 %s24, 2
        // Predicated region
        $region85: #{tpu_custom_call.1} parent=83 // pred_check
          %p3408 = pneg %p215
        $region86: #{tpu_custom_call.1} parent=83 // pred_check_branch
          %3410 = sbr.rel (%p3408) target = $region88
        $region87: #{tpu_custom_call.1} parent=83 // pred_region
          %s3411 = sand.u32 %s200, 1
          %s3412 = scalar_lea.sflag [#allocation4], %s3411
          %s3413 = sand.u32 %s200, 1
          %s3414 = smul.addr %s3413, 128
          %s3415 = scalar_lea.vmem [#allocation14], %s3414
          %3416 = dma.done %s3412, 2048
        $region88: #{tpu_custom_call.1} parent=83 // pred_fallthru
          _
      $region84: #{tpu_custom_call.1} parent=5 // pred_fallthru
        _
    $region6: #{tpu_custom_call.1} parent=1 // loop_footer
      %s28 = sadd.s32 1, %s24
    $region7: #{tpu_custom_call.1} parent=1 // loop_footer_branch
      %23 = sbr.rel target = $region3
    $region8: #{tpu_custom_call.1} parent=1 // loop_exit
      _
    %3417 = vsyncpa [#allocation3], 1
    %s3418 = scalar_lea.sflag [#allocation3], 1
    %3419 = vsyncpa %s3418, 1
    %3420 = vsyncpa [#allocation6], 1
    %s3421 = scalar_lea.sflag [#allocation6], 1
    %3422 = vsyncpa %s3421, 1
    %3423 = vsyncpa [#allocation9], 1
    %3424 = vsyncpa [#allocation12], 1
    %3425 = vsyncpa [#allocation4], 1
    %s3426 = scalar_lea.sflag [#allocation4], 1
    %3427 = vsyncpa %s3426, 1

</llo_original>
